<compile_context>
chip_gen: v7x
topology: tpu7x:2x2x1
jax: 0.10.0
libtpu: 0.0.40
codegen_flags: <defaults>
</compile_context>

<pallas_src>
import functools
import math

import jax
import jax.numpy as jnp
import numpy as np
from jax.experimental import pallas as pl
from jax.experimental.pallas import tpu as pltpu


def _shift_down(a, s):
    """out[t] = a[t - s] for t >= s, else 0 (zero-fill shift along time/sublanes)."""
    zeros = jnp.zeros((s,) + a.shape[1:], a.dtype)
    return jnp.concatenate([zeros, a[: a.shape[0] - s]], axis=0)


def _shift_right(a, s):
    """out[..., j] = a[..., j - s] for j >= s, else 0 (zero-fill shift along lanes)."""
    zeros = jnp.zeros(a.shape[:-1] + (s,), a.dtype)
    return jnp.concatenate([zeros, a[..., : a.shape[-1] - s]], axis=-1)


def rwkv_timemix_kernel(x_ref, wext_ref, alpha_ref, beta_ref, wkvr_ref, bkvr_ref,
                        wo_ref, bo_ref, gamma_ref, o_ref, wkv_ref,
                        *, n_head, head_size):
    x = x_ref[0]                                   # (T, C) bf16
    T, C = x.shape
    hs = head_size
    A = n_head * hs

    # ---- time-shift channel mix: first C//2 channels see x[t-1] ------------
    x_prev = _shift_down(x, 1)
    half = C // 2
    if half % 128 == 0:
        # lane-aligned split: essentially free layout plumbing
        x_mix = jnp.concatenate([x_prev[:, :half], x[:, half:]], axis=-1)
    else:
        col = jax.lax.broadcasted_iota(jnp.int32, (T, C), 1)
        x_mix = jnp.where(col < half, x_prev, x)

    # ---- fused K|V|R projection: one (T,C)x(C,3A) bf16 MXU matmul ----------
    p = jnp.dot(x_mix, wkvr_ref[...],
                preferred_element_type=jnp.float32) + bkvr_ref[...]
    k = p[:, :A]
    v = p[:, A:2 * A]
    r = p[:, 2 * A:]

    # k = exp(clamp(k, -60, 30)) -- the whole k / sum_k / kv path stays f32
    # (exp(k) spans far too much dynamic range for bf16).
    k = jnp.exp(jnp.clip(k, -60.0, 30.0))

    # ---- sum_k = cumsum(k, time): log-step prefix scan (off the MXU) -------
    sum_k = k
    step = 1
    while step < T:
        sum_k = sum_k + _shift_down(sum_k, step)
        step *= 2

    # ---- per-head causal time-decay attention ------------------------------
    kv = k * v                                     # (T, A) f32
    wext = wext_ref[...]                           # (H, 2T) f32
    alpha = alpha_ref[...]                         # (T, H) f32, indexed by key pos u
    beta = beta_ref[...]                           # (T, H) f32, indexed by query pos t

    # Bit masks for the per-row Toeplitz shift (hoisted; reused by all heads).
    row = jax.lax.broadcasted_iota(jnp.int32, (T, 1), 0)
    shift_bits = []
    sh = 1
    while sh < T:
        shift_bits.append((sh, (row & sh) != 0))
        sh *= 2

    for h in range(n_head):
        # Build head h's causal Toeplitz decay block in VMEM:
        #   decay[t, u] = time_w[h, TT-1-(t-u)] for u <= t, 0 otherwise.
        # wext[h] = [0, time_w[h, TT-T:TT], 0 x (T-1)]; shifting row t right by
        # t lanes and taking lanes [T:2T) yields exactly the masked block.
        m = jnp.broadcast_to(wext[h:h + 1, :], (T, 2 * T))
        for sh, bit in shift_bits:
            m = jnp.where(bit, _shift_right(m, sh), m)
        decay = m[:, T:]                           # (T, T) f32

        # alpha scales the key position, beta the query position: fold them
        # into the cheap (T, hs) operands instead of the (T, T) block.
        kv_h = kv[:, h * hs:(h + 1) * hs] * alpha[:, h:h + 1]
        wkv_h = jnp.dot(decay, kv_h, preferred_element_type=jnp.float32)
        # TODO(synk): N = head_size under-fills the 128/256-wide MXU; the
        # production fix is the chunked-recurrence formulation (see header).
        wkv_ref[:, h * hs:(h + 1) * hs] = wkv_h * beta[:, h:h + 1]

    # ---- rwkv = sigmoid(r) * wkv / sum_k, then output projection -----------
    r0 = pl.reciprocal(sum_k, approx=True)         # EUP slot
    inv_sum_k = r0 * (2.0 - sum_k * r0)            # one Newton step (~f32 exact)
    rwkv = (jax.nn.sigmoid(r) * wkv_ref[...] * inv_sum_k).astype(jnp.bfloat16)
    out = jnp.dot(rwkv, wo_ref[...],
                  preferred_element_type=jnp.float32) + bo_ref[...]
    o_ref[0] = out * gamma_ref[...]                # (T, C) * (T, 1)


def _vmem_limit_bytes():
    """~56 MiB on v7x (64 MiB physical), 112 MiB on v5e/v6e (128 MiB physical)."""
    cap = None
    try:
        cap = int(pltpu.get_tpu_info().vmem_capacity_bytes)
    except Exception:
        pass
    if cap is None:
        kind = jax.devices()[0].device_kind.lower()
        cap = 64 * 1024 * 1024 if "7" in kind else 128 * 1024 * 1024
    return max(min(cap - 8 * 1024 * 1024, 112 * 1024 * 1024), 32 * 1024 * 1024)


def rwkv_timemix(x, params, *, n_head, ctx_len):
    B, T, C = x.shape
    A = params["wk"].shape[1]
    H = n_head
    hs = A // n_head
    TT = ctx_len
    assert A % n_head == 0 and C % 2 == 0 and T <= TT

    # Small decay inputs; the (H, T, T) Toeplitz is built inside the kernel.
    # wext[h] = [0, time_w[h, TT-T:TT], 0 ... 0]  -> (H, 2T)
    w_ext = jnp.concatenate(
        [jnp.zeros((H, 1), jnp.float32),
         params["time_w"][:, TT - T:TT].astype(jnp.float32),
         jnp.zeros((H, T - 1), jnp.float32)], axis=1)
    alpha_t = jnp.transpose(params["time_alpha"][:, 0, :T])      # (T, H)
    beta_t = jnp.transpose(params["time_beta"][:, :T, 0])        # (T, H)
    gamma = params["time_gamma"][:T, :]                          # (T, 1)

    # Fused K|V|R projection weight (bf16 MXU operands); biases stay f32.
    w_kvr = jnp.concatenate([params["wk"], params["wv"], params["wr"]],
                            axis=1).astype(jnp.bfloat16)         # (C, 3A)
    b_kvr = jnp.concatenate([params["bk"], params["bv"], params["br"]],
                            axis=1)                              # (1, 3A)
    wo = params["wo"].astype(jnp.bfloat16)
    bo = params["bo"]

    x_bf = x.astype(jnp.bfloat16)   # only ever consumed as a bf16 MXU operand

    kernel = functools.partial(rwkv_timemix_kernel, n_head=H, head_size=hs)

    def call(single_buffer):
        def const_spec(shape):
            imap = lambda b: (0,) * len(shape)
            if single_buffer:
                # Fetched once (constant index map): no point double-buffering.
                return pl.BlockSpec(shape, imap, pipeline_mode=pl.Buffered(1))
            return pl.BlockSpec(shape, imap)

        grid_spec = pltpu.PrefetchScalarGridSpec(
            num_scalar_prefetch=0,
            grid=(B,),
            in_specs=[
                pl.BlockSpec((1, T, C), lambda b: (b, 0, 0)),     # x (bf16), streamed
                const_spec((H, 2 * T)),                           # w_ext
                const_spec((T, H)),                               # alpha
                const_spec((T, H)),                               # beta
                const_spec((C, 3 * A)),                           # w_kvr (bf16)
                const_spec((1, 3 * A)),                           # b_kvr
                const_spec((A, C)),                               # wo (bf16)
                const_spec((1, C)),                               # bo
                const_spec((T, 1)),                               # gamma
            ],
            out_specs=pl.BlockSpec((1, T, C), lambda b: (b, 0, 0)),
            scratch_shapes=[pltpu.VMEM((T, A), jnp.float32)],     # wkv slab
        )
        return pl.pallas_call(
            kernel,
            out_shape=jax.ShapeDtypeStruct((B, T, C), jnp.float32),
            grid_spec=grid_spec,
            compiler_params=pltpu.CompilerParams(
                dimension_semantics=("parallel",),
                vmem_limit_bytes=_vmem_limit_bytes()),
        )(x_bf, w_ext, alpha_t, beta_t, w_kvr, b_kvr, wo, bo, gamma)

    try:
        return call(single_buffer=True)
    except Exception:
        # Fallback for JAX builds where pl.Buffered(1) single-buffering is not
        # accepted; the kernel itself is identical.
        return call(single_buffer=False)


# ---------------------------- references -----------------------------------


def time_shift_mix(x):
    """cat([shift-by-one(first half channels), second half channels], -1)."""
    B, T, C = x.shape
    half = C // 2
    x_shift = jnp.pad(x[:, :, :half], ((0, 0), (1, 0), (0, 0)))[:, :T, :]
    return jnp.concatenate([x_shift, x[:, :, half:]], axis=-1)


def build_decay_matrix(time_w, time_alpha, time_beta, ctx_len, T):
    """Replicates the pad/tile/reshape Toeplitz trick from the PyTorch code."""
    H = time_w.shape[0]
    TT = ctx_len
    w = jnp.pad(time_w, ((0, 0), (0, TT)))            # (H, 2TT)
    w = jnp.tile(w, (1, TT))                          # (H, 2TT*TT)
    w = w[:, :-TT].reshape(H, TT, 2 * TT - 1)
    w = w[:, :, TT - 1:]                              # (H, TT, TT) causal Toeplitz
    w = w[:, :T, :T] * time_alpha[:, :, :T] * time_beta[:, :T, :]
    return w                                          # (H, T, T)


def rwkv_timemix_ref(x, params, *, n_head, ctx_len, mixed=False):
    """Pure-JAX mirror of the PyTorch forward.

    mixed=False -> exact fp32 mirror of the PyTorch module.
    mixed=True  -> mirrors the kernel's precision choices (bf16 operands for
                   the K/V/R and output projections; everything else f32).
    """
    B, T, C = x.shape
    A = params["wk"].shape[1]
    hs = A // n_head
    dt = jnp.bfloat16 if mixed else jnp.float32
    w = build_decay_matrix(params["time_w"], params["time_alpha"],
                           params["time_beta"], ctx_len, T)
    xm = time_shift_mix(x.astype(dt))

    def proj(wname, bname):
        return (jnp.dot(xm, params[wname].astype(dt),
                        preferred_element_type=jnp.float32) + params[bname])

    k = proj("wk", "bk")
    v = proj("wv", "bv")
    r = proj("wr", "br")
    k = jnp.exp(jnp.clip(k, -60.0, 30.0))
    sum_k = jnp.cumsum(k, axis=1)
    kv = (k * v).reshape(B, T, n_head, hs)
    wkv = jnp.einsum("htu,buhc->bthc", w, kv,
                     preferred_element_type=jnp.float32).reshape(B, T, -1)
    rwkv = jax.nn.sigmoid(r) * wkv / sum_k
    out = (jnp.dot(rwkv.astype(dt), params["wo"].astype(dt),
                   preferred_element_type=jnp.float32) + params["bo"])
    return out * params["time_gamma"][:T, :]


def init_params(key, n_embd, n_attn, n_head, ctx_len):
    # time_w decay init exactly as in the PyTorch __init__
    curve = jnp.array([-(ctx_len - 1 - i) for i in range(ctx_len)],
                      dtype=jnp.float32)
    rows = []
    for h in range(n_head):
        if h < n_head - 1:
            decay_speed = math.pow(ctx_len, -(h + 1) / (n_head - 1))
        else:
            decay_speed = 0.0
        rows.append(jnp.exp(curve * decay_speed))
    time_w = jnp.stack(rows)                                  # (H, ctx_len)

    def linear(k, fan_in, fan_out):
        kw, kb = jax.random.split(k)
        bound = 1.0 / math.sqrt(fan_in)
        w = jax.random.uniform(kw, (fan_in, fan_out), jnp.float32, -bound, bound)
        b = jax.random.uniform(kb, (1, fan_out), jnp.float32, -bound, bound)
        return w, b

    k1, k2, k3, k4 = jax.random.split(key, 4)
    wk, bk = linear(k1, n_embd, n_attn)
    wv, bv = linear(k2, n_embd, n_attn)
    wr, br = linear(k3, n_embd, n_attn)
    wo, bo = linear(k4, n_attn, n_embd)

    return dict(
        time_w=time_w,
        time_alpha=jnp.ones((n_head, 1, ctx_len), jnp.float32),
        time_beta=jnp.ones((n_head, ctx_len, 1), jnp.float32),
        time_gamma=jnp.ones((ctx_len, 1), jnp.float32),
        wk=wk, bk=bk, wv=wv, bv=bv, wr=wr, br=br, wo=wo, bo=bo,
    )


if __name__ == "__main__":
    B, T = 2, 8
    n_embd, n_attn, n_head, ctx_len = 32, 32, 4, 8

    root = jax.random.PRNGKey(0)
    kx, kp = jax.random.split(root)
    x = jax.random.normal(kx, (B, T, n_embd), dtype=jnp.float32)
    params = init_params(kp, n_embd, n_attn, n_head, ctx_len)

    out = rwkv_timemix(x, params, n_head=n_head, ctx_len=ctx_len)
    out = jax.block_until_ready(out)

    # Tight check vs. a reference with the kernel's precision choices.
    ref_mixed = rwkv_timemix_ref(x, params, n_head=n_head, ctx_len=ctx_len,
                                 mixed=True)
    np.testing.assert_allclose(np.asarray(out), np.asarray(ref_mixed),
                               rtol=2e-2, atol=1e-2)

    # Sanity check vs. the exact fp32 mirror of the PyTorch module.
    ref_f32 = rwkv_timemix_ref(x, params, n_head=n_head, ctx_len=ctx_len,
                               mixed=False)
    np.testing.assert_allclose(np.asarray(out), np.asarray(ref_f32),
                               rtol=5e-2, atol=3e-2)

    print("KERNEL_OK")
</pallas_src>

<mosaic_0001>
module attributes {stable_mosaic.version = 11 : i64} {
  func.func @rwkv_timemix_kernel(%arg0: i32, %arg1: memref<1x8x32xbf16, #tpu.memory_space<vmem>>, %arg2: memref<4x16xf32, #tpu.memory_space<vmem>>, %arg3: memref<8x4xf32, #tpu.memory_space<vmem>>, %arg4: memref<8x4xf32, #tpu.memory_space<vmem>>, %arg5: memref<32x96xbf16, #tpu.memory_space<vmem>>, %arg6: memref<1x96xf32, #tpu.memory_space<vmem>>, %arg7: memref<32x32xbf16, #tpu.memory_space<vmem>>, %arg8: memref<1x32xf32, #tpu.memory_space<vmem>>, %arg9: memref<8x1xf32, #tpu.memory_space<vmem>>, %arg10: memref<1x8x32xf32, #tpu.memory_space<vmem>>, %arg11: memref<8x32xf32, #tpu.memory_space<vmem>>) attributes {dimension_semantics = [#tpu.dimension_semantics<parallel>], iteration_bounds = array<i64: 2>, scalar_prefetch = 0 : i64, scratch_operands = 1 : i64, tpu.core_type = #tpu.core_type<tc>, window_params = [{transform_indices = @transform_0, window_bounds = array<i64: 1, 8, 32>}, {pipeline_mode = #tpu.pipeline_mode<synchronous>, transform_indices = @transform_1, window_bounds = array<i64: 4, 16>}, {pipeline_mode = #tpu.pipeline_mode<synchronous>, transform_indices = @transform_2, window_bounds = array<i64: 8, 4>}, {pipeline_mode = #tpu.pipeline_mode<synchronous>, transform_indices = @transform_3, window_bounds = array<i64: 8, 4>}, {pipeline_mode = #tpu.pipeline_mode<synchronous>, transform_indices = @transform_4, window_bounds = array<i64: 32, 96>}, {pipeline_mode = #tpu.pipeline_mode<synchronous>, transform_indices = @transform_5, window_bounds = array<i64: 1, 96>}, {pipeline_mode = #tpu.pipeline_mode<synchronous>, transform_indices = @transform_6, window_bounds = array<i64: 32, 32>}, {pipeline_mode = #tpu.pipeline_mode<synchronous>, transform_indices = @transform_7, window_bounds = array<i64: 1, 32>}, {pipeline_mode = #tpu.pipeline_mode<synchronous>, transform_indices = @transform_8, window_bounds = array<i64: 8, 1>}, {transform_indices = @transform_9, window_bounds = array<i64: 1, 8, 32>}]} {
    %c0 = arith.constant 0 : index
    %c0_0 = arith.constant 0 : index
    %c0_1 = arith.constant 0 : index
    %0 = vector.load %arg1[%c0, %c0_0, %c0_1] : memref<1x8x32xbf16, #tpu.memory_space<vmem>>, vector<1x8x32xbf16>
    %1 = vector.shape_cast %0 : vector<1x8x32xbf16> to vector<8x32xbf16>
    %cst = arith.constant 0.000000e+00 : bf16
    %2 = vector.broadcast %cst : bf16 to vector<1x32xbf16>
    %3 = vector.extract_strided_slice %1 {offsets = [0, 0], sizes = [7, 32], strides = [1, 1]} : vector<8x32xbf16> to vector<7x32xbf16>
    %4 = tpu.concatenate %2, %3 in 0 : vector<1x32xbf16>, vector<7x32xbf16> -> vector<8x32xbf16>
    %5 = tpu.iota {dimensions = array<i32: 1>} : vector<8x32xi32>
    %c16_i32 = arith.constant 16 : i32
    %6 = vector.broadcast %c16_i32 : i32 to vector<8x32xi32>
    %7 = arith.cmpi slt, %5, %6 : vector<8x32xi32>
    %8 = arith.select %7, %4, %1 : vector<8x32xi1>, vector<8x32xbf16>
    %c0_2 = arith.constant 0 : index
    %c0_3 = arith.constant 0 : index
    %9 = vector.load %arg5[%c0_2, %c0_3] : memref<32x96xbf16, #tpu.memory_space<vmem>>, vector<32x96xbf16>
    %cst_4 = arith.constant dense<0.000000e+00> : vector<8x96xf32>
    %10 = tpu.matmul %8, %9, %cst_4 {dimension_numbers = #tpu.dot_dimension_numbers<[1], [0], [0], [1], [0, 0, 1, 1], [], []>} : vector<8x32xbf16>, vector<32x96xbf16>, vector<8x96xf32> -> vector<8x96xf32>
    %c0_5 = arith.constant 0 : index
    %c0_6 = arith.constant 0 : index
    %11 = vector.load %arg6[%c0_5, %c0_6] : memref<1x96xf32, #tpu.memory_space<vmem>>, vector<1x96xf32>
    %12 = vector.broadcast %11 : vector<1x96xf32> to vector<8x96xf32>
    %13 = arith.addf %10, %12 : vector<8x96xf32>
    %14 = vector.extract_strided_slice %13 {offsets = [0, 0], sizes = [8, 32], strides = [1, 1]} : vector<8x96xf32> to vector<8x32xf32>
    %15 = vector.extract_strided_slice %13 {offsets = [0, 32], sizes = [8, 32], strides = [1, 1]} : vector<8x96xf32> to vector<8x32xf32>
    %16 = vector.extract_strided_slice %13 {offsets = [0, 64], sizes = [8, 32], strides = [1, 1]} : vector<8x96xf32> to vector<8x32xf32>
    %cst_7 = arith.constant -6.000000e+01 : f32
    %cst_8 = arith.constant 3.000000e+01 : f32
    %17 = vector.broadcast %cst_7 : f32 to vector<8x32xf32>
    %18 = arith.maximumf %17, %14 : vector<8x32xf32>
    %19 = vector.broadcast %cst_8 : f32 to vector<8x32xf32>
    %20 = arith.minimumf %19, %18 : vector<8x32xf32>
    %21 = math.exp %20 : vector<8x32xf32>
    %cst_9 = arith.constant 0.000000e+00 : f32
    %22 = vector.broadcast %cst_9 : f32 to vector<1x32xf32>
    %23 = vector.extract_strided_slice %21 {offsets = [0, 0], sizes = [7, 32], strides = [1, 1]} : vector<8x32xf32> to vector<7x32xf32>
    %24 = tpu.concatenate %22, %23 in 0 : vector<1x32xf32>, vector<7x32xf32> -> vector<8x32xf32>
    %25 = arith.addf %21, %24 : vector<8x32xf32>
    %cst_10 = arith.constant 0.000000e+00 : f32
    %26 = vector.broadcast %cst_10 : f32 to vector<2x32xf32>
    %27 = vector.extract_strided_slice %25 {offsets = [0, 0], sizes = [6, 32], strides = [1, 1]} : vector<8x32xf32> to vector<6x32xf32>
    %28 = tpu.concatenate %26, %27 in 0 : vector<2x32xf32>, vector<6x32xf32> -> vector<8x32xf32>
    %29 = arith.addf %25, %28 : vector<8x32xf32>
    %cst_11 = arith.constant 0.000000e+00 : f32
    %30 = vector.broadcast %cst_11 : f32 to vector<4x32xf32>
    %31 = vector.extract_strided_slice %29 {offsets = [0, 0], sizes = [4, 32], strides = [1, 1]} : vector<8x32xf32> to vector<4x32xf32>
    %32 = tpu.concatenate %30, %31 in 0 : vector<4x32xf32>, vector<4x32xf32> -> vector<8x32xf32>
    %33 = arith.addf %29, %32 : vector<8x32xf32>
    %34 = arith.mulf %21, %15 : vector<8x32xf32>
    %c0_12 = arith.constant 0 : index
    %c0_13 = arith.constant 0 : index
    %35 = vector.load %arg2[%c0_12, %c0_13] : memref<4x16xf32, #tpu.memory_space<vmem>>, vector<4x16xf32>
    %c0_14 = arith.constant 0 : index
    %c0_15 = arith.constant 0 : index
    %36 = vector.load %arg3[%c0_14, %c0_15] : memref<8x4xf32, #tpu.memory_space<vmem>>, vector<8x4xf32>
    %c0_16 = arith.constant 0 : index
    %c0_17 = arith.constant 0 : index
    %37 = vector.load %arg4[%c0_16, %c0_17] : memref<8x4xf32, #tpu.memory_space<vmem>>, vector<8x4xf32>
    %38 = tpu.iota {dimensions = array<i32: 0>} : vector<8x1xi32>
    %c1_i32 = arith.constant 1 : i32
    %39 = vector.broadcast %c1_i32 : i32 to vector<8x1xi32>
    %40 = arith.andi %38, %39 : vector<8x1xi32>
    %c0_i32 = arith.constant 0 : i32
    %41 = vector.broadcast %c0_i32 : i32 to vector<8x1xi32>
    %42 = arith.cmpi ne, %40, %41 : vector<8x1xi32>
    %c2_i32 = arith.constant 2 : i32
    %43 = vector.broadcast %c2_i32 : i32 to vector<8x1xi32>
    %44 = arith.andi %38, %43 : vector<8x1xi32>
    %c0_i32_18 = arith.constant 0 : i32
    %45 = vector.broadcast %c0_i32_18 : i32 to vector<8x1xi32>
    %46 = arith.cmpi ne, %44, %45 : vector<8x1xi32>
    %c4_i32 = arith.constant 4 : i32
    %47 = vector.broadcast %c4_i32 : i32 to vector<8x1xi32>
    %48 = arith.andi %38, %47 : vector<8x1xi32>
    %c0_i32_19 = arith.constant 0 : i32
    %49 = vector.broadcast %c0_i32_19 : i32 to vector<8x1xi32>
    %50 = arith.cmpi ne, %48, %49 : vector<8x1xi32>
    %51 = vector.extract_strided_slice %35 {offsets = [0, 0], sizes = [1, 16], strides = [1, 1]} : vector<4x16xf32> to vector<1x16xf32>
    %52 = vector.shape_cast %51 : vector<1x16xf32> to vector<1x16xf32>
    %53 = vector.broadcast %52 : vector<1x16xf32> to vector<8x16xf32>
    %cst_20 = arith.constant 0.000000e+00 : f32
    %54 = vector.broadcast %cst_20 : f32 to vector<8x1xf32>
    %55 = vector.extract_strided_slice %53 {offsets = [0, 0], sizes = [8, 15], strides = [1, 1]} : vector<8x16xf32> to vector<8x15xf32>
    %56 = tpu.concatenate %54, %55 in 1 : vector<8x1xf32>, vector<8x15xf32> -> vector<8x16xf32>
    %57 = vector.shape_cast %42 : vector<8x1xi1> to vector<8x1xi1>
    %58 = vector.broadcast %57 : vector<8x1xi1> to vector<8x16xi1>
    %59 = arith.select %58, %56, %53 : vector<8x16xi1>, vector<8x16xf32>
    %cst_21 = arith.constant 0.000000e+00 : f32
    %60 = vector.broadcast %cst_21 : f32 to vector<8x2xf32>
    %61 = vector.extract_strided_slice %59 {offsets = [0, 0], sizes = [8, 14], strides = [1, 1]} : vector<8x16xf32> to vector<8x14xf32>
    %62 = tpu.concatenate %60, %61 in 1 : vector<8x2xf32>, vector<8x14xf32> -> vector<8x16xf32>
    %63 = vector.shape_cast %46 : vector<8x1xi1> to vector<8x1xi1>
    %64 = vector.broadcast %63 : vector<8x1xi1> to vector<8x16xi1>
    %65 = arith.select %64, %62, %59 : vector<8x16xi1>, vector<8x16xf32>
    %cst_22 = arith.constant 0.000000e+00 : f32
    %66 = vector.broadcast %cst_22 : f32 to vector<8x4xf32>
    %67 = vector.extract_strided_slice %65 {offsets = [0, 0], sizes = [8, 12], strides = [1, 1]} : vector<8x16xf32> to vector<8x12xf32>
    %68 = tpu.concatenate %66, %67 in 1 : vector<8x4xf32>, vector<8x12xf32> -> vector<8x16xf32>
    %69 = vector.shape_cast %50 : vector<8x1xi1> to vector<8x1xi1>
    %70 = vector.broadcast %69 : vector<8x1xi1> to vector<8x16xi1>
    %71 = arith.select %70, %68, %65 : vector<8x16xi1>, vector<8x16xf32>
    %72 = vector.extract_strided_slice %71 {offsets = [0, 8], sizes = [8, 8], strides = [1, 1]} : vector<8x16xf32> to vector<8x8xf32>
    %73 = vector.extract_strided_slice %34 {offsets = [0, 0], sizes = [8, 8], strides = [1, 1]} : vector<8x32xf32> to vector<8x8xf32>
    %74 = vector.extract_strided_slice %36 {offsets = [0, 0], sizes = [8, 1], strides = [1, 1]} : vector<8x4xf32> to vector<8x1xf32>
    %75 = vector.broadcast %74 : vector<8x1xf32> to vector<8x8xf32>
    %76 = arith.mulf %73, %75 : vector<8x8xf32>
    %cst_23 = arith.constant dense<0.000000e+00> : vector<8x8xf32>
    %77 = tpu.matmul %72, %76, %cst_23 {dimension_numbers = #tpu.dot_dimension_numbers<[1], [0], [0], [1], [0, 0, 1, 1], [], []>} : vector<8x8xf32>, vector<8x8xf32>, vector<8x8xf32> -> vector<8x8xf32>
    %78 = vector.extract_strided_slice %37 {offsets = [0, 0], sizes = [8, 1], strides = [1, 1]} : vector<8x4xf32> to vector<8x1xf32>
    %79 = vector.broadcast %78 : vector<8x1xf32> to vector<8x8xf32>
    %80 = arith.mulf %77, %79 : vector<8x8xf32>
    %c0_24 = arith.constant 0 : index
    %c0_25 = arith.constant 0 : index
    %81 = vector.load %arg11[%c0_24, %c0_25] : memref<8x32xf32, #tpu.memory_space<vmem>>, vector<8x8xf32>
    tpu.vector_store %arg11[%c0_24, %c0_25], %80 {strides = array<i32>} : memref<8x32xf32, #tpu.memory_space<vmem>>, vector<8x8xf32>,
    %82 = vector.extract_strided_slice %35 {offsets = [1, 0], sizes = [1, 16], strides = [1, 1]} : vector<4x16xf32> to vector<1x16xf32>
    %83 = vector.shape_cast %82 : vector<1x16xf32> to vector<1x16xf32>
    %84 = vector.broadcast %83 : vector<1x16xf32> to vector<8x16xf32>
    %cst_26 = arith.constant 0.000000e+00 : f32
    %85 = vector.broadcast %cst_26 : f32 to vector<8x1xf32>
    %86 = vector.extract_strided_slice %84 {offsets = [0, 0], sizes = [8, 15], strides = [1, 1]} : vector<8x16xf32> to vector<8x15xf32>
    %87 = tpu.concatenate %85, %86 in 1 : vector<8x1xf32>, vector<8x15xf32> -> vector<8x16xf32>
    %88 = vector.shape_cast %42 : vector<8x1xi1> to vector<8x1xi1>
    %89 = vector.broadcast %88 : vector<8x1xi1> to vector<8x16xi1>
    %90 = arith.select %89, %87, %84 : vector<8x16xi1>, vector<8x16xf32>
    %cst_27 = arith.constant 0.000000e+00 : f32
    %91 = vector.broadcast %cst_27 : f32 to vector<8x2xf32>
    %92 = vector.extract_strided_slice %90 {offsets = [0, 0], sizes = [8, 14], strides = [1, 1]} : vector<8x16xf32> to vector<8x14xf32>
    %93 = tpu.concatenate %91, %92 in 1 : vector<8x2xf32>, vector<8x14xf32> -> vector<8x16xf32>
    %94 = vector.shape_cast %46 : vector<8x1xi1> to vector<8x1xi1>
    %95 = vector.broadcast %94 : vector<8x1xi1> to vector<8x16xi1>
    %96 = arith.select %95, %93, %90 : vector<8x16xi1>, vector<8x16xf32>
    %cst_28 = arith.constant 0.000000e+00 : f32
    %97 = vector.broadcast %cst_28 : f32 to vector<8x4xf32>
    %98 = vector.extract_strided_slice %96 {offsets = [0, 0], sizes = [8, 12], strides = [1, 1]} : vector<8x16xf32> to vector<8x12xf32>
    %99 = tpu.concatenate %97, %98 in 1 : vector<8x4xf32>, vector<8x12xf32> -> vector<8x16xf32>
    %100 = vector.shape_cast %50 : vector<8x1xi1> to vector<8x1xi1>
    %101 = vector.broadcast %100 : vector<8x1xi1> to vector<8x16xi1>
    %102 = arith.select %101, %99, %96 : vector<8x16xi1>, vector<8x16xf32>
    %103 = vector.extract_strided_slice %102 {offsets = [0, 8], sizes = [8, 8], strides = [1, 1]} : vector<8x16xf32> to vector<8x8xf32>
    %104 = vector.extract_strided_slice %34 {offsets = [0, 8], sizes = [8, 8], strides = [1, 1]} : vector<8x32xf32> to vector<8x8xf32>
    %105 = vector.extract_strided_slice %36 {offsets = [0, 1], sizes = [8, 1], strides = [1, 1]} : vector<8x4xf32> to vector<8x1xf32>
    %106 = vector.broadcast %105 : vector<8x1xf32> to vector<8x8xf32>
    %107 = arith.mulf %104, %106 : vector<8x8xf32>
    %cst_29 = arith.constant dense<0.000000e+00> : vector<8x8xf32>
    %108 = tpu.matmul %103, %107, %cst_29 {dimension_numbers = #tpu.dot_dimension_numbers<[1], [0], [0], [1], [0, 0, 1, 1], [], []>} : vector<8x8xf32>, vector<8x8xf32>, vector<8x8xf32> -> vector<8x8xf32>
    %109 = vector.extract_strided_slice %37 {offsets = [0, 1], sizes = [8, 1], strides = [1, 1]} : vector<8x4xf32> to vector<8x1xf32>
    %110 = vector.broadcast %109 : vector<8x1xf32> to vector<8x8xf32>
    %111 = arith.mulf %108, %110 : vector<8x8xf32>
    %c0_30 = arith.constant 0 : index
    %c8 = arith.constant 8 : index
    %112 = vector.load %arg11[%c0_30, %c8] : memref<8x32xf32, #tpu.memory_space<vmem>>, vector<8x8xf32>
    tpu.vector_store %arg11[%c0_30, %c8], %111 {strides = array<i32>} : memref<8x32xf32, #tpu.memory_space<vmem>>, vector<8x8xf32>,
    %113 = vector.extract_strided_slice %35 {offsets = [2, 0], sizes = [1, 16], strides = [1, 1]} : vector<4x16xf32> to vector<1x16xf32>
    %114 = vector.shape_cast %113 : vector<1x16xf32> to vector<1x16xf32>
    %115 = vector.broadcast %114 : vector<1x16xf32> to vector<8x16xf32>
    %cst_31 = arith.constant 0.000000e+00 : f32
    %116 = vector.broadcast %cst_31 : f32 to vector<8x1xf32>
    %117 = vector.extract_strided_slice %115 {offsets = [0, 0], sizes = [8, 15], strides = [1, 1]} : vector<8x16xf32> to vector<8x15xf32>
    %118 = tpu.concatenate %116, %117 in 1 : vector<8x1xf32>, vector<8x15xf32> -> vector<8x16xf32>
    %119 = vector.shape_cast %42 : vector<8x1xi1> to vector<8x1xi1>
    %120 = vector.broadcast %119 : vector<8x1xi1> to vector<8x16xi1>
    %121 = arith.select %120, %118, %115 : vector<8x16xi1>, vector<8x16xf32>
    %cst_32 = arith.constant 0.000000e+00 : f32
    %122 = vector.broadcast %cst_32 : f32 to vector<8x2xf32>
    %123 = vector.extract_strided_slice %121 {offsets = [0, 0], sizes = [8, 14], strides = [1, 1]} : vector<8x16xf32> to vector<8x14xf32>
    %124 = tpu.concatenate %122, %123 in 1 : vector<8x2xf32>, vector<8x14xf32> -> vector<8x16xf32>
    %125 = vector.shape_cast %46 : vector<8x1xi1> to vector<8x1xi1>
    %126 = vector.broadcast %125 : vector<8x1xi1> to vector<8x16xi1>
    %127 = arith.select %126, %124, %121 : vector<8x16xi1>, vector<8x16xf32>
    %cst_33 = arith.constant 0.000000e+00 : f32
    %128 = vector.broadcast %cst_33 : f32 to vector<8x4xf32>
    %129 = vector.extract_strided_slice %127 {offsets = [0, 0], sizes = [8, 12], strides = [1, 1]} : vector<8x16xf32> to vector<8x12xf32>
    %130 = tpu.concatenate %128, %129 in 1 : vector<8x4xf32>, vector<8x12xf32> -> vector<8x16xf32>
    %131 = vector.shape_cast %50 : vector<8x1xi1> to vector<8x1xi1>
    %132 = vector.broadcast %131 : vector<8x1xi1> to vector<8x16xi1>
    %133 = arith.select %132, %130, %127 : vector<8x16xi1>, vector<8x16xf32>
    %134 = vector.extract_strided_slice %133 {offsets = [0, 8], sizes = [8, 8], strides = [1, 1]} : vector<8x16xf32> to vector<8x8xf32>
    %135 = vector.extract_strided_slice %34 {offsets = [0, 16], sizes = [8, 8], strides = [1, 1]} : vector<8x32xf32> to vector<8x8xf32>
    %136 = vector.extract_strided_slice %36 {offsets = [0, 2], sizes = [8, 1], strides = [1, 1]} : vector<8x4xf32> to vector<8x1xf32>
    %137 = vector.broadcast %136 : vector<8x1xf32> to vector<8x8xf32>
    %138 = arith.mulf %135, %137 : vector<8x8xf32>
    %cst_34 = arith.constant dense<0.000000e+00> : vector<8x8xf32>
    %139 = tpu.matmul %134, %138, %cst_34 {dimension_numbers = #tpu.dot_dimension_numbers<[1], [0], [0], [1], [0, 0, 1, 1], [], []>} : vector<8x8xf32>, vector<8x8xf32>, vector<8x8xf32> -> vector<8x8xf32>
    %140 = vector.extract_strided_slice %37 {offsets = [0, 2], sizes = [8, 1], strides = [1, 1]} : vector<8x4xf32> to vector<8x1xf32>
    %141 = vector.broadcast %140 : vector<8x1xf32> to vector<8x8xf32>
    %142 = arith.mulf %139, %141 : vector<8x8xf32>
    %c0_35 = arith.constant 0 : index
    %c16 = arith.constant 16 : index
    %143 = vector.load %arg11[%c0_35, %c16] : memref<8x32xf32, #tpu.memory_space<vmem>>, vector<8x8xf32>
    tpu.vector_store %arg11[%c0_35, %c16], %142 {strides = array<i32>} : memref<8x32xf32, #tpu.memory_space<vmem>>, vector<8x8xf32>,
    %144 = vector.extract_strided_slice %35 {offsets = [3, 0], sizes = [1, 16], strides = [1, 1]} : vector<4x16xf32> to vector<1x16xf32>
    %145 = vector.shape_cast %144 : vector<1x16xf32> to vector<1x16xf32>
    %146 = vector.broadcast %145 : vector<1x16xf32> to vector<8x16xf32>
    %cst_36 = arith.constant 0.000000e+00 : f32
    %147 = vector.broadcast %cst_36 : f32 to vector<8x1xf32>
    %148 = vector.extract_strided_slice %146 {offsets = [0, 0], sizes = [8, 15], strides = [1, 1]} : vector<8x16xf32> to vector<8x15xf32>
    %149 = tpu.concatenate %147, %148 in 1 : vector<8x1xf32>, vector<8x15xf32> -> vector<8x16xf32>
    %150 = vector.shape_cast %42 : vector<8x1xi1> to vector<8x1xi1>
    %151 = vector.broadcast %150 : vector<8x1xi1> to vector<8x16xi1>
    %152 = arith.select %151, %149, %146 : vector<8x16xi1>, vector<8x16xf32>
    %cst_37 = arith.constant 0.000000e+00 : f32
    %153 = vector.broadcast %cst_37 : f32 to vector<8x2xf32>
    %154 = vector.extract_strided_slice %152 {offsets = [0, 0], sizes = [8, 14], strides = [1, 1]} : vector<8x16xf32> to vector<8x14xf32>
    %155 = tpu.concatenate %153, %154 in 1 : vector<8x2xf32>, vector<8x14xf32> -> vector<8x16xf32>
    %156 = vector.shape_cast %46 : vector<8x1xi1> to vector<8x1xi1>
    %157 = vector.broadcast %156 : vector<8x1xi1> to vector<8x16xi1>
    %158 = arith.select %157, %155, %152 : vector<8x16xi1>, vector<8x16xf32>
    %cst_38 = arith.constant 0.000000e+00 : f32
    %159 = vector.broadcast %cst_38 : f32 to vector<8x4xf32>
    %160 = vector.extract_strided_slice %158 {offsets = [0, 0], sizes = [8, 12], strides = [1, 1]} : vector<8x16xf32> to vector<8x12xf32>
    %161 = tpu.concatenate %159, %160 in 1 : vector<8x4xf32>, vector<8x12xf32> -> vector<8x16xf32>
    %162 = vector.shape_cast %50 : vector<8x1xi1> to vector<8x1xi1>
    %163 = vector.broadcast %162 : vector<8x1xi1> to vector<8x16xi1>
    %164 = arith.select %163, %161, %158 : vector<8x16xi1>, vector<8x16xf32>
    %165 = vector.extract_strided_slice %164 {offsets = [0, 8], sizes = [8, 8], strides = [1, 1]} : vector<8x16xf32> to vector<8x8xf32>
    %166 = vector.extract_strided_slice %34 {offsets = [0, 24], sizes = [8, 8], strides = [1, 1]} : vector<8x32xf32> to vector<8x8xf32>
    %167 = vector.extract_strided_slice %36 {offsets = [0, 3], sizes = [8, 1], strides = [1, 1]} : vector<8x4xf32> to vector<8x1xf32>
    %168 = vector.broadcast %167 : vector<8x1xf32> to vector<8x8xf32>
    %169 = arith.mulf %166, %168 : vector<8x8xf32>
    %cst_39 = arith.constant dense<0.000000e+00> : vector<8x8xf32>
    %170 = tpu.matmul %165, %169, %cst_39 {dimension_numbers = #tpu.dot_dimension_numbers<[1], [0], [0], [1], [0, 0, 1, 1], [], []>} : vector<8x8xf32>, vector<8x8xf32>, vector<8x8xf32> -> vector<8x8xf32>
    %171 = vector.extract_strided_slice %37 {offsets = [0, 3], sizes = [8, 1], strides = [1, 1]} : vector<8x4xf32> to vector<8x1xf32>
    %172 = vector.broadcast %171 : vector<8x1xf32> to vector<8x8xf32>
    %173 = arith.mulf %170, %172 : vector<8x8xf32>
    %c0_40 = arith.constant 0 : index
    %c24 = arith.constant 24 : index
    %174 = vector.load %arg11[%c0_40, %c24] : memref<8x32xf32, #tpu.memory_space<vmem>>, vector<8x8xf32>
    tpu.vector_store %arg11[%c0_40, %c24], %173 {strides = array<i32>} : memref<8x32xf32, #tpu.memory_space<vmem>>, vector<8x8xf32>,
    %175 = tpu.reciprocal %33 {approx = true} : vector<8x32xf32> -> vector<8x32xf32>
    %176 = arith.mulf %33, %175 : vector<8x32xf32>
    %cst_41 = arith.constant 2.000000e+00 : f32
    %177 = vector.broadcast %cst_41 : f32 to vector<8x32xf32>
    %178 = arith.subf %177, %176 : vector<8x32xf32>
    %179 = arith.mulf %175, %178 : vector<8x32xf32>
    %180 = arith.negf %16 : vector<8x32xf32>
    %181 = math.exp %180 : vector<8x32xf32>
    %cst_42 = arith.constant 1.000000e+00 : f32
    %182 = vector.broadcast %cst_42 : f32 to vector<8x32xf32>
    %183 = arith.addf %182, %181 : vector<8x32xf32>
    %184 = arith.divf %182, %183 : vector<8x32xf32>
    %c0_43 = arith.constant 0 : index
    %c0_44 = arith.constant 0 : index
    %185 = vector.load %arg11[%c0_43, %c0_44] : memref<8x32xf32, #tpu.memory_space<vmem>>, vector<8x32xf32>
    %186 = arith.mulf %184, %185 : vector<8x32xf32>
    %187 = arith.mulf %186, %179 : vector<8x32xf32>
    %188 = arith.truncf %187 : vector<8x32xf32> to vector<8x32xbf16>
    %c0_45 = arith.constant 0 : index
    %c0_46 = arith.constant 0 : index
    %189 = vector.load %arg7[%c0_45, %c0_46] : memref<32x32xbf16, #tpu.memory_space<vmem>>, vector<32x32xbf16>
    %cst_47 = arith.constant dense<0.000000e+00> : vector<8x32xf32>
    %190 = tpu.matmul %188, %189, %cst_47 {dimension_numbers = #tpu.dot_dimension_numbers<[1], [0], [0], [1], [0, 0, 1, 1], [], []>} : vector<8x32xbf16>, vector<32x32xbf16>, vector<8x32xf32> -> vector<8x32xf32>
    %c0_48 = arith.constant 0 : index
    %c0_49 = arith.constant 0 : index
    %191 = vector.load %arg8[%c0_48, %c0_49] : memref<1x32xf32, #tpu.memory_space<vmem>>, vector<1x32xf32>
    %192 = vector.broadcast %191 : vector<1x32xf32> to vector<8x32xf32>
    %193 = arith.addf %190, %192 : vector<8x32xf32>
    %c0_50 = arith.constant 0 : index
    %c0_51 = arith.constant 0 : index
    %194 = vector.load %arg9[%c0_50, %c0_51] : memref<8x1xf32, #tpu.memory_space<vmem>>, vector<8x1xf32>
    %195 = vector.broadcast %194 : vector<8x1xf32> to vector<8x32xf32>
    %196 = arith.mulf %193, %195 : vector<8x32xf32>
    %c0_52 = arith.constant 0 : index
    %c0_53 = arith.constant 0 : index
    %c0_54 = arith.constant 0 : index
    %197 = vector.load %arg10[%c0_52, %c0_53, %c0_54] : memref<1x8x32xf32, #tpu.memory_space<vmem>>, vector<1x8x32xf32>
    %198 = vector.shape_cast %197 : vector<1x8x32xf32> to vector<8x32xf32>
    %199 = vector.shape_cast %196 : vector<8x32xf32> to vector<1x8x32xf32>
    tpu.vector_store %arg10[%c0_52, %c0_53, %c0_54], %199 {strides = array<i32>} : memref<1x8x32xf32, #tpu.memory_space<vmem>>, vector<1x8x32xf32>,
    return
  }
  func.func @transform_0(%arg0: i32) -> (i32, i32, i32) {
    %c0_i32 = arith.constant 0 : i32
    %c0_i32_0 = arith.constant 0 : i32
    %c0_i32_1 = arith.constant 0 : i32
    return %arg0, %c0_i32, %c0_i32_0 : i32, i32, i32
  }
  func.func @transform_1(%arg0: i32) -> (i32, i32) {
    %c0_i32 = arith.constant 0 : i32
    %c0_i32_0 = arith.constant 0 : i32
    %c0_i32_1 = arith.constant 0 : i32
    return %c0_i32, %c0_i32_0 : i32, i32
  }
  func.func @transform_2(%arg0: i32) -> (i32, i32) {
    %c0_i32 = arith.constant 0 : i32
    %c0_i32_0 = arith.constant 0 : i32
    %c0_i32_1 = arith.constant 0 : i32
    return %c0_i32, %c0_i32_0 : i32, i32
  }
  func.func @transform_3(%arg0: i32) -> (i32, i32) {
    %c0_i32 = arith.constant 0 : i32
    %c0_i32_0 = arith.constant 0 : i32
    %c0_i32_1 = arith.constant 0 : i32
    return %c0_i32, %c0_i32_0 : i32, i32
  }
  func.func @transform_4(%arg0: i32) -> (i32, i32) {
    %c0_i32 = arith.constant 0 : i32
    %c0_i32_0 = arith.constant 0 : i32
    %c0_i32_1 = arith.constant 0 : i32
    return %c0_i32, %c0_i32_0 : i32, i32
  }
  func.func @transform_5(%arg0: i32) -> (i32, i32) {
    %c0_i32 = arith.constant 0 : i32
    %c0_i32_0 = arith.constant 0 : i32
    %c0_i32_1 = arith.constant 0 : i32
    return %c0_i32, %c0_i32_0 : i32, i32
  }
  func.func @transform_6(%arg0: i32) -> (i32, i32) {
    %c0_i32 = arith.constant 0 : i32
    %c0_i32_0 = arith.constant 0 : i32
    %c0_i32_1 = arith.constant 0 : i32
    return %c0_i32, %c0_i32_0 : i32, i32
  }
  func.func @transform_7(%arg0: i32) -> (i32, i32) {
    %c0_i32 = arith.constant 0 : i32
    %c0_i32_0 = arith.constant 0 : i32
    %c0_i32_1 = arith.constant 0 : i32
    return %c0_i32, %c0_i32_0 : i32, i32
  }
  func.func @transform_8(%arg0: i32) -> (i32, i32) {
    %c0_i32 = arith.constant 0 : i32
    %c0_i32_0 = arith.constant 0 : i32
    %c0_i32_1 = arith.constant 0 : i32
    return %c0_i32, %c0_i32_0 : i32, i32
  }
  func.func @transform_9(%arg0: i32) -> (i32, i32, i32) {
    %c0_i32 = arith.constant 0 : i32
    %c0_i32_0 = arith.constant 0 : i32
    %c0_i32_1 = arith.constant 0 : i32
    return %arg0, %c0_i32, %c0_i32_0 : i32, i32, i32
  }
}

module attributes {stable_mosaic.version = 11 : i64} {
  func.func @rwkv_timemix_kernel(%arg0: i32, %arg1: memref<1x8x32xbf16, #tpu.memory_space<vmem>>, %arg2: memref<4x16xf32, #tpu.memory_space<vmem>>, %arg3: memref<8x4xf32, #tpu.memory_space<vmem>>, %arg4: memref<8x4xf32, #tpu.memory_space<vmem>>, %arg5: memref<32x96xbf16, #tpu.memory_space<vmem>>, %arg6: memref<1x96xf32, #tpu.memory_space<vmem>>, %arg7: memref<32x32xbf16, #tpu.memory_space<vmem>>, %arg8: memref<1x32xf32, #tpu.memory_space<vmem>>, %arg9: memref<8x1xf32, #tpu.memory_space<vmem>>, %arg10: memref<1x8x32xf32, #tpu.memory_space<vmem>>, %arg11: memref<8x32xf32, #tpu.memory_space<vmem>>) attributes {dimension_semantics = [#tpu.dimension_semantics<parallel>], iteration_bounds = array<i64: 2>, scalar_prefetch = 0 : i64, scratch_operands = 1 : i64, tpu.core_type = #tpu.core_type<tc>, window_params = [{transform_indices = @transform_0, window_bounds = array<i64: 1, 8, 32>}, {pipeline_mode = #tpu.pipeline_mode<synchronous>, transform_indices = @transform_1, window_bounds = array<i64: 4, 16>}, {pipeline_mode = #tpu.pipeline_mode<synchronous>, transform_indices = @transform_2, window_bounds = array<i64: 8, 4>}, {pipeline_mode = #tpu.pipeline_mode<synchronous>, transform_indices = @transform_3, window_bounds = array<i64: 8, 4>}, {pipeline_mode = #tpu.pipeline_mode<synchronous>, transform_indices = @transform_4, window_bounds = array<i64: 32, 96>}, {pipeline_mode = #tpu.pipeline_mode<synchronous>, transform_indices = @transform_5, window_bounds = array<i64: 1, 96>}, {pipeline_mode = #tpu.pipeline_mode<synchronous>, transform_indices = @transform_6, window_bounds = array<i64: 32, 32>}, {pipeline_mode = #tpu.pipeline_mode<synchronous>, transform_indices = @transform_7, window_bounds = array<i64: 1, 32>}, {pipeline_mode = #tpu.pipeline_mode<synchronous>, transform_indices = @transform_8, window_bounds = array<i64: 8, 1>}, {transform_indices = @transform_9, window_bounds = array<i64: 1, 8, 32>}]} {
    %c0 = arith.constant 0 : index
    %c0_0 = arith.constant 0 : index
    %c0_1 = arith.constant 0 : index
    %0 = vector.load %arg1[%c0, %c0_0, %c0_1] : memref<1x8x32xbf16, #tpu.memory_space<vmem>>, vector<1x8x32xbf16>
    %1 = vector.shape_cast %0 : vector<1x8x32xbf16> to vector<8x32xbf16>
    %cst = arith.constant 0.000000e+00 : bf16
    %2 = vector.broadcast %cst : bf16 to vector<1x32xbf16>
    %3 = vector.extract_strided_slice %1 {offsets = [0, 0], sizes = [7, 32], strides = [1, 1]} : vector<8x32xbf16> to vector<7x32xbf16>
    %4 = tpu.concatenate %2, %3 in 0 : vector<1x32xbf16>, vector<7x32xbf16> -> vector<8x32xbf16>
    %5 = tpu.iota {dimensions = array<i32: 1>} : vector<8x32xi32>
    %c16_i32 = arith.constant 16 : i32
    %6 = vector.broadcast %c16_i32 : i32 to vector<8x32xi32>
    %7 = arith.cmpi slt, %5, %6 : vector<8x32xi32>
    %8 = arith.select %7, %4, %1 : vector<8x32xi1>, vector<8x32xbf16>
    %c0_2 = arith.constant 0 : index
    %c0_3 = arith.constant 0 : index
    %9 = vector.load %arg5[%c0_2, %c0_3] : memref<32x96xbf16, #tpu.memory_space<vmem>>, vector<32x96xbf16>
    %cst_4 = arith.constant dense<0.000000e+00> : vector<8x96xf32>
    %10 = tpu.matmul %8, %9, %cst_4 {dimension_numbers = #tpu.dot_dimension_numbers<[1], [0], [0], [1], [0, 0, 1, 1], [], []>} : vector<8x32xbf16>, vector<32x96xbf16>, vector<8x96xf32> -> vector<8x96xf32>
    %c0_5 = arith.constant 0 : index
    %c0_6 = arith.constant 0 : index
    %11 = vector.load %arg6[%c0_5, %c0_6] : memref<1x96xf32, #tpu.memory_space<vmem>>, vector<1x96xf32>
    %12 = vector.broadcast %11 : vector<1x96xf32> to vector<8x96xf32>
    %13 = arith.addf %10, %12 : vector<8x96xf32>
    %14 = vector.extract_strided_slice %13 {offsets = [0, 0], sizes = [8, 32], strides = [1, 1]} : vector<8x96xf32> to vector<8x32xf32>
    %15 = vector.extract_strided_slice %13 {offsets = [0, 32], sizes = [8, 32], strides = [1, 1]} : vector<8x96xf32> to vector<8x32xf32>
    %16 = vector.extract_strided_slice %13 {offsets = [0, 64], sizes = [8, 32], strides = [1, 1]} : vector<8x96xf32> to vector<8x32xf32>
    %cst_7 = arith.constant -6.000000e+01 : f32
    %cst_8 = arith.constant 3.000000e+01 : f32
    %17 = vector.broadcast %cst_7 : f32 to vector<8x32xf32>
    %18 = arith.maximumf %17, %14 : vector<8x32xf32>
    %19 = vector.broadcast %cst_8 : f32 to vector<8x32xf32>
    %20 = arith.minimumf %19, %18 : vector<8x32xf32>
    %21 = math.exp %20 : vector<8x32xf32>
    %cst_9 = arith.constant 0.000000e+00 : f32
    %22 = vector.broadcast %cst_9 : f32 to vector<1x32xf32>
    %23 = vector.extract_strided_slice %21 {offsets = [0, 0], sizes = [7, 32], strides = [1, 1]} : vector<8x32xf32> to vector<7x32xf32>
    %24 = tpu.concatenate %22, %23 in 0 : vector<1x32xf32>, vector<7x32xf32> -> vector<8x32xf32>
    %25 = arith.addf %21, %24 : vector<8x32xf32>
    %cst_10 = arith.constant 0.000000e+00 : f32
    %26 = vector.broadcast %cst_10 : f32 to vector<2x32xf32>
    %27 = vector.extract_strided_slice %25 {offsets = [0, 0], sizes = [6, 32], strides = [1, 1]} : vector<8x32xf32> to vector<6x32xf32>
    %28 = tpu.concatenate %26, %27 in 0 : vector<2x32xf32>, vector<6x32xf32> -> vector<8x32xf32>
    %29 = arith.addf %25, %28 : vector<8x32xf32>
    %cst_11 = arith.constant 0.000000e+00 : f32
    %30 = vector.broadcast %cst_11 : f32 to vector<4x32xf32>
    %31 = vector.extract_strided_slice %29 {offsets = [0, 0], sizes = [4, 32], strides = [1, 1]} : vector<8x32xf32> to vector<4x32xf32>
    %32 = tpu.concatenate %30, %31 in 0 : vector<4x32xf32>, vector<4x32xf32> -> vector<8x32xf32>
    %33 = arith.addf %29, %32 : vector<8x32xf32>
    %34 = arith.mulf %21, %15 : vector<8x32xf32>
    %c0_12 = arith.constant 0 : index
    %c0_13 = arith.constant 0 : index
    %35 = vector.load %arg2[%c0_12, %c0_13] : memref<4x16xf32, #tpu.memory_space<vmem>>, vector<4x16xf32>
    %c0_14 = arith.constant 0 : index
    %c0_15 = arith.constant 0 : index
    %36 = vector.load %arg3[%c0_14, %c0_15] : memref<8x4xf32, #tpu.memory_space<vmem>>, vector<8x4xf32>
    %c0_16 = arith.constant 0 : index
    %c0_17 = arith.constant 0 : index
    %37 = vector.load %arg4[%c0_16, %c0_17] : memref<8x4xf32, #tpu.memory_space<vmem>>, vector<8x4xf32>
    %38 = tpu.iota {dimensions = array<i32: 0>} : vector<8x1xi32>
    %c1_i32 = arith.constant 1 : i32
    %39 = vector.broadcast %c1_i32 : i32 to vector<8x1xi32>
    %40 = arith.andi %38, %39 : vector<8x1xi32>
    %c0_i32 = arith.constant 0 : i32
    %41 = vector.broadcast %c0_i32 : i32 to vector<8x1xi32>
    %42 = arith.cmpi ne, %40, %41 : vector<8x1xi32>
    %c2_i32 = arith.constant 2 : i32
    %43 = vector.broadcast %c2_i32 : i32 to vector<8x1xi32>
    %44 = arith.andi %38, %43 : vector<8x1xi32>
    %c0_i32_18 = arith.constant 0 : i32
    %45 = vector.broadcast %c0_i32_18 : i32 to vector<8x1xi32>
    %46 = arith.cmpi ne, %44, %45 : vector<8x1xi32>
    %c4_i32 = arith.constant 4 : i32
    %47 = vector.broadcast %c4_i32 : i32 to vector<8x1xi32>
    %48 = arith.andi %38, %47 : vector<8x1xi32>
    %c0_i32_19 = arith.constant 0 : i32
    %49 = vector.broadcast %c0_i32_19 : i32 to vector<8x1xi32>
    %50 = arith.cmpi ne, %48, %49 : vector<8x1xi32>
    %51 = vector.extract_strided_slice %35 {offsets = [0, 0], sizes = [1, 16], strides = [1, 1]} : vector<4x16xf32> to vector<1x16xf32>
    %52 = vector.shape_cast %51 : vector<1x16xf32> to vector<1x16xf32>
    %53 = vector.broadcast %52 : vector<1x16xf32> to vector<8x16xf32>
    %cst_20 = arith.constant 0.000000e+00 : f32
    %54 = vector.broadcast %cst_20 : f32 to vector<8x1xf32>
    %55 = vector.extract_strided_slice %53 {offsets = [0, 0], sizes = [8, 15], strides = [1, 1]} : vector<8x16xf32> to vector<8x15xf32>
    %56 = tpu.concatenate %54, %55 in 1 : vector<8x1xf32>, vector<8x15xf32> -> vector<8x16xf32>
    %57 = vector.shape_cast %42 : vector<8x1xi1> to vector<8x1xi1>
    %58 = vector.broadcast %57 : vector<8x1xi1> to vector<8x16xi1>
    %59 = arith.select %58, %56, %53 : vector<8x16xi1>, vector<8x16xf32>
    %cst_21 = arith.constant 0.000000e+00 : f32
    %60 = vector.broadcast %cst_21 : f32 to vector<8x2xf32>
    %61 = vector.extract_strided_slice %59 {offsets = [0, 0], sizes = [8, 14], strides = [1, 1]} : vector<8x16xf32> to vector<8x14xf32>
    %62 = tpu.concatenate %60, %61 in 1 : vector<8x2xf32>, vector<8x14xf32> -> vector<8x16xf32>
    %63 = vector.shape_cast %46 : vector<8x1xi1> to vector<8x1xi1>
    %64 = vector.broadcast %63 : vector<8x1xi1> to vector<8x16xi1>
    %65 = arith.select %64, %62, %59 : vector<8x16xi1>, vector<8x16xf32>
    %cst_22 = arith.constant 0.000000e+00 : f32
    %66 = vector.broadcast %cst_22 : f32 to vector<8x4xf32>
    %67 = vector.extract_strided_slice %65 {offsets = [0, 0], sizes = [8, 12], strides = [1, 1]} : vector<8x16xf32> to vector<8x12xf32>
    %68 = tpu.concatenate %66, %67 in 1 : vector<8x4xf32>, vector<8x12xf32> -> vector<8x16xf32>
    %69 = vector.shape_cast %50 : vector<8x1xi1> to vector<8x1xi1>
    %70 = vector.broadcast %69 : vector<8x1xi1> to vector<8x16xi1>
    %71 = arith.select %70, %68, %65 : vector<8x16xi1>, vector<8x16xf32>
    %72 = vector.extract_strided_slice %71 {offsets = [0, 8], sizes = [8, 8], strides = [1, 1]} : vector<8x16xf32> to vector<8x8xf32>
    %73 = vector.extract_strided_slice %34 {offsets = [0, 0], sizes = [8, 8], strides = [1, 1]} : vector<8x32xf32> to vector<8x8xf32>
    %74 = vector.extract_strided_slice %36 {offsets = [0, 0], sizes = [8, 1], strides = [1, 1]} : vector<8x4xf32> to vector<8x1xf32>
    %75 = vector.broadcast %74 : vector<8x1xf32> to vector<8x8xf32>
    %76 = arith.mulf %73, %75 : vector<8x8xf32>
    %cst_23 = arith.constant dense<0.000000e+00> : vector<8x8xf32>
    %77 = tpu.matmul %72, %76, %cst_23 {dimension_numbers = #tpu.dot_dimension_numbers<[1], [0], [0], [1], [0, 0, 1, 1], [], []>} : vector<8x8xf32>, vector<8x8xf32>, vector<8x8xf32> -> vector<8x8xf32>
    %78 = vector.extract_strided_slice %37 {offsets = [0, 0], sizes = [8, 1], strides = [1, 1]} : vector<8x4xf32> to vector<8x1xf32>
    %79 = vector.broadcast %78 : vector<8x1xf32> to vector<8x8xf32>
    %80 = arith.mulf %77, %79 : vector<8x8xf32>
    %c0_24 = arith.constant 0 : index
    %c0_25 = arith.constant 0 : index
    %81 = vector.load %arg11[%c0_24, %c0_25] : memref<8x32xf32, #tpu.memory_space<vmem>>, vector<8x8xf32>
    tpu.vector_store %arg11[%c0_24, %c0_25], %80 {strides = array<i32>} : memref<8x32xf32, #tpu.memory_space<vmem>>, vector<8x8xf32>,
    %82 = vector.extract_strided_slice %35 {offsets = [1, 0], sizes = [1, 16], strides = [1, 1]} : vector<4x16xf32> to vector<1x16xf32>
    %83 = vector.shape_cast %82 : vector<1x16xf32> to vector<1x16xf32>
    %84 = vector.broadcast %83 : vector<1x16xf32> to vector<8x16xf32>
    %cst_26 = arith.constant 0.000000e+00 : f32
    %85 = vector.broadcast %cst_26 : f32 to vector<8x1xf32>
    %86 = vector.extract_strided_slice %84 {offsets = [0, 0], sizes = [8, 15], strides = [1, 1]} : vector<8x16xf32> to vector<8x15xf32>
    %87 = tpu.concatenate %85, %86 in 1 : vector<8x1xf32>, vector<8x15xf32> -> vector<8x16xf32>
    %88 = vector.shape_cast %42 : vector<8x1xi1> to vector<8x1xi1>
    %89 = vector.broadcast %88 : vector<8x1xi1> to vector<8x16xi1>
    %90 = arith.select %89, %87, %84 : vector<8x16xi1>, vector<8x16xf32>
    %cst_27 = arith.constant 0.000000e+00 : f32
    %91 = vector.broadcast %cst_27 : f32 to vector<8x2xf32>
    %92 = vector.extract_strided_slice %90 {offsets = [0, 0], sizes = [8, 14], strides = [1, 1]} : vector<8x16xf32> to vector<8x14xf32>
    %93 = tpu.concatenate %91, %92 in 1 : vector<8x2xf32>, vector<8x14xf32> -> vector<8x16xf32>
    %94 = vector.shape_cast %46 : vector<8x1xi1> to vector<8x1xi1>
    %95 = vector.broadcast %94 : vector<8x1xi1> to vector<8x16xi1>
    %96 = arith.select %95, %93, %90 : vector<8x16xi1>, vector<8x16xf32>
    %cst_28 = arith.constant 0.000000e+00 : f32
    %97 = vector.broadcast %cst_28 : f32 to vector<8x4xf32>
    %98 = vector.extract_strided_slice %96 {offsets = [0, 0], sizes = [8, 12], strides = [1, 1]} : vector<8x16xf32> to vector<8x12xf32>
    %99 = tpu.concatenate %97, %98 in 1 : vector<8x4xf32>, vector<8x12xf32> -> vector<8x16xf32>
    %100 = vector.shape_cast %50 : vector<8x1xi1> to vector<8x1xi1>
    %101 = vector.broadcast %100 : vector<8x1xi1> to vector<8x16xi1>
    %102 = arith.select %101, %99, %96 : vector<8x16xi1>, vector<8x16xf32>
    %103 = vector.extract_strided_slice %102 {offsets = [0, 8], sizes = [8, 8], strides = [1, 1]} : vector<8x16xf32> to vector<8x8xf32>
    %104 = vector.extract_strided_slice %34 {offsets = [0, 8], sizes = [8, 8], strides = [1, 1]} : vector<8x32xf32> to vector<8x8xf32>
    %105 = vector.extract_strided_slice %36 {offsets = [0, 1], sizes = [8, 1], strides = [1, 1]} : vector<8x4xf32> to vector<8x1xf32>
    %106 = vector.broadcast %105 : vector<8x1xf32> to vector<8x8xf32>
    %107 = arith.mulf %104, %106 : vector<8x8xf32>
    %cst_29 = arith.constant dense<0.000000e+00> : vector<8x8xf32>
    %108 = tpu.matmul %103, %107, %cst_29 {dimension_numbers = #tpu.dot_dimension_numbers<[1], [0], [0], [1], [0, 0, 1, 1], [], []>} : vector<8x8xf32>, vector<8x8xf32>, vector<8x8xf32> -> vector<8x8xf32>
    %109 = vector.extract_strided_slice %37 {offsets = [0, 1], sizes = [8, 1], strides = [1, 1]} : vector<8x4xf32> to vector<8x1xf32>
    %110 = vector.broadcast %109 : vector<8x1xf32> to vector<8x8xf32>
    %111 = arith.mulf %108, %110 : vector<8x8xf32>
    %c0_30 = arith.constant 0 : index
    %c8 = arith.constant 8 : index
    %112 = vector.load %arg11[%c0_30, %c8] : memref<8x32xf32, #tpu.memory_space<vmem>>, vector<8x8xf32>
    tpu.vector_store %arg11[%c0_30, %c8], %111 {strides = array<i32>} : memref<8x32xf32, #tpu.memory_space<vmem>>, vector<8x8xf32>,
    %113 = vector.extract_strided_slice %35 {offsets = [2, 0], sizes = [1, 16], strides = [1, 1]} : vector<4x16xf32> to vector<1x16xf32>
    %114 = vector.shape_cast %113 : vector<1x16xf32> to vector<1x16xf32>
    %115 = vector.broadcast %114 : vector<1x16xf32> to vector<8x16xf32>
    %cst_31 = arith.constant 0.000000e+00 : f32
    %116 = vector.broadcast %cst_31 : f32 to vector<8x1xf32>
    %117 = vector.extract_strided_slice %115 {offsets = [0, 0], sizes = [8, 15], strides = [1, 1]} : vector<8x16xf32> to vector<8x15xf32>
    %118 = tpu.concatenate %116, %117 in 1 : vector<8x1xf32>, vector<8x15xf32> -> vector<8x16xf32>
    %119 = vector.shape_cast %42 : vector<8x1xi1> to vector<8x1xi1>
    %120 = vector.broadcast %119 : vector<8x1xi1> to vector<8x16xi1>
    %121 = arith.select %120, %118, %115 : vector<8x16xi1>, vector<8x16xf32>
    %cst_32 = arith.constant 0.000000e+00 : f32
    %122 = vector.broadcast %cst_32 : f32 to vector<8x2xf32>
    %123 = vector.extract_strided_slice %121 {offsets = [0, 0], sizes = [8, 14], strides = [1, 1]} : vector<8x16xf32> to vector<8x14xf32>
    %124 = tpu.concatenate %122, %123 in 1 : vector<8x2xf32>, vector<8x14xf32> -> vector<8x16xf32>
    %125 = vector.shape_cast %46 : vector<8x1xi1> to vector<8x1xi1>
    %126 = vector.broadcast %125 : vector<8x1xi1> to vector<8x16xi1>
    %127 = arith.select %126, %124, %121 : vector<8x16xi1>, vector<8x16xf32>
    %cst_33 = arith.constant 0.000000e+00 : f32
    %128 = vector.broadcast %cst_33 : f32 to vector<8x4xf32>
    %129 = vector.extract_strided_slice %127 {offsets = [0, 0], sizes = [8, 12], strides = [1, 1]} : vector<8x16xf32> to vector<8x12xf32>
    %130 = tpu.concatenate %128, %129 in 1 : vector<8x4xf32>, vector<8x12xf32> -> vector<8x16xf32>
    %131 = vector.shape_cast %50 : vector<8x1xi1> to vector<8x1xi1>
    %132 = vector.broadcast %131 : vector<8x1xi1> to vector<8x16xi1>
    %133 = arith.select %132, %130, %127 : vector<8x16xi1>, vector<8x16xf32>
    %134 = vector.extract_strided_slice %133 {offsets = [0, 8], sizes = [8, 8], strides = [1, 1]} : vector<8x16xf32> to vector<8x8xf32>
    %135 = vector.extract_strided_slice %34 {offsets = [0, 16], sizes = [8, 8], strides = [1, 1]} : vector<8x32xf32> to vector<8x8xf32>
    %136 = vector.extract_strided_slice %36 {offsets = [0, 2], sizes = [8, 1], strides = [1, 1]} : vector<8x4xf32> to vector<8x1xf32>
    %137 = vector.broadcast %136 : vector<8x1xf32> to vector<8x8xf32>
    %138 = arith.mulf %135, %137 : vector<8x8xf32>
    %cst_34 = arith.constant dense<0.000000e+00> : vector<8x8xf32>
    %139 = tpu.matmul %134, %138, %cst_34 {dimension_numbers = #tpu.dot_dimension_numbers<[1], [0], [0], [1], [0, 0, 1, 1], [], []>} : vector<8x8xf32>, vector<8x8xf32>, vector<8x8xf32> -> vector<8x8xf32>
    %140 = vector.extract_strided_slice %37 {offsets = [0, 2], sizes = [8, 1], strides = [1, 1]} : vector<8x4xf32> to vector<8x1xf32>
    %141 = vector.broadcast %140 : vector<8x1xf32> to vector<8x8xf32>
    %142 = arith.mulf %139, %141 : vector<8x8xf32>
    %c0_35 = arith.constant 0 : index
    %c16 = arith.constant 16 : index
    %143 = vector.load %arg11[%c0_35, %c16] : memref<8x32xf32, #tpu.memory_space<vmem>>, vector<8x8xf32>
    tpu.vector_store %arg11[%c0_35, %c16], %142 {strides = array<i32>} : memref<8x32xf32, #tpu.memory_space<vmem>>, vector<8x8xf32>,
    %144 = vector.extract_strided_slice %35 {offsets = [3, 0], sizes = [1, 16], strides = [1, 1]} : vector<4x16xf32> to vector<1x16xf32>
    %145 = vector.shape_cast %144 : vector<1x16xf32> to vector<1x16xf32>
    %146 = vector.broadcast %145 : vector<1x16xf32> to vector<8x16xf32>
    %cst_36 = arith.constant 0.000000e+00 : f32
    %147 = vector.broadcast %cst_36 : f32 to vector<8x1xf32>
    %148 = vector.extract_strided_slice %146 {offsets = [0, 0], sizes = [8, 15], strides = [1, 1]} : vector<8x16xf32> to vector<8x15xf32>
    %149 = tpu.concatenate %147, %148 in 1 : vector<8x1xf32>, vector<8x15xf32> -> vector<8x16xf32>
    %150 = vector.shape_cast %42 : vector<8x1xi1> to vector<8x1xi1>
    %151 = vector.broadcast %150 : vector<8x1xi1> to vector<8x16xi1>
    %152 = arith.select %151, %149, %146 : vector<8x16xi1>, vector<8x16xf32>
    %cst_37 = arith.constant 0.000000e+00 : f32
    %153 = vector.broadcast %cst_37 : f32 to vector<8x2xf32>
    %154 = vector.extract_strided_slice %152 {offsets = [0, 0], sizes = [8, 14], strides = [1, 1]} : vector<8x16xf32> to vector<8x14xf32>
    %155 = tpu.concatenate %153, %154 in 1 : vector<8x2xf32>, vector<8x14xf32> -> vector<8x16xf32>
    %156 = vector.shape_cast %46 : vector<8x1xi1> to vector<8x1xi1>
    %157 = vector.broadcast %156 : vector<8x1xi1> to vector<8x16xi1>
    %158 = arith.select %157, %155, %152 : vector<8x16xi1>, vector<8x16xf32>
    %cst_38 = arith.constant 0.000000e+00 : f32
    %159 = vector.broadcast %cst_38 : f32 to vector<8x4xf32>
    %160 = vector.extract_strided_slice %158 {offsets = [0, 0], sizes = [8, 12], strides = [1, 1]} : vector<8x16xf32> to vector<8x12xf32>
    %161 = tpu.concatenate %159, %160 in 1 : vector<8x4xf32>, vector<8x12xf32> -> vector<8x16xf32>
    %162 = vector.shape_cast %50 : vector<8x1xi1> to vector<8x1xi1>
    %163 = vector.broadcast %162 : vector<8x1xi1> to vector<8x16xi1>
    %164 = arith.select %163, %161, %158 : vector<8x16xi1>, vector<8x16xf32>
    %165 = vector.extract_strided_slice %164 {offsets = [0, 8], sizes = [8, 8], strides = [1, 1]} : vector<8x16xf32> to vector<8x8xf32>
    %166 = vector.extract_strided_slice %34 {offsets = [0, 24], sizes = [8, 8], strides = [1, 1]} : vector<8x32xf32> to vector<8x8xf32>
    %167 = vector.extract_strided_slice %36 {offsets = [0, 3], sizes = [8, 1], strides = [1, 1]} : vector<8x4xf32> to vector<8x1xf32>
    %168 = vector.broadcast %167 : vector<8x1xf32> to vector<8x8xf32>
    %169 = arith.mulf %166, %168 : vector<8x8xf32>
    %cst_39 = arith.constant dense<0.000000e+00> : vector<8x8xf32>
    %170 = tpu.matmul %165, %169, %cst_39 {dimension_numbers = #tpu.dot_dimension_numbers<[1], [0], [0], [1], [0, 0, 1, 1], [], []>} : vector<8x8xf32>, vector<8x8xf32>, vector<8x8xf32> -> vector<8x8xf32>
    %171 = vector.extract_strided_slice %37 {offsets = [0, 3], sizes = [8, 1], strides = [1, 1]} : vector<8x4xf32> to vector<8x1xf32>
    %172 = vector.broadcast %171 : vector<8x1xf32> to vector<8x8xf32>
    %173 = arith.mulf %170, %172 : vector<8x8xf32>
    %c0_40 = arith.constant 0 : index
    %c24 = arith.constant 24 : index
    %174 = vector.load %arg11[%c0_40, %c24] : memref<8x32xf32, #tpu.memory_space<vmem>>, vector<8x8xf32>
    tpu.vector_store %arg11[%c0_40, %c24], %173 {strides = array<i32>} : memref<8x32xf32, #tpu.memory_space<vmem>>, vector<8x8xf32>,
    %175 = tpu.reciprocal %33 {approx = true} : vector<8x32xf32> -> vector<8x32xf32>
    %176 = arith.mulf %33, %175 : vector<8x32xf32>
    %cst_41 = arith.constant 2.000000e+00 : f32
    %177 = vector.broadcast %cst_41 : f32 to vector<8x32xf32>
    %178 = arith.subf %177, %176 : vector<8x32xf32>
    %179 = arith.mulf %175, %178 : vector<8x32xf32>
    %180 = arith.negf %16 : vector<8x32xf32>
    %181 = math.exp %180 : vector<8x32xf32>
    %cst_42 = arith.constant 1.000000e+00 : f32
    %182 = vector.broadcast %cst_42 : f32 to vector<8x32xf32>
    %183 = arith.addf %182, %181 : vector<8x32xf32>
    %184 = arith.divf %182, %183 : vector<8x32xf32>
    %c0_43 = arith.constant 0 : index
    %c0_44 = arith.constant 0 : index
    %185 = vector.load %arg11[%c0_43, %c0_44] : memref<8x32xf32, #tpu.memory_space<vmem>>, vector<8x32xf32>
    %186 = arith.mulf %184, %185 : vector<8x32xf32>
    %187 = arith.mulf %186, %179 : vector<8x32xf32>
    %188 = arith.truncf %187 : vector<8x32xf32> to vector<8x32xbf16>
    %c0_45 = arith.constant 0 : index
    %c0_46 = arith.constant 0 : index
    %189 = vector.load %arg7[%c0_45, %c0_46] : memref<32x32xbf16, #tpu.memory_space<vmem>>, vector<32x32xbf16>
    %cst_47 = arith.constant dense<0.000000e+00> : vector<8x32xf32>
    %190 = tpu.matmul %188, %189, %cst_47 {dimension_numbers = #tpu.dot_dimension_numbers<[1], [0], [0], [1], [0, 0, 1, 1], [], []>} : vector<8x32xbf16>, vector<32x32xbf16>, vector<8x32xf32> -> vector<8x32xf32>
    %c0_48 = arith.constant 0 : index
    %c0_49 = arith.constant 0 : index
    %191 = vector.load %arg8[%c0_48, %c0_49] : memref<1x32xf32, #tpu.memory_space<vmem>>, vector<1x32xf32>
    %192 = vector.broadcast %191 : vector<1x32xf32> to vector<8x32xf32>
    %193 = arith.addf %190, %192 : vector<8x32xf32>
    %c0_50 = arith.constant 0 : index
    %c0_51 = arith.constant 0 : index
    %194 = vector.load %arg9[%c0_50, %c0_51] : memref<8x1xf32, #tpu.memory_space<vmem>>, vector<8x1xf32>
    %195 = vector.broadcast %194 : vector<8x1xf32> to vector<8x32xf32>
    %196 = arith.mulf %193, %195 : vector<8x32xf32>
    %c0_52 = arith.constant 0 : index
    %c0_53 = arith.constant 0 : index
    %c0_54 = arith.constant 0 : index
    %197 = vector.load %arg10[%c0_52, %c0_53, %c0_54] : memref<1x8x32xf32, #tpu.memory_space<vmem>>, vector<1x8x32xf32>
    %198 = vector.shape_cast %197 : vector<1x8x32xf32> to vector<8x32xf32>
    %199 = vector.shape_cast %196 : vector<8x32xf32> to vector<1x8x32xf32>
    tpu.vector_store %arg10[%c0_52, %c0_53, %c0_54], %199 {strides = array<i32>} : memref<1x8x32xf32, #tpu.memory_space<vmem>>, vector<1x8x32xf32>,
    return
  }
  func.func @transform_0(%arg0: i32) -> (i32, i32, i32) {
    %c0_i32 = arith.constant 0 : i32
    %c0_i32_0 = arith.constant 0 : i32
    %c0_i32_1 = arith.constant 0 : i32
    return %arg0, %c0_i32, %c0_i32_0 : i32, i32, i32
  }
  func.func @transform_1(%arg0: i32) -> (i32, i32) {
    %c0_i32 = arith.constant 0 : i32
    %c0_i32_0 = arith.constant 0 : i32
    %c0_i32_1 = arith.constant 0 : i32
    return %c0_i32, %c0_i32_0 : i32, i32
  }
  func.func @transform_2(%arg0: i32) -> (i32, i32) {
    %c0_i32 = arith.constant 0 : i32
    %c0_i32_0 = arith.constant 0 : i32
    %c0_i32_1 = arith.constant 0 : i32
    return %c0_i32, %c0_i32_0 : i32, i32
  }
  func.func @transform_3(%arg0: i32) -> (i32, i32) {
    %c0_i32 = arith.constant 0 : i32
    %c0_i32_0 = arith.constant 0 : i32
    %c0_i32_1 = arith.constant 0 : i32
    return %c0_i32, %c0_i32_0 : i32, i32
  }
  func.func @transform_4(%arg0: i32) -> (i32, i32) {
    %c0_i32 = arith.constant 0 : i32
    %c0_i32_0 = arith.constant 0 : i32
    %c0_i32_1 = arith.constant 0 : i32
    return %c0_i32, %c0_i32_0 : i32, i32
  }
  func.func @transform_5(%arg0: i32) -> (i32, i32) {
    %c0_i32 = arith.constant 0 : i32
    %c0_i32_0 = arith.constant 0 : i32
    %c0_i32_1 = arith.constant 0 : i32
    return %c0_i32, %c0_i32_0 : i32, i32
  }
  func.func @transform_6(%arg0: i32) -> (i32, i32) {
    %c0_i32 = arith.constant 0 : i32
    %c0_i32_0 = arith.constant 0 : i32
    %c0_i32_1 = arith.constant 0 : i32
    return %c0_i32, %c0_i32_0 : i32, i32
  }
  func.func @transform_7(%arg0: i32) -> (i32, i32) {
    %c0_i32 = arith.constant 0 : i32
    %c0_i32_0 = arith.constant 0 : i32
    %c0_i32_1 = arith.constant 0 : i32
    return %c0_i32, %c0_i32_0 : i32, i32
  }
  func.func @transform_8(%arg0: i32) -> (i32, i32) {
    %c0_i32 = arith.constant 0 : i32
    %c0_i32_0 = arith.constant 0 : i32
    %c0_i32_1 = arith.constant 0 : i32
    return %c0_i32, %c0_i32_0 : i32, i32
  }
  func.func @transform_9(%arg0: i32) -> (i32, i32, i32) {
    %c0_i32 = arith.constant 0 : i32
    %c0_i32_0 = arith.constant 0 : i32
    %c0_i32_1 = arith.constant 0 : i32
    return %arg0, %c0_i32, %c0_i32_0 : i32, i32, i32
  }
}

</mosaic_0001>

<llo_original>
// kernel: tpu_custom_call.1
$region0: #{tpu_custom_call.1}
  #allocation0 [shape = 'u32[]', space=smem, size = 0x4, offset = 0x4, fixed_abs, tag = 'smem constant byte address 0x4 - core index']
  #allocation1 [shape = 'u32[144,128]{1,0:T(1,128)}', space=vmem, size = 0x12000, scoped, tag = 'internal scratch']
  #allocation2 [shape = 'f32[8,32]{1,0:T(8,128)}', space=vmem, size = 0x1000, scoped, tag = 'scratch operand']
  %s0 = inlined_call_operand.hbm [shape: bf16[2,8,32], index: 0, kind: input, shape index: {}]
  %s1 = inlined_call_operand.hbm [shape: f32[4,16], index: 1, kind: input, shape index: {}]
  %s2 = inlined_call_operand.hbm [shape: f32[8,4], index: 2, kind: input, shape index: {}]
  %s3 = inlined_call_operand.hbm [shape: f32[8,4], index: 3, kind: input, shape index: {}]
  %s4 = inlined_call_operand.hbm [shape: bf16[32,96], index: 4, kind: input, shape index: {}]
  %s5 = inlined_call_operand.hbm [shape: f32[1,96], index: 5, kind: input, shape index: {}]
  %s6 = inlined_call_operand.hbm [shape: bf16[32,32], index: 6, kind: input, shape index: {}]
  %s7 = inlined_call_operand.hbm [shape: f32[1,32], index: 7, kind: input, shape index: {}]
  %s8 = inlined_call_operand.hbm [shape: f32[8,1], index: 8, kind: input, shape index: {}]
  %s9 = inlined_call_operand.hbm [shape: f32[2,8,32], index: 9, kind: output, shape index: {}]
  %s10 = sld [smem:[#allocation0]]
  $region105: #{tpu_custom_call.1} parent=0
    _
  %s12 = ssub.s32 1, %s10
  %s13 = scalar_select 0, %s12, %s10
  $region1: #{tpu_custom_call.1} parent=0
    #allocation3 [shape = 'u8[4096]{0}', space=vmem, size = 0x1000, scoped, tag = 'input window, operand 0']
    #allocation4 [shape = 's32[2]{0}', space=sflag, size = 0x8, scoped, tag = 'scoped memory for tpu_custom_call.1']
    #allocation5 [shape = 's32[2]{0}', space=sflag, size = 0x8, scoped, tag = 'scoped memory for tpu_custom_call.1']
    #allocation6 [shape = 'u8[2048]{0}', space=vmem, size = 0x800, scoped, tag = 'input window, operand 1, single buffered']
    #allocation7 [shape = 's32[1]{0}', space=sflag, size = 0x4, scoped, tag = 'scoped memory for tpu_custom_call.1']
    #allocation8 [shape = 'u8[4096]{0}', space=vmem, size = 0x1000, scoped, tag = 'input window, operand 2, single buffered']
    #allocation9 [shape = 'u8[4096]{0}', space=vmem, size = 0x1000, scoped, tag = 'input window, operand 3, single buffered']
    #allocation10 [shape = 's32[1]{0}', space=sflag, size = 0x4, scoped, tag = 'scoped memory for tpu_custom_call.1']
    #allocation11 [shape = 'u8[8192]{0}', space=vmem, size = 0x2000, scoped, tag = 'input window, operand 4, single buffered']
    #allocation12 [shape = 'u8[512]{0}', space=vmem, size = 0x400, scoped, tag = 'input window, operand 5, single buffered']
    #allocation13 [shape = 's32[1]{0}', space=sflag, size = 0x4, scoped, tag = 'scoped memory for tpu_custom_call.1']
    #allocation14 [shape = 'u8[8192]{0}', space=vmem, size = 0x2000, scoped, tag = 'input window, operand 6, single buffered']
    #allocation15 [shape = 'u8[512]{0}', space=vmem, size = 0x400, scoped, tag = 'input window, operand 7, single buffered']
    #allocation16 [shape = 's32[1]{0}', space=sflag, size = 0x4, scoped, tag = 'scoped memory for tpu_custom_call.1']
    #allocation17 [shape = 'u8[4096]{0}', space=vmem, size = 0x1000, scoped, tag = 'input window, operand 8, single buffered']
    #allocation18 [shape = 'u8[8192]{0}', space=vmem, size = 0x2000, scoped, tag = 'output window, operand 0']
    %14 = vsyncpa [#allocation4], 0
    %s15 = scalar_lea.sflag [#allocation4], 1
    %16 = vsyncpa %s15, 0
    %17 = vsyncpa [#allocation7], 0
    %18 = vsyncpa [#allocation10], 0
    %19 = vsyncpa [#allocation13], 0
    %20 = vsyncpa [#allocation16], 0
    %21 = vsyncpa [#allocation5], 0
    %s22 = scalar_lea.sflag [#allocation5], 1
    %23 = vsyncpa %s22, 0
    loop: start=0, step=1, limit=4
    $region2: #{tpu_custom_call.1} parent=1 // loop_pre_header
      _
    $region3: #{tpu_custom_call.1} parent=1 // loop_header
      %s25 = sphi 0, %s29
      %p26 = scmp.ge.s32.totalorder %s25, 4
      %s35 = sphi 0, %s37
      %s38 = sphi 0, %s35
      %s39 = sphi 0, %s38
      %s55 = sphi 0, %s39
      %s59 = sphi 0, %s59
      %s61 = sphi 0, %s59
      %s62 = sphi 0, %s61
      %s76 = sphi 0, %s62
      %s80 = sphi 0, %s80
      %s82 = sphi 0, %s80
      %s83 = sphi 0, %s82
      %s97 = sphi 0, %s83
      %s101 = sphi 0, %s101
      %s103 = sphi 0, %s101
      %s104 = sphi 0, %s103
      %s118 = sphi 0, %s104
      %s122 = sphi 0, %s122
      %s124 = sphi 0, %s122
      %s125 = sphi 0, %s124
      %s139 = sphi 0, %s125
      %s143 = sphi 0, %s143
      %s145 = sphi 0, %s143
      %s146 = sphi 0, %s145
      %s160 = sphi 0, %s146
      %s164 = sphi 0, %s164
      %s166 = sphi 0, %s164
      %s167 = sphi 0, %s166
      %s181 = sphi 0, %s167
      %s185 = sphi 0, %s185
      %s187 = sphi 0, %s185
      %s188 = sphi 0, %s187
      %s202 = sphi 0, %s188
      %s206 = sphi 0, %s206
      %s208 = sphi 0, %s206
      %s209 = sphi 0, %s208
      %s223 = sphi 0, %s209
      %s229 = sphi 0, %s231
      %s232 = sphi 0, %s229
      %s233 = sphi 0, %s232
      %s249 = sphi 0, %s233
    $region4: #{tpu_custom_call.1} parent=1 // loop_header_branch
      %28 = sbr.rel (%p26) target = $region8
    $region5: #{tpu_custom_call.1} parent=1 // loop_body
      %s30 = ssub.s32 %s25, 1
      %s31 = ssub.s32 %s25, 2
      %s32 = sadd.s32 %s25, 1
      %s33 = ssub.s32 %s25, %s32
      %p34 = scmp.eq.s32.totalorder %s33, 0
      %s36 = sadd.s32 %s35, 1
      %s37 = scalar_select %p34, %s35, %s36
      %p40 = pneg %p34
      %p41 = scmp.eq.s32.totalorder %s25, 1
      %p42 = por %p40, %p41
      %p43 = scmp.ne.s32.totalorder %s35, %s38
      %p44 = scmp.eq.s32.totalorder %s25, 0
      %p45 = por %p43, %p44
      %p46 = scmp.ne.s32.totalorder %s35, %s38
      %p47 = scmp.eq.s32.totalorder %s30, 1
      %p48 = por %p46, %p47
      %p49 = scmp.ne.s32.totalorder %s38, %s39
      %p50 = scmp.eq.s32.totalorder %s30, 0
      %p51 = por %p49, %p50
      %p52 = scmp.ne.s32.totalorder %s38, %s39
      %p53 = scmp.eq.s32.totalorder %s31, 1
      %p54 = por %p52, %p53
      %p56 = scmp.ne.s32.totalorder %s39, %s55
      %p57 = scmp.eq.s32.totalorder %s31, 0
      %p58 = por %p56, %p57
      %s60 = sadd.s32 %s59, 1
      %p63 = scmp.eq.s32.totalorder %s25, 1
      %p64 = scmp.ne.s32.totalorder %s59, %s61
      %p65 = scmp.eq.s32.totalorder %s25, 0
      %p66 = por %p64, %p65
      %p67 = scmp.ne.s32.totalorder %s59, %s61
      %p68 = scmp.eq.s32.totalorder %s30, 1
      %p69 = por %p67, %p68
      %p70 = scmp.ne.s32.totalorder %s61, %s62
      %p71 = scmp.eq.s32.totalorder %s30, 0
      %p72 = por %p70, %p71
      %p73 = scmp.ne.s32.totalorder %s61, %s62
      %p74 = scmp.eq.s32.totalorder %s31, 1
      %p75 = por %p73, %p74
      %p77 = scmp.ne.s32.totalorder %s62, %s76
      %p78 = scmp.eq.s32.totalorder %s31, 0
      %p79 = por %p77, %p78
      %s81 = sadd.s32 %s80, 1
      %p84 = scmp.eq.s32.totalorder %s25, 1
      %p85 = scmp.ne.s32.totalorder %s80, %s82
      %p86 = scmp.eq.s32.totalorder %s25, 0
      %p87 = por %p85, %p86
      %p88 = scmp.ne.s32.totalorder %s80, %s82
      %p89 = scmp.eq.s32.totalorder %s30, 1
      %p90 = por %p88, %p89
      %p91 = scmp.ne.s32.totalorder %s82, %s83
      %p92 = scmp.eq.s32.totalorder %s30, 0
      %p93 = por %p91, %p92
      %p94 = scmp.ne.s32.totalorder %s82, %s83
      %p95 = scmp.eq.s32.totalorder %s31, 1
      %p96 = por %p94, %p95
      %p98 = scmp.ne.s32.totalorder %s83, %s97
      %p99 = scmp.eq.s32.totalorder %s31, 0
      %p100 = por %p98, %p99
      %s102 = sadd.s32 %s101, 1
      %p105 = scmp.eq.s32.totalorder %s25, 1
      %p106 = scmp.ne.s32.totalorder %s101, %s103
      %p107 = scmp.eq.s32.totalorder %s25, 0
      %p108 = por %p106, %p107
      %p109 = scmp.ne.s32.totalorder %s101, %s103
      %p110 = scmp.eq.s32.totalorder %s30, 1
      %p111 = por %p109, %p110
      %p112 = scmp.ne.s32.totalorder %s103, %s104
      %p113 = scmp.eq.s32.totalorder %s30, 0
      %p114 = por %p112, %p113
      %p115 = scmp.ne.s32.totalorder %s103, %s104
      %p116 = scmp.eq.s32.totalorder %s31, 1
      %p117 = por %p115, %p116
      %p119 = scmp.ne.s32.totalorder %s104, %s118
      %p120 = scmp.eq.s32.totalorder %s31, 0
      %p121 = por %p119, %p120
      %s123 = sadd.s32 %s122, 1
      %p126 = scmp.eq.s32.totalorder %s25, 1
      %p127 = scmp.ne.s32.totalorder %s122, %s124
      %p128 = scmp.eq.s32.totalorder %s25, 0
      %p129 = por %p127, %p128
      %p130 = scmp.ne.s32.totalorder %s122, %s124
      %p131 = scmp.eq.s32.totalorder %s30, 1
      %p132 = por %p130, %p131
      %p133 = scmp.ne.s32.totalorder %s124, %s125
      %p134 = scmp.eq.s32.totalorder %s30, 0
      %p135 = por %p133, %p134
      %p136 = scmp.ne.s32.totalorder %s124, %s125
      %p137 = scmp.eq.s32.totalorder %s31, 1
      %p138 = por %p136, %p137
      %p140 = scmp.ne.s32.totalorder %s125, %s139
      %p141 = scmp.eq.s32.totalorder %s31, 0
      %p142 = por %p140, %p141
      %s144 = sadd.s32 %s143, 1
      %p147 = scmp.eq.s32.totalorder %s25, 1
      %p148 = scmp.ne.s32.totalorder %s143, %s145
      %p149 = scmp.eq.s32.totalorder %s25, 0
      %p150 = por %p148, %p149
      %p151 = scmp.ne.s32.totalorder %s143, %s145
      %p152 = scmp.eq.s32.totalorder %s30, 1
      %p153 = por %p151, %p152
      %p154 = scmp.ne.s32.totalorder %s145, %s146
      %p155 = scmp.eq.s32.totalorder %s30, 0
      %p156 = por %p154, %p155
      %p157 = scmp.ne.s32.totalorder %s145, %s146
      %p158 = scmp.eq.s32.totalorder %s31, 1
      %p159 = por %p157, %p158
      %p161 = scmp.ne.s32.totalorder %s146, %s160
      %p162 = scmp.eq.s32.totalorder %s31, 0
      %p163 = por %p161, %p162
      %s165 = sadd.s32 %s164, 1
      %p168 = scmp.eq.s32.totalorder %s25, 1
      %p169 = scmp.ne.s32.totalorder %s164, %s166
      %p170 = scmp.eq.s32.totalorder %s25, 0
      %p171 = por %p169, %p170
      %p172 = scmp.ne.s32.totalorder %s164, %s166
      %p173 = scmp.eq.s32.totalorder %s30, 1
      %p174 = por %p172, %p173
      %p175 = scmp.ne.s32.totalorder %s166, %s167
      %p176 = scmp.eq.s32.totalorder %s30, 0
      %p177 = por %p175, %p176
      %p178 = scmp.ne.s32.totalorder %s166, %s167
      %p179 = scmp.eq.s32.totalorder %s31, 1
      %p180 = por %p178, %p179
      %p182 = scmp.ne.s32.totalorder %s167, %s181
      %p183 = scmp.eq.s32.totalorder %s31, 0
      %p184 = por %p182, %p183
      %s186 = sadd.s32 %s185, 1
      %p189 = scmp.eq.s32.totalorder %s25, 1
      %p190 = scmp.ne.s32.totalorder %s185, %s187
      %p191 = scmp.eq.s32.totalorder %s25, 0
      %p192 = por %p190, %p191
      %p193 = scmp.ne.s32.totalorder %s185, %s187
      %p194 = scmp.eq.s32.totalorder %s30, 1
      %p195 = por %p193, %p194
      %p196 = scmp.ne.s32.totalorder %s187, %s188
      %p197 = scmp.eq.s32.totalorder %s30, 0
      %p198 = por %p196, %p197
      %p199 = scmp.ne.s32.totalorder %s187, %s188
      %p200 = scmp.eq.s32.totalorder %s31, 1
      %p201 = por %p199, %p200
      %p203 = scmp.ne.s32.totalorder %s188, %s202
      %p204 = scmp.eq.s32.totalorder %s31, 0
      %p205 = por %p203, %p204
      %s207 = sadd.s32 %s206, 1
      %p210 = scmp.eq.s32.totalorder %s25, 1
      %p211 = scmp.ne.s32.totalorder %s206, %s208
      %p212 = scmp.eq.s32.totalorder %s25, 0
      %p213 = por %p211, %p212
      %p214 = scmp.ne.s32.totalorder %s206, %s208
      %p215 = scmp.eq.s32.totalorder %s30, 1
      %p216 = por %p214, %p215
      %p217 = scmp.ne.s32.totalorder %s208, %s209
      %p218 = scmp.eq.s32.totalorder %s30, 0
      %p219 = por %p217, %p218
      %p220 = scmp.ne.s32.totalorder %s208, %s209
      %p221 = scmp.eq.s32.totalorder %s31, 1
      %p222 = por %p220, %p221
      %p224 = scmp.ne.s32.totalorder %s209, %s223
      %p225 = scmp.eq.s32.totalorder %s31, 0
      %p226 = por %p224, %p225
      %s227 = ssub.s32 %s25, %s32
      %p228 = scmp.eq.s32.totalorder %s227, 0
      %s230 = sadd.s32 %s229, 1
      %s231 = scalar_select %p228, %s229, %s230
      %p234 = pneg %p228
      %p235 = scmp.eq.s32.totalorder %s25, 1
      %p236 = por %p234, %p235
      %p237 = scmp.ne.s32.totalorder %s229, %s232
      %p238 = scmp.eq.s32.totalorder %s25, 0
      %p239 = por %p237, %p238
      %p240 = scmp.ne.s32.totalorder %s229, %s232
      %p241 = scmp.eq.s32.totalorder %s30, 1
      %p242 = por %p240, %p241
      %p243 = scmp.ne.s32.totalorder %s232, %s233
      %p244 = scmp.eq.s32.totalorder %s30, 0
      %p245 = por %p243, %p244
      %p246 = scmp.ne.s32.totalorder %s232, %s233
      %p247 = scmp.eq.s32.totalorder %s31, 1
      %p248 = por %p246, %p247
      %p250 = scmp.ne.s32.totalorder %s233, %s249
      %p251 = scmp.eq.s32.totalorder %s31, 0
      %p252 = por %p250, %p251
      %p253 = scmp.le.s32.totalorder 1, %s25
      %p254 = scmp.lt.s32.totalorder %s25, 3
      %p255 = pnand %p253, %p254
      %p256 = pneg %p255
      // Predicated region
      $region9: #{tpu_custom_call.1} parent=5 // pred_check
        _
      $region10: #{tpu_custom_call.1} parent=5 // pred_check_branch
        %258 = sbr.rel (%p255) target = $region12
      $region11: #{tpu_custom_call.1} parent=5 // pred_region
        %s259 = ssub.s32 %s25, 1
        // Predicated region
        $region13: #{tpu_custom_call.1} parent=11 // pred_check
          %p260 = pneg %p72
        $region14: #{tpu_custom_call.1} parent=11 // pred_check_branch
          %262 = sbr.rel (%p260) target = $region16
        $region15: #{tpu_custom_call.1} parent=11 // pred_region
          %s264 = ssub.s32 64, 64
          %265 = vsyncadd [#allocation7], %s264
          %s267 = sshll.u32 [#allocation6], 4
          %s268 = int_to_ptr.vmem [resolvable:$true] %s267
          %270 = dma.hbm_to_vmem [thread:$0]  %s1, 64, %s268, [#allocation7]
        $region16: #{tpu_custom_call.1} parent=11 // pred_fallthru
          _
        // Predicated region
        $region17: #{tpu_custom_call.1} parent=11 // pred_check
          %p271 = pneg %p93
        $region18: #{tpu_custom_call.1} parent=11 // pred_check_branch
          %273 = sbr.rel (%p271) target = $region20
        $region19: #{tpu_custom_call.1} parent=11 // pred_region
          %s275 = ssub.s32 128, 128
          %276 = vsyncadd [#allocation7], %s275
          %s278 = sshll.u32 [#allocation8], 4
          %s279 = int_to_ptr.vmem [resolvable:$true] %s278
          %281 = dma.hbm_to_vmem [thread:$0]  %s2, 128, %s279, [#allocation7]
        $region20: #{tpu_custom_call.1} parent=11 // pred_fallthru
          _
        // Predicated region
        $region21: #{tpu_custom_call.1} parent=11 // pred_check
          %p282 = pneg %p114
        $region22: #{tpu_custom_call.1} parent=11 // pred_check_branch
          %284 = sbr.rel (%p282) target = $region24
        $region23: #{tpu_custom_call.1} parent=11 // pred_region
          %s286 = ssub.s32 128, 128
          %287 = vsyncadd [#allocation10], %s286
          %s289 = sshll.u32 [#allocation9], 4
          %s290 = int_to_ptr.vmem [resolvable:$true] %s289
          %292 = dma.hbm_to_vmem [thread:$0]  %s3, 128, %s290, [#allocation10]
        $region24: #{tpu_custom_call.1} parent=11 // pred_fallthru
          _
        // Predicated region
        $region25: #{tpu_custom_call.1} parent=11 // pred_check
          %p293 = pneg %p135
        $region26: #{tpu_custom_call.1} parent=11 // pred_check_branch
          %295 = sbr.rel (%p293) target = $region28
        $region27: #{tpu_custom_call.1} parent=11 // pred_region
          %s297 = ssub.s32 256, 256
          %298 = vsyncadd [#allocation10], %s297
          %s299 = sshll.u32 [#allocation11], 4
          %s300 = int_to_ptr.vmem [resolvable:$true] %s299
          %305 = dma.hbm_to_vmem [thread:$0]  %s4, 256, %s300, [#allocation10], 64, 64, 4
        $region28: #{tpu_custom_call.1} parent=11 // pred_fallthru
          _
        // Predicated region
        $region29: #{tpu_custom_call.1} parent=11 // pred_check
          %p306 = pneg %p156
        $region30: #{tpu_custom_call.1} parent=11 // pred_check_branch
          %308 = sbr.rel (%p306) target = $region32
        $region31: #{tpu_custom_call.1} parent=11 // pred_region
          %s310 = ssub.s32 16, 16
          %311 = vsyncadd [#allocation13], %s310
          %s313 = sshll.u32 [#allocation12], 4
          %s314 = int_to_ptr.vmem [resolvable:$true] %s313
          %316 = dma.hbm_to_vmem [thread:$0]  %s5, 16, %s314, [#allocation13]
        $region32: #{tpu_custom_call.1} parent=11 // pred_fallthru
          _
        // Predicated region
        $region33: #{tpu_custom_call.1} parent=11 // pred_check
          %p317 = pneg %p177
        $region34: #{tpu_custom_call.1} parent=11 // pred_check_branch
          %319 = sbr.rel (%p317) target = $region36
        $region35: #{tpu_custom_call.1} parent=11 // pred_region
          %s321 = ssub.s32 256, 256
          %322 = vsyncadd [#allocation13], %s321
          %s323 = sshll.u32 [#allocation14], 4
          %s324 = int_to_ptr.vmem [resolvable:$true] %s323
          %329 = dma.hbm_to_vmem [thread:$0]  %s6, 256, %s324, [#allocation13], 64, 64, 4
        $region36: #{tpu_custom_call.1} parent=11 // pred_fallthru
          _
        // Predicated region
        $region37: #{tpu_custom_call.1} parent=11 // pred_check
          %p330 = pneg %p198
        $region38: #{tpu_custom_call.1} parent=11 // pred_check_branch
          %332 = sbr.rel (%p330) target = $region40
        $region39: #{tpu_custom_call.1} parent=11 // pred_region
          %s334 = ssub.s32 16, 16
          %335 = vsyncadd [#allocation16], %s334
          %s337 = sshll.u32 [#allocation15], 4
          %s338 = int_to_ptr.vmem [resolvable:$true] %s337
          %340 = dma.hbm_to_vmem [thread:$0]  %s7, 16, %s338, [#allocation16]
        $region40: #{tpu_custom_call.1} parent=11 // pred_fallthru
          _
        // Predicated region
        $region41: #{tpu_custom_call.1} parent=11 // pred_check
          %p341 = pneg %p219
        $region42: #{tpu_custom_call.1} parent=11 // pred_check_branch
          %343 = sbr.rel (%p341) target = $region44
        $region43: #{tpu_custom_call.1} parent=11 // pred_region
          %s345 = ssub.s32 128, 128
          %346 = vsyncadd [#allocation16], %s345
          %s348 = sshll.u32 [#allocation17], 4
          %s349 = int_to_ptr.vmem [resolvable:$true] %s348
          %351 = dma.hbm_to_vmem [thread:$0]  %s8, 128, %s349, [#allocation16]
        $region44: #{tpu_custom_call.1} parent=11 // pred_fallthru
          _
      $region12: #{tpu_custom_call.1} parent=5 // pred_fallthru
        _
      %p352 = scmp.lt.s32.totalorder %s25, 2
      // Predicated region
      $region45: #{tpu_custom_call.1} parent=5 // pred_check
        %p353 = pneg %p352
      $region46: #{tpu_custom_call.1} parent=5 // pred_check_branch
        %355 = sbr.rel (%p353) target = $region48
      $region47: #{tpu_custom_call.1} parent=5 // pred_region
        // Predicated region
        $region49: #{tpu_custom_call.1} parent=47 // pred_check
          %p356 = pneg %p45
        $region50: #{tpu_custom_call.1} parent=47 // pred_check_branch
          %358 = sbr.rel (%p356) target = $region52
        $region51: #{tpu_custom_call.1} parent=47 // pred_region
          %s359 = sand.u32 %s35, 1
          %s360 = scalar_lea.sflag [#allocation4], %s359
          %s361 = sand.u32 %s35, 1
          %s362 = smul.addr %s361, 4
          %s363 = scalar_lea.vmem [#allocation3], %s362
          %s365 = ssub.s32 64, 64
          %366 = vsyncadd %s360, %s365
          %s367 = smul.addr %s25, 64
          %s368 = scalar_lea.hbm %s0, %s367
          %s370 = sshll.u32 %s363, 4
          %s371 = int_to_ptr.vmem [resolvable:$true] %s370
          %373 = dma.hbm_to_vmem [thread:$0]  %s368, 64, %s371, %s360
        $region52: #{tpu_custom_call.1} parent=47 // pred_fallthru
          _
      $region48: #{tpu_custom_call.1} parent=5 // pred_fallthru
        _
      %p374 = scmp.le.s32.totalorder 1, %s25
      %p375 = scmp.lt.s32.totalorder %s25, 3
      %p376 = pnand %p374, %p375
      %p377 = pneg %p376
      // Predicated region
      $region53: #{tpu_custom_call.1} parent=5 // pred_check
        _
      $region54: #{tpu_custom_call.1} parent=5 // pred_check_branch
        %379 = sbr.rel (%p376) target = $region56
      $region55: #{tpu_custom_call.1} parent=5 // pred_region
        %s380 = ssub.s32 %s25, 1
        %s381 = sand.u32 %s38, 1
        %s382 = scalar_lea.sflag [#allocation4], %s381
        %s383 = sand.u32 %s38, 1
        %s384 = smul.addr %s383, 4
        %s385 = scalar_lea.vmem [#allocation3], %s384
        // Predicated region
        $region57: #{tpu_custom_call.1} parent=55 // pred_check
          %p386 = pneg %p51
        $region58: #{tpu_custom_call.1} parent=55 // pred_check_branch
          %388 = sbr.rel (%p386) target = $region60
        $region59: #{tpu_custom_call.1} parent=55 // pred_region
          %389 = dma.done %s382, 64
        $region60: #{tpu_custom_call.1} parent=55 // pred_fallthru
          _
        // Predicated region
        $region61: #{tpu_custom_call.1} parent=55 // pred_check
          %p390 = pneg %p72
        $region62: #{tpu_custom_call.1} parent=55 // pred_check_branch
          %392 = sbr.rel (%p390) target = $region64
        $region63: #{tpu_custom_call.1} parent=55 // pred_region
          %393 = dma.done [#allocation7], 64
        $region64: #{tpu_custom_call.1} parent=55 // pred_fallthru
          _
        // Predicated region
        $region65: #{tpu_custom_call.1} parent=55 // pred_check
          %p394 = pneg %p93
        $region66: #{tpu_custom_call.1} parent=55 // pred_check_branch
          %396 = sbr.rel (%p394) target = $region68
        $region67: #{tpu_custom_call.1} parent=55 // pred_region
          %397 = dma.done [#allocation7], 128
        $region68: #{tpu_custom_call.1} parent=55 // pred_fallthru
          _
        // Predicated region
        $region69: #{tpu_custom_call.1} parent=55 // pred_check
          %p398 = pneg %p114
        $region70: #{tpu_custom_call.1} parent=55 // pred_check_branch
          %400 = sbr.rel (%p398) target = $region72
        $region71: #{tpu_custom_call.1} parent=55 // pred_region
          %401 = dma.done [#allocation10], 128
        $region72: #{tpu_custom_call.1} parent=55 // pred_fallthru
          _
        // Predicated region
        $region73: #{tpu_custom_call.1} parent=55 // pred_check
          %p402 = pneg %p135
        $region74: #{tpu_custom_call.1} parent=55 // pred_check_branch
          %404 = sbr.rel (%p402) target = $region76
        $region75: #{tpu_custom_call.1} parent=55 // pred_region
          %405 = dma.done [#allocation10], 256
        $region76: #{tpu_custom_call.1} parent=55 // pred_fallthru
          _
        // Predicated region
        $region77: #{tpu_custom_call.1} parent=55 // pred_check
          %p406 = pneg %p156
        $region78: #{tpu_custom_call.1} parent=55 // pred_check_branch
          %408 = sbr.rel (%p406) target = $region80
        $region79: #{tpu_custom_call.1} parent=55 // pred_region
          %409 = dma.done [#allocation13], 16
        $region80: #{tpu_custom_call.1} parent=55 // pred_fallthru
          _
        // Predicated region
        $region81: #{tpu_custom_call.1} parent=55 // pred_check
          %p410 = pneg %p177
        $region82: #{tpu_custom_call.1} parent=55 // pred_check_branch
          %412 = sbr.rel (%p410) target = $region84
        $region83: #{tpu_custom_call.1} parent=55 // pred_region
          %413 = dma.done [#allocation13], 256
        $region84: #{tpu_custom_call.1} parent=55 // pred_fallthru
          _
        // Predicated region
        $region85: #{tpu_custom_call.1} parent=55 // pred_check
          %p414 = pneg %p198
        $region86: #{tpu_custom_call.1} parent=55 // pred_check_branch
          %416 = sbr.rel (%p414) target = $region88
        $region87: #{tpu_custom_call.1} parent=55 // pred_region
          %417 = dma.done [#allocation16], 16
        $region88: #{tpu_custom_call.1} parent=55 // pred_fallthru
          _
        // Predicated region
        $region89: #{tpu_custom_call.1} parent=55 // pred_check
          %p418 = pneg %p219
        $region90: #{tpu_custom_call.1} parent=55 // pred_check_branch
          %420 = sbr.rel (%p418) target = $region92
        $region91: #{tpu_custom_call.1} parent=55 // pred_region
          %421 = dma.done [#allocation16], 128
        $region92: #{tpu_custom_call.1} parent=55 // pred_fallthru
          _
        %s422 = sand.u32 %s38, 1
        %s423 = scalar_lea.sflag [#allocation4], %s422
        %s424 = sand.u32 %s38, 1
        %s425 = smul.addr %s424, 4
        %s426 = scalar_lea.vmem [#allocation3], %s425
        %p427 = pneg %p51
        %p428 = pneg %p48
        %p429 = pneg %p72
        %p430 = pneg %p69
        %p431 = pneg %p93
        %p432 = pneg %p90
        %p433 = pneg %p114
        %p434 = pneg %p111
        %p435 = pneg %p135
        %p436 = pneg %p132
        %p437 = pneg %p156
        %p438 = pneg %p153
        %p439 = pneg %p177
        %p440 = pneg %p174
        %p441 = pneg %p198
        %p442 = pneg %p195
        %p443 = pneg %p219
        %p444 = pneg %p216
        %p445 = pneg %p245
        %p446 = pneg %p242
        %s447 = sand.u32 %s232, 1
        %s448 = scalar_lea.sflag [#allocation5], %s447
        %s449 = sand.u32 %s232, 1
        %s450 = smul.addr %s449, 8
        %s451 = scalar_lea.vmem [#allocation18], %s450
        %v453 = vld [vmem:[%s385] sm:$0xf]
        %v455 = vunpack.c.l.b16 %v453
        %v456 = vpack.c.b16 %v455, %v455
        %v458 = vshrl.u32 %v456, 16
        %v460 = vrot.slane %v458, 7
        %v461 = vshll.u32 %v456, 16
        %v463 = vor.u32 %v460, %v461
        %vm465 = vcmask 1040384
        %vm466 = vsmask.f32 256
        %vm467 = vmand %vm465, %vm466
        %v468 = vsel %vm467, 0, %v463
        %v469 = vlaneseq
        %v470 = vand.u32 %v469, 127
        %vm471 = vcmp.lt.s32.totalorder %v470, 16
        %vm472 = vmpackc.low %vm471, %vm471
        %v473 = vsel %vm472, %v468, %v453
        %v474 = vld [vmem:[#allocation11] sm:$0xf]
        %v475 = vld [vmem:[#allocation11 + $0x4] sm:$0xf]
        %v476 = vld [vmem:[#allocation11 + $0x8] sm:$0xf]
        %v477 = vld [vmem:[#allocation11 + $0xc] sm:$0xf]
        %v478 = vld [vmem:[#allocation12] sm:$0x1]
        %v480 = vlaneseq
        %v481 = vshrl.u32 %v480, 7
        %v482 = vsub.s32 0, %v481
        %v483 = vrot.slane %v478, %v482
        %v489 = vunpack.c.l.b16 %v474
        %v490 = vunpack.c.l.b16 %v475
        %v491 = vunpack.c.l.b16 %v476
        %v492 = vunpack.c.l.b16 %v477
        %v493 = vpack.c.b16 %v490, %v489
        %v494 = vpack.c.b16 %v492, %v491
        %vm497 = vcmask 261120
        %v499 = vsel %vm497, %v473, 0
        %501 = vmatprep.subr.bf16.mxu0 0
        %502 = vmatpush1.bf16.msra.mxu0 %v493
        %503 = vmatprep.subr.bf16.mxu0 0
        %504 = vmatpush1.bf16.msra.mxu0 %v494
        %505 = vmatprep.subr.bf16.mxu0 0
        %506 = vmatpush1.bf16.msra.mxu0 0
        %507 = vmatprep.subr.bf16.mxu0 0
        %508 = vmatpush1.bf16.msra.mxu0 0
        %509 = vmatprep.subr.bf16.mxu0 0
        %510 = vmatpush1.bf16.msra.mxu0 0
        %511 = vmatprep.subr.bf16.mxu0 0
        %512 = vmatpush1.bf16.msra.mxu0 0
        %513 = vmatprep.subr.bf16.mxu0 0
        %514 = vmatpush1.bf16.msra.mxu0 0
        %515 = vmatprep.subr.bf16.mxu0 0
        %516 = vmatpush1.bf16.msra.mxu0 0
        %517 = vmatprep.subr.bf16.mxu0 0
        %518 = vmatpush1.bf16.msra.mxu0 0
        %519 = vmatprep.subr.bf16.mxu0 0
        %520 = vmatpush1.bf16.msra.mxu0 0
        %521 = vmatprep.subr.bf16.mxu0 0
        %522 = vmatpush1.bf16.msra.mxu0 0
        %523 = vmatprep.subr.bf16.mxu0 0
        %524 = vmatpush1.bf16.msra.mxu0 0
        %525 = vmatprep.subr.bf16.mxu0 0
        %526 = vmatpush1.bf16.msra.mxu0 0
        %527 = vmatprep.subr.bf16.mxu0 0
        %528 = vmatpush1.bf16.msra.mxu0 0
        %529 = vmatprep.subr.bf16.mxu0 0
        %530 = vmatpush1.bf16.msra.mxu0 0
        %531 = vmatprep.subr.bf16.mxu0 0
        %532 = vmatpush1.bf16.msra.mxu0 0
        %533 = vmatprep.mubr.bf16.mxu0 0
        %534 = vmatmul.mubr.bf16.gmra.mrb[0].mxu0 %v499
        %v535 = vpop.f32.mrb[0].mxu0
        %v536 = vadd.f32 %v483, %v535
        %v537 = vpop.f32.mrb[0].mxu0
        %v538 = vpop.f32.mrb[0].mxu0
        %v539 = vpop.f32.mrb[0].mxu0
        %540 = vdwg.mxu0
        %v541 = vmax.f32 %v536, -60.0
        %v542 = vmin.f32 %v541, 30.0
        %v543 = vmul.f32 %v542, 1.442695
        %v544 = vpow.pop %v543
        %v546 = vrot.slane %v544, 7
        %vm548 = vcmask 1040384
        %v549 = vsel %vm548, 0.0, %v546
        %v550 = vadd.f32 %v544, %v549
        %v552 = vrot.slane %v550, 6
        %vm554 = vcmask 1041408
        %v555 = vsel %vm554, 0.0, %v552
        %v556 = vadd.f32 %v550, %v555
        %v558 = vrot.slane %v556, 4
        %vm560 = vcmask 1043456
        %v561 = vsel %vm560, 0.0, %v558
        %v562 = vadd.f32 %v556, %v561
        %564 = vrot.lane.b32.xlu0 %v536, 96
        %v565 = vpop.permute.xlu0 %564
        %v567 = vmul.f32 %v544, %v565
        %v568 = vld [vmem:[#allocation6] sm:$0xf]
        %v569 = vld [vmem:[#allocation8] sm:$0xff]
        %v570 = vld [vmem:[#allocation9] sm:$0xff]
        %v571 = vlaneseq
        %v572 = vshrl.u32 %v571, 7
        %v573 = vand.u32 %v572, 1
        %vm574 = vcmp.ne.s32.totalorder %v573, 0
        %v575 = vand.u32 %v572, 2
        %vm576 = vcmp.ne.s32.totalorder %v575, 0
        %v577 = vand.u32 %v572, 4
        %vm578 = vcmp.ne.s32.totalorder %v577, 0
        %v579 = vlaneseq
        %v580 = vshrl.u32 %v579, 7
        %v581 = vsub.s32 0, %v580
        %v582 = vrot.slane %v568, %v581
        %584 = vrot.lane.b32.xlu0 %v582, 1
        %v585 = vpop.permute.xlu0 %584
        %vm587 = vcmask 7168
        %v588 = vsel %vm587, 0.0, %v585
        %v589 = vsel %vm574, 1, 0
        %vm590 = vcmp.eq.s32.totalorder %v589, 1
        %v591 = vsel %vm590, %v588, %v582
        %593 = vrot.lane.b32.xlu0 %v591, 2
        %v594 = vpop.permute.xlu0 %593
        %vm596 = vcmask 15360
        %v597 = vsel %vm596, 0.0, %v594
        %v598 = vsel %vm576, 1, 0
        %vm599 = vcmp.eq.s32.totalorder %v598, 1
        %v600 = vsel %vm599, %v597, %v591
        %602 = vrot.lane.b32.xlu0 %v600, 4
        %v603 = vpop.permute.xlu0 %602
        %vm605 = vcmask 31744
        %v606 = vsel %vm605, 0.0, %v603
        %v607 = vsel %vm578, 1, 0
        %vm608 = vcmp.eq.s32.totalorder %v607, 1
        %v609 = vsel %vm608, %v606, %v600
        %611 = vset.pattern.permute.xlu0 0
        %612 = vperm.xlu0 %611, %v569
        %v613 = vpop.permute.xlu0 %612
        %v615 = vmul.f32 %v567, %v613
        %617 = vrot.lane.b32.xlu0 %v609, 120
        %v618 = vpop.permute.xlu0 %617
        %vm619 = vcmask 64512
        %v620 = vsel %vm619, %v618, 0
        %622 = vmatprep.subr.mxu0 0.0
        %623 = vmatpush1.msra.mxu0 %v615
        %624 = vmatprep.subr.mxu0 0.0
        %625 = vmatpush1.msra.mxu0 0.0
        %626 = vmatprep.subr.mxu0 0.0
        %627 = vmatpush1.msra.mxu0 0.0
        %628 = vmatprep.subr.mxu0 0.0
        %629 = vmatpush1.msra.mxu0 0.0
        %630 = vmatprep.subr.mxu0 0.0
        %631 = vmatpush1.msra.mxu0 0.0
        %632 = vmatprep.subr.mxu0 0.0
        %633 = vmatpush1.msra.mxu0 0.0
        %634 = vmatprep.subr.mxu0 0.0
        %635 = vmatpush1.msra.mxu0 0.0
        %636 = vmatprep.subr.mxu0 0.0
        %637 = vmatpush1.msra.mxu0 0.0
        %638 = vmatprep.subr.mxu0 0.0
        %639 = vmatpush1.msra.mxu0 0.0
        %640 = vmatprep.subr.mxu0 0.0
        %641 = vmatpush1.msra.mxu0 0.0
        %642 = vmatprep.subr.mxu0 0.0
        %643 = vmatpush1.msra.mxu0 0.0
        %644 = vmatprep.subr.mxu0 0.0
        %645 = vmatpush1.msra.mxu0 0.0
        %646 = vmatprep.subr.mxu0 0.0
        %647 = vmatpush1.msra.mxu0 0.0
        %648 = vmatprep.subr.mxu0 0.0
        %649 = vmatpush1.msra.mxu0 0.0
        %650 = vmatprep.subr.mxu0 0.0
        %651 = vmatpush1.msra.mxu0 0.0
        %652 = vmatprep.subr.mxu0 0.0
        %653 = vmatpush1.msra.mxu0 0.0
        %654 = vmatprep.subr.mxu0 0.0
        %655 = vmatpush1.msra.mxu0 0.0
        %656 = vmatprep.subr.mxu0 0.0
        %657 = vmatpush1.msra.mxu0 0.0
        %658 = vmatprep.subr.mxu0 0.0
        %659 = vmatpush1.msra.mxu0 0.0
        %660 = vmatprep.subr.mxu0 0.0
        %661 = vmatpush1.msra.mxu0 0.0
        %662 = vmatprep.subr.mxu0 0.0
        %663 = vmatpush1.msra.mxu0 0.0
        %664 = vmatprep.subr.mxu0 0.0
        %665 = vmatpush1.msra.mxu0 0.0
        %666 = vmatprep.subr.mxu0 0.0
        %667 = vmatpush1.msra.mxu0 0.0
        %668 = vmatprep.subr.mxu0 0.0
        %669 = vmatpush1.msra.mxu0 0.0
        %670 = vmatprep.subr.mxu0 0.0
        %671 = vmatpush1.msra.mxu0 0.0
        %672 = vmatprep.subr.mxu0 0.0
        %673 = vmatpush1.msra.mxu0 0.0
        %674 = vmatprep.subr.mxu0 0.0
        %675 = vmatpush1.msra.mxu0 0.0
        %676 = vmatprep.subr.mxu0 0.0
        %677 = vmatpush1.msra.mxu0 0.0
        %678 = vmatprep.subr.mxu0 0.0
        %679 = vmatpush1.msra.mxu0 0.0
        %680 = vmatprep.subr.mxu0 0.0
        %681 = vmatpush1.msra.mxu0 0.0
        %682 = vmatprep.subr.mxu0 0.0
        %683 = vmatpush1.msra.mxu0 0.0
        %684 = vmatprep.subr.mxu0 0.0
        %685 = vmatpush1.msra.mxu0 0.0
        %686 = vmatprep.mubr.f32.mxu0 0.0
        %687 = vmatmul.mubr.f32.gmra.mrb[0].mxu0 %v620
        %v688 = vpop.f32.mrb[0].mxu0
        %v689 = vadd.f32 0.0, %v688
        %v690 = vpop.f32.mrb[0].mxu0
        %691 = vdwg.mxu0
        %693 = vset.pattern.permute.xlu0 0
        %694 = vperm.xlu0 %693, %v570
        %v695 = vpop.permute.xlu0 %694
        %v697 = vmul.f32 %v689, %v695
        %698 = vst.msk [vmem:[#allocation2] sm:$0xff] %vm619, %v697
        %v699 = vlaneseq
        %v700 = vshrl.u32 %v699, 7
        %v701 = vsub.s32 1, %v700
        %v702 = vrot.slane %v568, %v701
        %704 = vrot.lane.b32.xlu0 %v702, 1
        %v705 = vpop.permute.xlu0 %704
        %v707 = vsel %vm587, 0.0, %v705
        %v708 = vsel %vm590, %v707, %v702
        %710 = vrot.lane.b32.xlu0 %v708, 2
        %v711 = vpop.permute.xlu0 %710
        %v713 = vsel %vm596, 0.0, %v711
        %v714 = vsel %vm599, %v713, %v708
        %716 = vrot.lane.b32.xlu0 %v714, 4
        %v717 = vpop.permute.xlu0 %716
        %v719 = vsel %vm605, 0.0, %v717
        %v720 = vsel %vm608, %v719, %v714
        %721 = vset.pattern.permute.xlu0 1
        %722 = vperm.xlu0 %721, %v569
        %v723 = vpop.permute.xlu0 %722
        %v725 = vmul.f32 %v567, %v723
        %727 = vrot.lane.b32.xlu0 %v720, 120
        %v728 = vpop.permute.xlu0 %727
        %730 = vrot.lane.b32.xlu0 %v725, 120
        %v731 = vpop.permute.xlu0 %730
        %v733 = vsel %vm619, %v728, 0
        %735 = vmatprep.subr.mxu0 0.0
        %736 = vmatpush1.msra.mxu0 %v731
        %737 = vmatprep.subr.mxu0 0.0
        %738 = vmatpush1.msra.mxu0 0.0
        %739 = vmatprep.subr.mxu0 0.0
        %740 = vmatpush1.msra.mxu0 0.0
        %741 = vmatprep.subr.mxu0 0.0
        %742 = vmatpush1.msra.mxu0 0.0
        %743 = vmatprep.subr.mxu0 0.0
        %744 = vmatpush1.msra.mxu0 0.0
        %745 = vmatprep.subr.mxu0 0.0
        %746 = vmatpush1.msra.mxu0 0.0
        %747 = vmatprep.subr.mxu0 0.0
        %748 = vmatpush1.msra.mxu0 0.0
        %749 = vmatprep.subr.mxu0 0.0
        %750 = vmatpush1.msra.mxu0 0.0
        %751 = vmatprep.subr.mxu0 0.0
        %752 = vmatpush1.msra.mxu0 0.0
        %753 = vmatprep.subr.mxu0 0.0
        %754 = vmatpush1.msra.mxu0 0.0
        %755 = vmatprep.subr.mxu0 0.0
        %756 = vmatpush1.msra.mxu0 0.0
        %757 = vmatprep.subr.mxu0 0.0
        %758 = vmatpush1.msra.mxu0 0.0
        %759 = vmatprep.subr.mxu0 0.0
        %760 = vmatpush1.msra.mxu0 0.0
        %761 = vmatprep.subr.mxu0 0.0
        %762 = vmatpush1.msra.mxu0 0.0
        %763 = vmatprep.subr.mxu0 0.0
        %764 = vmatpush1.msra.mxu0 0.0
        %765 = vmatprep.subr.mxu0 0.0
        %766 = vmatpush1.msra.mxu0 0.0
        %767 = vmatprep.subr.mxu0 0.0
        %768 = vmatpush1.msra.mxu0 0.0
        %769 = vmatprep.subr.mxu0 0.0
        %770 = vmatpush1.msra.mxu0 0.0
        %771 = vmatprep.subr.mxu0 0.0
        %772 = vmatpush1.msra.mxu0 0.0
        %773 = vmatprep.subr.mxu0 0.0
        %774 = vmatpush1.msra.mxu0 0.0
        %775 = vmatprep.subr.mxu0 0.0
        %776 = vmatpush1.msra.mxu0 0.0
        %777 = vmatprep.subr.mxu0 0.0
        %778 = vmatpush1.msra.mxu0 0.0
        %779 = vmatprep.subr.mxu0 0.0
        %780 = vmatpush1.msra.mxu0 0.0
        %781 = vmatprep.subr.mxu0 0.0
        %782 = vmatpush1.msra.mxu0 0.0
        %783 = vmatprep.subr.mxu0 0.0
        %784 = vmatpush1.msra.mxu0 0.0
        %785 = vmatprep.subr.mxu0 0.0
        %786 = vmatpush1.msra.mxu0 0.0
        %787 = vmatprep.subr.mxu0 0.0
        %788 = vmatpush1.msra.mxu0 0.0
        %789 = vmatprep.subr.mxu0 0.0
        %790 = vmatpush1.msra.mxu0 0.0
        %791 = vmatprep.subr.mxu0 0.0
        %792 = vmatpush1.msra.mxu0 0.0
        %793 = vmatprep.subr.mxu0 0.0
        %794 = vmatpush1.msra.mxu0 0.0
        %795 = vmatprep.subr.mxu0 0.0
        %796 = vmatpush1.msra.mxu0 0.0
        %797 = vmatprep.subr.mxu0 0.0
        %798 = vmatpush1.msra.mxu0 0.0
        %799 = vmatprep.mubr.f32.mxu0 0.0
        %800 = vmatmul.mubr.f32.gmra.mrb[0].mxu0 %v733
        %v801 = vpop.f32.mrb[0].mxu0
        %v802 = vadd.f32 0.0, %v801
        %v803 = vpop.f32.mrb[0].mxu0
        %804 = vdwg.mxu0
        %805 = vset.pattern.permute.xlu0 1
        %806 = vperm.xlu0 %805, %v570
        %v807 = vpop.permute.xlu0 %806
        %v809 = vmul.f32 %v802, %v807
        %811 = vrot.lane.b32.xlu0 %v809, 8
        %v812 = vpop.permute.xlu0 %811
        %vm814 = vcmask 130112
        %815 = vst.msk [vmem:[#allocation2] sm:$0xff] %vm814, %v812
        %v816 = vlaneseq
        %v817 = vshrl.u32 %v816, 7
        %v818 = vsub.s32 2, %v817
        %v819 = vrot.slane %v568, %v818
        %821 = vrot.lane.b32.xlu0 %v819, 1
        %v822 = vpop.permute.xlu0 %821
        %v824 = vsel %vm587, 0.0, %v822
        %v825 = vsel %vm590, %v824, %v819
        %827 = vrot.lane.b32.xlu0 %v825, 2
        %v828 = vpop.permute.xlu0 %827
        %v830 = vsel %vm596, 0.0, %v828
        %v831 = vsel %vm599, %v830, %v825
        %833 = vrot.lane.b32.xlu0 %v831, 4
        %v834 = vpop.permute.xlu0 %833
        %v836 = vsel %vm605, 0.0, %v834
        %v837 = vsel %vm608, %v836, %v831
        %838 = vset.pattern.permute.xlu0 2
        %839 = vperm.xlu0 %838, %v569
        %v840 = vpop.permute.xlu0 %839
        %v842 = vmul.f32 %v567, %v840
        %844 = vrot.lane.b32.xlu0 %v837, 120
        %v845 = vpop.permute.xlu0 %844
        %847 = vrot.lane.b32.xlu0 %v842, 112
        %v848 = vpop.permute.xlu0 %847
        %v850 = vsel %vm619, %v845, 0
        %852 = vmatprep.subr.mxu0 0.0
        %853 = vmatpush1.msra.mxu0 %v848
        %854 = vmatprep.subr.mxu0 0.0
        %855 = vmatpush1.msra.mxu0 0.0
        %856 = vmatprep.subr.mxu0 0.0
        %857 = vmatpush1.msra.mxu0 0.0
        %858 = vmatprep.subr.mxu0 0.0
        %859 = vmatpush1.msra.mxu0 0.0
        %860 = vmatprep.subr.mxu0 0.0
        %861 = vmatpush1.msra.mxu0 0.0
        %862 = vmatprep.subr.mxu0 0.0
        %863 = vmatpush1.msra.mxu0 0.0
        %864 = vmatprep.subr.mxu0 0.0
        %865 = vmatpush1.msra.mxu0 0.0
        %866 = vmatprep.subr.mxu0 0.0
        %867 = vmatpush1.msra.mxu0 0.0
        %868 = vmatprep.subr.mxu0 0.0
        %869 = vmatpush1.msra.mxu0 0.0
        %870 = vmatprep.subr.mxu0 0.0
        %871 = vmatpush1.msra.mxu0 0.0
        %872 = vmatprep.subr.mxu0 0.0
        %873 = vmatpush1.msra.mxu0 0.0
        %874 = vmatprep.subr.mxu0 0.0
        %875 = vmatpush1.msra.mxu0 0.0
        %876 = vmatprep.subr.mxu0 0.0
        %877 = vmatpush1.msra.mxu0 0.0
        %878 = vmatprep.subr.mxu0 0.0
        %879 = vmatpush1.msra.mxu0 0.0
        %880 = vmatprep.subr.mxu0 0.0
        %881 = vmatpush1.msra.mxu0 0.0
        %882 = vmatprep.subr.mxu0 0.0
        %883 = vmatpush1.msra.mxu0 0.0
        %884 = vmatprep.subr.mxu0 0.0
        %885 = vmatpush1.msra.mxu0 0.0
        %886 = vmatprep.subr.mxu0 0.0
        %887 = vmatpush1.msra.mxu0 0.0
        %888 = vmatprep.subr.mxu0 0.0
        %889 = vmatpush1.msra.mxu0 0.0
        %890 = vmatprep.subr.mxu0 0.0
        %891 = vmatpush1.msra.mxu0 0.0
        %892 = vmatprep.subr.mxu0 0.0
        %893 = vmatpush1.msra.mxu0 0.0
        %894 = vmatprep.subr.mxu0 0.0
        %895 = vmatpush1.msra.mxu0 0.0
        %896 = vmatprep.subr.mxu0 0.0
        %897 = vmatpush1.msra.mxu0 0.0
        %898 = vmatprep.subr.mxu0 0.0
        %899 = vmatpush1.msra.mxu0 0.0
        %900 = vmatprep.subr.mxu0 0.0
        %901 = vmatpush1.msra.mxu0 0.0
        %902 = vmatprep.subr.mxu0 0.0
        %903 = vmatpush1.msra.mxu0 0.0
        %904 = vmatprep.subr.mxu0 0.0
        %905 = vmatpush1.msra.mxu0 0.0
        %906 = vmatprep.subr.mxu0 0.0
        %907 = vmatpush1.msra.mxu0 0.0
        %908 = vmatprep.subr.mxu0 0.0
        %909 = vmatpush1.msra.mxu0 0.0
        %910 = vmatprep.subr.mxu0 0.0
        %911 = vmatpush1.msra.mxu0 0.0
        %912 = vmatprep.subr.mxu0 0.0
        %913 = vmatpush1.msra.mxu0 0.0
        %914 = vmatprep.subr.mxu0 0.0
        %915 = vmatpush1.msra.mxu0 0.0
        %916 = vmatprep.mubr.f32.mxu0 0.0
        %917 = vmatmul.mubr.f32.gmra.mrb[0].mxu0 %v850
        %v918 = vpop.f32.mrb[0].mxu0
        %v919 = vadd.f32 0.0, %v918
        %v920 = vpop.f32.mrb[0].mxu0
        %921 = vdwg.mxu0
        %922 = vset.pattern.permute.xlu0 2
        %923 = vperm.xlu0 %922, %v570
        %v924 = vpop.permute.xlu0 %923
        %v926 = vmul.f32 %v919, %v924
        %928 = vrot.lane.b32.xlu0 %v926, 16
        %v929 = vpop.permute.xlu0 %928
        %vm931 = vcmask 195712
        %932 = vst.msk [vmem:[#allocation2] sm:$0xff] %vm931, %v929
        %v933 = vlaneseq
        %v934 = vshrl.u32 %v933, 7
        %v935 = vsub.s32 3, %v934
        %v936 = vrot.slane %v568, %v935
        %938 = vrot.lane.b32.xlu0 %v936, 1
        %v939 = vpop.permute.xlu0 %938
        %v941 = vsel %vm587, 0.0, %v939
        %v942 = vsel %vm590, %v941, %v936
        %944 = vrot.lane.b32.xlu0 %v942, 2
        %v945 = vpop.permute.xlu0 %944
        %v947 = vsel %vm596, 0.0, %v945
        %v948 = vsel %vm599, %v947, %v942
        %950 = vrot.lane.b32.xlu0 %v948, 4
        %v951 = vpop.permute.xlu0 %950
        %v953 = vsel %vm605, 0.0, %v951
        %v954 = vsel %vm608, %v953, %v948
        %955 = vset.pattern.permute.xlu0 3
        %956 = vperm.xlu0 %955, %v569
        %v957 = vpop.permute.xlu0 %956
        %v959 = vmul.f32 %v567, %v957
        %961 = vrot.lane.b32.xlu0 %v954, 120
        %v962 = vpop.permute.xlu0 %961
        %964 = vrot.lane.b32.xlu0 %v959, 104
        %v965 = vpop.permute.xlu0 %964
        %v967 = vsel %vm619, %v962, 0
        %969 = vmatprep.subr.mxu0 0.0
        %970 = vmatpush1.msra.mxu0 %v965
        %971 = vmatprep.subr.mxu0 0.0
        %972 = vmatpush1.msra.mxu0 0.0
        %973 = vmatprep.subr.mxu0 0.0
        %974 = vmatpush1.msra.mxu0 0.0
        %975 = vmatprep.subr.mxu0 0.0
        %976 = vmatpush1.msra.mxu0 0.0
        %977 = vmatprep.subr.mxu0 0.0
        %978 = vmatpush1.msra.mxu0 0.0
        %979 = vmatprep.subr.mxu0 0.0
        %980 = vmatpush1.msra.mxu0 0.0
        %981 = vmatprep.subr.mxu0 0.0
        %982 = vmatpush1.msra.mxu0 0.0
        %983 = vmatprep.subr.mxu0 0.0
        %984 = vmatpush1.msra.mxu0 0.0
        %985 = vmatprep.subr.mxu0 0.0
        %986 = vmatpush1.msra.mxu0 0.0
        %987 = vmatprep.subr.mxu0 0.0
        %988 = vmatpush1.msra.mxu0 0.0
        %989 = vmatprep.subr.mxu0 0.0
        %990 = vmatpush1.msra.mxu0 0.0
        %991 = vmatprep.subr.mxu0 0.0
        %992 = vmatpush1.msra.mxu0 0.0
        %993 = vmatprep.subr.mxu0 0.0
        %994 = vmatpush1.msra.mxu0 0.0
        %995 = vmatprep.subr.mxu0 0.0
        %996 = vmatpush1.msra.mxu0 0.0
        %997 = vmatprep.subr.mxu0 0.0
        %998 = vmatpush1.msra.mxu0 0.0
        %999 = vmatprep.subr.mxu0 0.0
        %1000 = vmatpush1.msra.mxu0 0.0
        %1001 = vmatprep.subr.mxu0 0.0
        %1002 = vmatpush1.msra.mxu0 0.0
        %1003 = vmatprep.subr.mxu0 0.0
        %1004 = vmatpush1.msra.mxu0 0.0
        %1005 = vmatprep.subr.mxu0 0.0
        %1006 = vmatpush1.msra.mxu0 0.0
        %1007 = vmatprep.subr.mxu0 0.0
        %1008 = vmatpush1.msra.mxu0 0.0
        %1009 = vmatprep.subr.mxu0 0.0
        %1010 = vmatpush1.msra.mxu0 0.0
        %1011 = vmatprep.subr.mxu0 0.0
        %1012 = vmatpush1.msra.mxu0 0.0
        %1013 = vmatprep.subr.mxu0 0.0
        %1014 = vmatpush1.msra.mxu0 0.0
        %1015 = vmatprep.subr.mxu0 0.0
        %1016 = vmatpush1.msra.mxu0 0.0
        %1017 = vmatprep.subr.mxu0 0.0
        %1018 = vmatpush1.msra.mxu0 0.0
        %1019 = vmatprep.subr.mxu0 0.0
        %1020 = vmatpush1.msra.mxu0 0.0
        %1021 = vmatprep.subr.mxu0 0.0
        %1022 = vmatpush1.msra.mxu0 0.0
        %1023 = vmatprep.subr.mxu0 0.0
        %1024 = vmatpush1.msra.mxu0 0.0
        %1025 = vmatprep.subr.mxu0 0.0
        %1026 = vmatpush1.msra.mxu0 0.0
        %1027 = vmatprep.subr.mxu0 0.0
        %1028 = vmatpush1.msra.mxu0 0.0
        %1029 = vmatprep.subr.mxu0 0.0
        %1030 = vmatpush1.msra.mxu0 0.0
        %1031 = vmatprep.subr.mxu0 0.0
        %1032 = vmatpush1.msra.mxu0 0.0
        %1033 = vmatprep.mubr.f32.mxu0 0.0
        %1034 = vmatmul.mubr.f32.gmra.mrb[0].mxu0 %v967
        %v1035 = vpop.f32.mrb[0].mxu0
        %v1036 = vadd.f32 0.0, %v1035
        %v1037 = vpop.f32.mrb[0].mxu0
        %1038 = vdwg.mxu0
        %1039 = vset.pattern.permute.xlu0 3
        %1040 = vperm.xlu0 %1039, %v570
        %v1041 = vpop.permute.xlu0 %1040
        %v1043 = vmul.f32 %v1036, %v1041
        %1045 = vrot.lane.b32.xlu0 %v1043, 24
        %v1046 = vpop.permute.xlu0 %1045
        %vm1048 = vcmask 261312
        %1049 = vst.msk [vmem:[#allocation2] sm:$0xff] %vm1048, %v1046
        %v1050 = vrcp.pop %v562
        %v1051 = vmul.f32 %v562, %v1050
        %v1052 = vsub.f32 2.0, %v1051
        %v1053 = vmul.f32 %v1050, %v1052
        %v1054 = vxor.u32 %v536, 2147483648
        %v1055 = vmul.f32 %v1054, 1.442695
        %v1056 = vpow.pop %v1055
        %v1057 = vadd.f32 %v1056, 1.0
        %v1058 = vrcp.pop %v1057
        %v1059 = vmul.f32 1.0, %v1058
        %v1060 = vld [vmem:[#allocation2] sm:$0xff]
        %1062 = vrot.lane.b32.xlu0 %v1060, 64
        %v1063 = vpop.permute.xlu0 %1062
        %v1065 = vmul.f32 %v1059, %v1063
        %1067 = vrot.lane.b32.xlu0 %v1053, 64
        %v1068 = vpop.permute.xlu0 %1067
        %v1070 = vmul.f32 %v1065, %v1068
        %v1071 = vpack.c.bf16 %v1070, %v1070
        %v1072 = vld [vmem:[#allocation14] sm:$0xf]
        %v1073 = vld [vmem:[#allocation14 + $0x4] sm:$0xf]
        %v1074 = vld [vmem:[#allocation14 + $0x8] sm:$0xf]
        %v1075 = vld [vmem:[#allocation14 + $0xc] sm:$0xf]
        %v1076 = vld [vmem:[#allocation15] sm:$0x1]
        %v1078 = vlaneseq
        %v1079 = vshrl.u32 %v1078, 7
        %v1080 = vsub.s32 0, %v1079
        %v1081 = vrot.slane %v1076, %v1080
        %1084 = vrot.lane.b32.xlu0 %v1071, 64
        %v1085 = vpop.permute.xlu0 %1084
        %v1090 = vunpack.c.l.b16 %v1072
        %v1091 = vunpack.c.l.b16 %v1073
        %v1092 = vunpack.c.l.b16 %v1074
        %v1093 = vunpack.c.l.b16 %v1075
        %v1094 = vpack.c.b16 %v1091, %v1090
        %v1095 = vpack.c.b16 %v1093, %v1092
        %v1099 = vsel %vm497, %v1085, 0
        %1101 = vmatprep.subr.bf16.mxu0 0
        %1102 = vmatpush1.bf16.msra.mxu0 %v1094
        %1103 = vmatprep.subr.bf16.mxu0 0
        %1104 = vmatpush1.bf16.msra.mxu0 %v1095
        %1105 = vmatprep.subr.bf16.mxu0 0
        %1106 = vmatpush1.bf16.msra.mxu0 0
        %1107 = vmatprep.subr.bf16.mxu0 0
        %1108 = vmatpush1.bf16.msra.mxu0 0
        %1109 = vmatprep.subr.bf16.mxu0 0
        %1110 = vmatpush1.bf16.msra.mxu0 0
        %1111 = vmatprep.subr.bf16.mxu0 0
        %1112 = vmatpush1.bf16.msra.mxu0 0
        %1113 = vmatprep.subr.bf16.mxu0 0
        %1114 = vmatpush1.bf16.msra.mxu0 0
        %1115 = vmatprep.subr.bf16.mxu0 0
        %1116 = vmatpush1.bf16.msra.mxu0 0
        %1117 = vmatprep.subr.bf16.mxu0 0
        %1118 = vmatpush1.bf16.msra.mxu0 0
        %1119 = vmatprep.subr.bf16.mxu0 0
        %1120 = vmatpush1.bf16.msra.mxu0 0
        %1121 = vmatprep.subr.bf16.mxu0 0
        %1122 = vmatpush1.bf16.msra.mxu0 0
        %1123 = vmatprep.subr.bf16.mxu0 0
        %1124 = vmatpush1.bf16.msra.mxu0 0
        %1125 = vmatprep.subr.bf16.mxu0 0
        %1126 = vmatpush1.bf16.msra.mxu0 0
        %1127 = vmatprep.subr.bf16.mxu0 0
        %1128 = vmatpush1.bf16.msra.mxu0 0
        %1129 = vmatprep.subr.bf16.mxu0 0
        %1130 = vmatpush1.bf16.msra.mxu0 0
        %1131 = vmatprep.subr.bf16.mxu0 0
        %1132 = vmatpush1.bf16.msra.mxu0 0
        %1133 = vmatprep.mubr.bf16.mxu0 0
        %1134 = vmatmul.mubr.bf16.gmra.mrb[0].mxu0 %v1099
        %v1135 = vpop.f32.mrb[0].mxu0
        %v1136 = vadd.f32 %v1081, %v1135
        %v1137 = vpop.f32.mrb[0].mxu0
        %v1138 = vpop.f32.mrb[0].mxu0
        %v1139 = vpop.f32.mrb[0].mxu0
        %1140 = vdwg.mxu0
        %v1141 = vld [vmem:[#allocation17] sm:$0xff]
        %1143 = vset.pattern.permute.xlu0 0
        %1144 = vperm.xlu0 %1143, %v1141
        %v1145 = vpop.permute.xlu0 %1144
        %v1147 = vmul.f32 %v1136, %v1145
        %1148 = vst.msk [vmem:[%s451] sm:$0xff] %vm497, %v1147
        %s1149 = sand.u32 %s232, 1
        %s1150 = scalar_lea.sflag [#allocation5], %s1149
        %s1151 = sand.u32 %s232, 1
        %s1152 = smul.addr %s1151, 8
        %s1153 = scalar_lea.vmem [#allocation18], %s1152
        // Predicated region
        $region93: #{tpu_custom_call.1} parent=55 // pred_check
          %p1154 = pneg %p242
        $region94: #{tpu_custom_call.1} parent=55 // pred_check_branch
          %1156 = sbr.rel (%p1154) target = $region96
        $region95: #{tpu_custom_call.1} parent=55 // pred_region
          %s1158 = ssub.s32 128, 128
          %1159 = vsyncadd %s1150, %s1158
          %s1160 = smul.addr %s30, 128
          %s1161 = scalar_lea.hbm %s9, %s1160
          %s1163 = sshll.u32 %s1153, 4
          %s1164 = int_to_ptr.vmem [resolvable:$true] %s1163
          %1166 = dma.vmem_to_hbm [thread:$0]  %s1164, 128, %s1161, %s1150
        $region96: #{tpu_custom_call.1} parent=55 // pred_fallthru
          _
      $region56: #{tpu_custom_call.1} parent=5 // pred_fallthru
        _
      %p1167 = scmp.le.s32.totalorder 2, %s25
      // Predicated region
      $region97: #{tpu_custom_call.1} parent=5 // pred_check
        %p1168 = pneg %p1167
      $region98: #{tpu_custom_call.1} parent=5 // pred_check_branch
        %1170 = sbr.rel (%p1168) target = $region100
      $region99: #{tpu_custom_call.1} parent=5 // pred_region
        %s1171 = ssub.s32 %s25, 2
        // Predicated region
        $region101: #{tpu_custom_call.1} parent=99 // pred_check
          %p1172 = pneg %p248
        $region102: #{tpu_custom_call.1} parent=99 // pred_check_branch
          %1174 = sbr.rel (%p1172) target = $region104
        $region103: #{tpu_custom_call.1} parent=99 // pred_region
          %s1175 = sand.u32 %s233, 1
          %s1176 = scalar_lea.sflag [#allocation5], %s1175
          %s1177 = sand.u32 %s233, 1
          %s1178 = smul.addr %s1177, 8
          %s1179 = scalar_lea.vmem [#allocation18], %s1178
          %1180 = dma.done %s1176, 128
        $region104: #{tpu_custom_call.1} parent=99 // pred_fallthru
          _
      $region100: #{tpu_custom_call.1} parent=5 // pred_fallthru
        _
    $region6: #{tpu_custom_call.1} parent=1 // loop_footer
      %s29 = sadd.s32 1, %s25
    $region7: #{tpu_custom_call.1} parent=1 // loop_footer_branch
      %24 = sbr.rel target = $region3
    $region8: #{tpu_custom_call.1} parent=1 // loop_exit
      _
    %1181 = vsyncpa [#allocation4], 1
    %s1182 = scalar_lea.sflag [#allocation4], 1
    %1183 = vsyncpa %s1182, 1
    %1184 = vsyncpa [#allocation7], 1
    %1185 = vsyncpa [#allocation10], 1
    %1186 = vsyncpa [#allocation13], 1
    %1187 = vsyncpa [#allocation16], 1
    %1188 = vsyncpa [#allocation5], 1
    %s1189 = scalar_lea.sflag [#allocation5], 1
    %1190 = vsyncpa %s1189, 1

// kernel: tpu_custom_call.1
$region0: #{tpu_custom_call.1}
  #allocation0 [shape = 'u32[]', space=smem, size = 0x4, offset = 0x4, fixed_abs, tag = 'smem constant byte address 0x4 - core index']
  #allocation1 [shape = 'u32[144,128]{1,0:T(1,128)}', space=vmem, size = 0x12000, scoped, tag = 'internal scratch']
  #allocation2 [shape = 'f32[8,32]{1,0:T(8,128)}', space=vmem, size = 0x1000, scoped, tag = 'scratch operand']
  %s0 = inlined_call_operand.hbm [shape: bf16[2,8,32], index: 0, kind: input, shape index: {}]
  %s1 = inlined_call_operand.hbm [shape: f32[4,16], index: 1, kind: input, shape index: {}]
  %s2 = inlined_call_operand.hbm [shape: f32[8,4], index: 2, kind: input, shape index: {}]
  %s3 = inlined_call_operand.hbm [shape: f32[8,4], index: 3, kind: input, shape index: {}]
  %s4 = inlined_call_operand.hbm [shape: bf16[32,96], index: 4, kind: input, shape index: {}]
  %s5 = inlined_call_operand.hbm [shape: f32[1,96], index: 5, kind: input, shape index: {}]
  %s6 = inlined_call_operand.hbm [shape: bf16[32,32], index: 6, kind: input, shape index: {}]
  %s7 = inlined_call_operand.hbm [shape: f32[1,32], index: 7, kind: input, shape index: {}]
  %s8 = inlined_call_operand.hbm [shape: f32[8,1], index: 8, kind: input, shape index: {}]
  %s9 = inlined_call_operand.hbm [shape: f32[2,8,32], index: 9, kind: output, shape index: {}]
  %s10 = sld [smem:[#allocation0]]
  $region105: #{tpu_custom_call.1} parent=0
    _
  %s12 = ssub.s32 1, %s10
  %s13 = scalar_select 0, %s12, %s10
  $region1: #{tpu_custom_call.1} parent=0
    #allocation3 [shape = 'u8[4096]{0}', space=vmem, size = 0x1000, scoped, tag = 'input window, operand 0']
    #allocation4 [shape = 's32[2]{0}', space=sflag, size = 0x8, scoped, tag = 'scoped memory for tpu_custom_call.1']
    #allocation5 [shape = 's32[2]{0}', space=sflag, size = 0x8, scoped, tag = 'scoped memory for tpu_custom_call.1']
    #allocation6 [shape = 'u8[2048]{0}', space=vmem, size = 0x800, scoped, tag = 'input window, operand 1, single buffered']
    #allocation7 [shape = 's32[1]{0}', space=sflag, size = 0x4, scoped, tag = 'scoped memory for tpu_custom_call.1']
    #allocation8 [shape = 'u8[4096]{0}', space=vmem, size = 0x1000, scoped, tag = 'input window, operand 2, single buffered']
    #allocation9 [shape = 'u8[4096]{0}', space=vmem, size = 0x1000, scoped, tag = 'input window, operand 3, single buffered']
    #allocation10 [shape = 's32[1]{0}', space=sflag, size = 0x4, scoped, tag = 'scoped memory for tpu_custom_call.1']
    #allocation11 [shape = 'u8[8192]{0}', space=vmem, size = 0x2000, scoped, tag = 'input window, operand 4, single buffered']
    #allocation12 [shape = 'u8[512]{0}', space=vmem, size = 0x400, scoped, tag = 'input window, operand 5, single buffered']
    #allocation13 [shape = 's32[1]{0}', space=sflag, size = 0x4, scoped, tag = 'scoped memory for tpu_custom_call.1']
    #allocation14 [shape = 'u8[8192]{0}', space=vmem, size = 0x2000, scoped, tag = 'input window, operand 6, single buffered']
    #allocation15 [shape = 'u8[512]{0}', space=vmem, size = 0x400, scoped, tag = 'input window, operand 7, single buffered']
    #allocation16 [shape = 's32[1]{0}', space=sflag, size = 0x4, scoped, tag = 'scoped memory for tpu_custom_call.1']
    #allocation17 [shape = 'u8[4096]{0}', space=vmem, size = 0x1000, scoped, tag = 'input window, operand 8, single buffered']
    #allocation18 [shape = 'u8[8192]{0}', space=vmem, size = 0x2000, scoped, tag = 'output window, operand 0']
    %14 = vsyncpa [#allocation4], 0
    %s15 = scalar_lea.sflag [#allocation4], 1
    %16 = vsyncpa %s15, 0
    %17 = vsyncpa [#allocation7], 0
    %18 = vsyncpa [#allocation10], 0
    %19 = vsyncpa [#allocation13], 0
    %20 = vsyncpa [#allocation16], 0
    %21 = vsyncpa [#allocation5], 0
    %s22 = scalar_lea.sflag [#allocation5], 1
    %23 = vsyncpa %s22, 0
    loop: start=0, step=1, limit=4
    $region2: #{tpu_custom_call.1} parent=1 // loop_pre_header
      _
    $region3: #{tpu_custom_call.1} parent=1 // loop_header
      %s25 = sphi 0, %s29
      %p26 = scmp.ge.s32.totalorder %s25, 4
      %s35 = sphi 0, %s37
      %s38 = sphi 0, %s35
      %s39 = sphi 0, %s38
      %s55 = sphi 0, %s39
      %s59 = sphi 0, %s59
      %s61 = sphi 0, %s59
      %s62 = sphi 0, %s61
      %s76 = sphi 0, %s62
      %s80 = sphi 0, %s80
      %s82 = sphi 0, %s80
      %s83 = sphi 0, %s82
      %s97 = sphi 0, %s83
      %s101 = sphi 0, %s101
      %s103 = sphi 0, %s101
      %s104 = sphi 0, %s103
      %s118 = sphi 0, %s104
      %s122 = sphi 0, %s122
      %s124 = sphi 0, %s122
      %s125 = sphi 0, %s124
      %s139 = sphi 0, %s125
      %s143 = sphi 0, %s143
      %s145 = sphi 0, %s143
      %s146 = sphi 0, %s145
      %s160 = sphi 0, %s146
      %s164 = sphi 0, %s164
      %s166 = sphi 0, %s164
      %s167 = sphi 0, %s166
      %s181 = sphi 0, %s167
      %s185 = sphi 0, %s185
      %s187 = sphi 0, %s185
      %s188 = sphi 0, %s187
      %s202 = sphi 0, %s188
      %s206 = sphi 0, %s206
      %s208 = sphi 0, %s206
      %s209 = sphi 0, %s208
      %s223 = sphi 0, %s209
      %s229 = sphi 0, %s231
      %s232 = sphi 0, %s229
      %s233 = sphi 0, %s232
      %s249 = sphi 0, %s233
    $region4: #{tpu_custom_call.1} parent=1 // loop_header_branch
      %28 = sbr.rel (%p26) target = $region8
    $region5: #{tpu_custom_call.1} parent=1 // loop_body
      %s30 = ssub.s32 %s25, 1
      %s31 = ssub.s32 %s25, 2
      %s32 = sadd.s32 %s25, 1
      %s33 = ssub.s32 %s25, %s32
      %p34 = scmp.eq.s32.totalorder %s33, 0
      %s36 = sadd.s32 %s35, 1
      %s37 = scalar_select %p34, %s35, %s36
      %p40 = pneg %p34
      %p41 = scmp.eq.s32.totalorder %s25, 1
      %p42 = por %p40, %p41
      %p43 = scmp.ne.s32.totalorder %s35, %s38
      %p44 = scmp.eq.s32.totalorder %s25, 0
      %p45 = por %p43, %p44
      %p46 = scmp.ne.s32.totalorder %s35, %s38
      %p47 = scmp.eq.s32.totalorder %s30, 1
      %p48 = por %p46, %p47
      %p49 = scmp.ne.s32.totalorder %s38, %s39
      %p50 = scmp.eq.s32.totalorder %s30, 0
      %p51 = por %p49, %p50
      %p52 = scmp.ne.s32.totalorder %s38, %s39
      %p53 = scmp.eq.s32.totalorder %s31, 1
      %p54 = por %p52, %p53
      %p56 = scmp.ne.s32.totalorder %s39, %s55
      %p57 = scmp.eq.s32.totalorder %s31, 0
      %p58 = por %p56, %p57
      %s60 = sadd.s32 %s59, 1
      %p63 = scmp.eq.s32.totalorder %s25, 1
      %p64 = scmp.ne.s32.totalorder %s59, %s61
      %p65 = scmp.eq.s32.totalorder %s25, 0
      %p66 = por %p64, %p65
      %p67 = scmp.ne.s32.totalorder %s59, %s61
      %p68 = scmp.eq.s32.totalorder %s30, 1
      %p69 = por %p67, %p68
      %p70 = scmp.ne.s32.totalorder %s61, %s62
      %p71 = scmp.eq.s32.totalorder %s30, 0
      %p72 = por %p70, %p71
      %p73 = scmp.ne.s32.totalorder %s61, %s62
      %p74 = scmp.eq.s32.totalorder %s31, 1
      %p75 = por %p73, %p74
      %p77 = scmp.ne.s32.totalorder %s62, %s76
      %p78 = scmp.eq.s32.totalorder %s31, 0
      %p79 = por %p77, %p78
      %s81 = sadd.s32 %s80, 1
      %p84 = scmp.eq.s32.totalorder %s25, 1
      %p85 = scmp.ne.s32.totalorder %s80, %s82
      %p86 = scmp.eq.s32.totalorder %s25, 0
      %p87 = por %p85, %p86
      %p88 = scmp.ne.s32.totalorder %s80, %s82
      %p89 = scmp.eq.s32.totalorder %s30, 1
      %p90 = por %p88, %p89
      %p91 = scmp.ne.s32.totalorder %s82, %s83
      %p92 = scmp.eq.s32.totalorder %s30, 0
      %p93 = por %p91, %p92
      %p94 = scmp.ne.s32.totalorder %s82, %s83
      %p95 = scmp.eq.s32.totalorder %s31, 1
      %p96 = por %p94, %p95
      %p98 = scmp.ne.s32.totalorder %s83, %s97
      %p99 = scmp.eq.s32.totalorder %s31, 0
      %p100 = por %p98, %p99
      %s102 = sadd.s32 %s101, 1
      %p105 = scmp.eq.s32.totalorder %s25, 1
      %p106 = scmp.ne.s32.totalorder %s101, %s103
      %p107 = scmp.eq.s32.totalorder %s25, 0
      %p108 = por %p106, %p107
      %p109 = scmp.ne.s32.totalorder %s101, %s103
      %p110 = scmp.eq.s32.totalorder %s30, 1
      %p111 = por %p109, %p110
      %p112 = scmp.ne.s32.totalorder %s103, %s104
      %p113 = scmp.eq.s32.totalorder %s30, 0
      %p114 = por %p112, %p113
      %p115 = scmp.ne.s32.totalorder %s103, %s104
      %p116 = scmp.eq.s32.totalorder %s31, 1
      %p117 = por %p115, %p116
      %p119 = scmp.ne.s32.totalorder %s104, %s118
      %p120 = scmp.eq.s32.totalorder %s31, 0
      %p121 = por %p119, %p120
      %s123 = sadd.s32 %s122, 1
      %p126 = scmp.eq.s32.totalorder %s25, 1
      %p127 = scmp.ne.s32.totalorder %s122, %s124
      %p128 = scmp.eq.s32.totalorder %s25, 0
      %p129 = por %p127, %p128
      %p130 = scmp.ne.s32.totalorder %s122, %s124
      %p131 = scmp.eq.s32.totalorder %s30, 1
      %p132 = por %p130, %p131
      %p133 = scmp.ne.s32.totalorder %s124, %s125
      %p134 = scmp.eq.s32.totalorder %s30, 0
      %p135 = por %p133, %p134
      %p136 = scmp.ne.s32.totalorder %s124, %s125
      %p137 = scmp.eq.s32.totalorder %s31, 1
      %p138 = por %p136, %p137
      %p140 = scmp.ne.s32.totalorder %s125, %s139
      %p141 = scmp.eq.s32.totalorder %s31, 0
      %p142 = por %p140, %p141
      %s144 = sadd.s32 %s143, 1
      %p147 = scmp.eq.s32.totalorder %s25, 1
      %p148 = scmp.ne.s32.totalorder %s143, %s145
      %p149 = scmp.eq.s32.totalorder %s25, 0
      %p150 = por %p148, %p149
      %p151 = scmp.ne.s32.totalorder %s143, %s145
      %p152 = scmp.eq.s32.totalorder %s30, 1
      %p153 = por %p151, %p152
      %p154 = scmp.ne.s32.totalorder %s145, %s146
      %p155 = scmp.eq.s32.totalorder %s30, 0
      %p156 = por %p154, %p155
      %p157 = scmp.ne.s32.totalorder %s145, %s146
      %p158 = scmp.eq.s32.totalorder %s31, 1
      %p159 = por %p157, %p158
      %p161 = scmp.ne.s32.totalorder %s146, %s160
      %p162 = scmp.eq.s32.totalorder %s31, 0
      %p163 = por %p161, %p162
      %s165 = sadd.s32 %s164, 1
      %p168 = scmp.eq.s32.totalorder %s25, 1
      %p169 = scmp.ne.s32.totalorder %s164, %s166
      %p170 = scmp.eq.s32.totalorder %s25, 0
      %p171 = por %p169, %p170
      %p172 = scmp.ne.s32.totalorder %s164, %s166
      %p173 = scmp.eq.s32.totalorder %s30, 1
      %p174 = por %p172, %p173
      %p175 = scmp.ne.s32.totalorder %s166, %s167
      %p176 = scmp.eq.s32.totalorder %s30, 0
      %p177 = por %p175, %p176
      %p178 = scmp.ne.s32.totalorder %s166, %s167
      %p179 = scmp.eq.s32.totalorder %s31, 1
      %p180 = por %p178, %p179
      %p182 = scmp.ne.s32.totalorder %s167, %s181
      %p183 = scmp.eq.s32.totalorder %s31, 0
      %p184 = por %p182, %p183
      %s186 = sadd.s32 %s185, 1
      %p189 = scmp.eq.s32.totalorder %s25, 1
      %p190 = scmp.ne.s32.totalorder %s185, %s187
      %p191 = scmp.eq.s32.totalorder %s25, 0
      %p192 = por %p190, %p191
      %p193 = scmp.ne.s32.totalorder %s185, %s187
      %p194 = scmp.eq.s32.totalorder %s30, 1
      %p195 = por %p193, %p194
      %p196 = scmp.ne.s32.totalorder %s187, %s188
      %p197 = scmp.eq.s32.totalorder %s30, 0
      %p198 = por %p196, %p197
      %p199 = scmp.ne.s32.totalorder %s187, %s188
      %p200 = scmp.eq.s32.totalorder %s31, 1
      %p201 = por %p199, %p200
      %p203 = scmp.ne.s32.totalorder %s188, %s202
      %p204 = scmp.eq.s32.totalorder %s31, 0
      %p205 = por %p203, %p204
      %s207 = sadd.s32 %s206, 1
      %p210 = scmp.eq.s32.totalorder %s25, 1
      %p211 = scmp.ne.s32.totalorder %s206, %s208
      %p212 = scmp.eq.s32.totalorder %s25, 0
      %p213 = por %p211, %p212
      %p214 = scmp.ne.s32.totalorder %s206, %s208
      %p215 = scmp.eq.s32.totalorder %s30, 1
      %p216 = por %p214, %p215
      %p217 = scmp.ne.s32.totalorder %s208, %s209
      %p218 = scmp.eq.s32.totalorder %s30, 0
      %p219 = por %p217, %p218
      %p220 = scmp.ne.s32.totalorder %s208, %s209
      %p221 = scmp.eq.s32.totalorder %s31, 1
      %p222 = por %p220, %p221
      %p224 = scmp.ne.s32.totalorder %s209, %s223
      %p225 = scmp.eq.s32.totalorder %s31, 0
      %p226 = por %p224, %p225
      %s227 = ssub.s32 %s25, %s32
      %p228 = scmp.eq.s32.totalorder %s227, 0
      %s230 = sadd.s32 %s229, 1
      %s231 = scalar_select %p228, %s229, %s230
      %p234 = pneg %p228
      %p235 = scmp.eq.s32.totalorder %s25, 1
      %p236 = por %p234, %p235
      %p237 = scmp.ne.s32.totalorder %s229, %s232
      %p238 = scmp.eq.s32.totalorder %s25, 0
      %p239 = por %p237, %p238
      %p240 = scmp.ne.s32.totalorder %s229, %s232
      %p241 = scmp.eq.s32.totalorder %s30, 1
      %p242 = por %p240, %p241
      %p243 = scmp.ne.s32.totalorder %s232, %s233
      %p244 = scmp.eq.s32.totalorder %s30, 0
      %p245 = por %p243, %p244
      %p246 = scmp.ne.s32.totalorder %s232, %s233
      %p247 = scmp.eq.s32.totalorder %s31, 1
      %p248 = por %p246, %p247
      %p250 = scmp.ne.s32.totalorder %s233, %s249
      %p251 = scmp.eq.s32.totalorder %s31, 0
      %p252 = por %p250, %p251
      %p253 = scmp.le.s32.totalorder 1, %s25
      %p254 = scmp.lt.s32.totalorder %s25, 3
      %p255 = pnand %p253, %p254
      %p256 = pneg %p255
      // Predicated region
      $region9: #{tpu_custom_call.1} parent=5 // pred_check
        _
      $region10: #{tpu_custom_call.1} parent=5 // pred_check_branch
        %258 = sbr.rel (%p255) target = $region12
      $region11: #{tpu_custom_call.1} parent=5 // pred_region
        %s259 = ssub.s32 %s25, 1
        // Predicated region
        $region13: #{tpu_custom_call.1} parent=11 // pred_check
          %p260 = pneg %p72
        $region14: #{tpu_custom_call.1} parent=11 // pred_check_branch
          %262 = sbr.rel (%p260) target = $region16
        $region15: #{tpu_custom_call.1} parent=11 // pred_region
          %s264 = ssub.s32 64, 64
          %265 = vsyncadd [#allocation7], %s264
          %s267 = sshll.u32 [#allocation6], 4
          %s268 = int_to_ptr.vmem [resolvable:$true] %s267
          %270 = dma.hbm_to_vmem [thread:$0]  %s1, 64, %s268, [#allocation7]
        $region16: #{tpu_custom_call.1} parent=11 // pred_fallthru
          _
        // Predicated region
        $region17: #{tpu_custom_call.1} parent=11 // pred_check
          %p271 = pneg %p93
        $region18: #{tpu_custom_call.1} parent=11 // pred_check_branch
          %273 = sbr.rel (%p271) target = $region20
        $region19: #{tpu_custom_call.1} parent=11 // pred_region
          %s275 = ssub.s32 128, 128
          %276 = vsyncadd [#allocation7], %s275
          %s278 = sshll.u32 [#allocation8], 4
          %s279 = int_to_ptr.vmem [resolvable:$true] %s278
          %281 = dma.hbm_to_vmem [thread:$0]  %s2, 128, %s279, [#allocation7]
        $region20: #{tpu_custom_call.1} parent=11 // pred_fallthru
          _
        // Predicated region
        $region21: #{tpu_custom_call.1} parent=11 // pred_check
          %p282 = pneg %p114
        $region22: #{tpu_custom_call.1} parent=11 // pred_check_branch
          %284 = sbr.rel (%p282) target = $region24
        $region23: #{tpu_custom_call.1} parent=11 // pred_region
          %s286 = ssub.s32 128, 128
          %287 = vsyncadd [#allocation10], %s286
          %s289 = sshll.u32 [#allocation9], 4
          %s290 = int_to_ptr.vmem [resolvable:$true] %s289
          %292 = dma.hbm_to_vmem [thread:$0]  %s3, 128, %s290, [#allocation10]
        $region24: #{tpu_custom_call.1} parent=11 // pred_fallthru
          _
        // Predicated region
        $region25: #{tpu_custom_call.1} parent=11 // pred_check
          %p293 = pneg %p135
        $region26: #{tpu_custom_call.1} parent=11 // pred_check_branch
          %295 = sbr.rel (%p293) target = $region28
        $region27: #{tpu_custom_call.1} parent=11 // pred_region
          %s297 = ssub.s32 256, 256
          %298 = vsyncadd [#allocation10], %s297
          %s299 = sshll.u32 [#allocation11], 4
          %s300 = int_to_ptr.vmem [resolvable:$true] %s299
          %305 = dma.hbm_to_vmem [thread:$0]  %s4, 256, %s300, [#allocation10], 64, 64, 4
        $region28: #{tpu_custom_call.1} parent=11 // pred_fallthru
          _
        // Predicated region
        $region29: #{tpu_custom_call.1} parent=11 // pred_check
          %p306 = pneg %p156
        $region30: #{tpu_custom_call.1} parent=11 // pred_check_branch
          %308 = sbr.rel (%p306) target = $region32
        $region31: #{tpu_custom_call.1} parent=11 // pred_region
          %s310 = ssub.s32 16, 16
          %311 = vsyncadd [#allocation13], %s310
          %s313 = sshll.u32 [#allocation12], 4
          %s314 = int_to_ptr.vmem [resolvable:$true] %s313
          %316 = dma.hbm_to_vmem [thread:$0]  %s5, 16, %s314, [#allocation13]
        $region32: #{tpu_custom_call.1} parent=11 // pred_fallthru
          _
        // Predicated region
        $region33: #{tpu_custom_call.1} parent=11 // pred_check
          %p317 = pneg %p177
        $region34: #{tpu_custom_call.1} parent=11 // pred_check_branch
          %319 = sbr.rel (%p317) target = $region36
        $region35: #{tpu_custom_call.1} parent=11 // pred_region
          %s321 = ssub.s32 256, 256
          %322 = vsyncadd [#allocation13], %s321
          %s323 = sshll.u32 [#allocation14], 4
          %s324 = int_to_ptr.vmem [resolvable:$true] %s323
          %329 = dma.hbm_to_vmem [thread:$0]  %s6, 256, %s324, [#allocation13], 64, 64, 4
        $region36: #{tpu_custom_call.1} parent=11 // pred_fallthru
          _
        // Predicated region
        $region37: #{tpu_custom_call.1} parent=11 // pred_check
          %p330 = pneg %p198
        $region38: #{tpu_custom_call.1} parent=11 // pred_check_branch
          %332 = sbr.rel (%p330) target = $region40
        $region39: #{tpu_custom_call.1} parent=11 // pred_region
          %s334 = ssub.s32 16, 16
          %335 = vsyncadd [#allocation16], %s334
          %s337 = sshll.u32 [#allocation15], 4
          %s338 = int_to_ptr.vmem [resolvable:$true] %s337
          %340 = dma.hbm_to_vmem [thread:$0]  %s7, 16, %s338, [#allocation16]
        $region40: #{tpu_custom_call.1} parent=11 // pred_fallthru
          _
        // Predicated region
        $region41: #{tpu_custom_call.1} parent=11 // pred_check
          %p341 = pneg %p219
        $region42: #{tpu_custom_call.1} parent=11 // pred_check_branch
          %343 = sbr.rel (%p341) target = $region44
        $region43: #{tpu_custom_call.1} parent=11 // pred_region
          %s345 = ssub.s32 128, 128
          %346 = vsyncadd [#allocation16], %s345
          %s348 = sshll.u32 [#allocation17], 4
          %s349 = int_to_ptr.vmem [resolvable:$true] %s348
          %351 = dma.hbm_to_vmem [thread:$0]  %s8, 128, %s349, [#allocation16]
        $region44: #{tpu_custom_call.1} parent=11 // pred_fallthru
          _
      $region12: #{tpu_custom_call.1} parent=5 // pred_fallthru
        _
      %p352 = scmp.lt.s32.totalorder %s25, 2
      // Predicated region
      $region45: #{tpu_custom_call.1} parent=5 // pred_check
        %p353 = pneg %p352
      $region46: #{tpu_custom_call.1} parent=5 // pred_check_branch
        %355 = sbr.rel (%p353) target = $region48
      $region47: #{tpu_custom_call.1} parent=5 // pred_region
        // Predicated region
        $region49: #{tpu_custom_call.1} parent=47 // pred_check
          %p356 = pneg %p45
        $region50: #{tpu_custom_call.1} parent=47 // pred_check_branch
          %358 = sbr.rel (%p356) target = $region52
        $region51: #{tpu_custom_call.1} parent=47 // pred_region
          %s359 = sand.u32 %s35, 1
          %s360 = scalar_lea.sflag [#allocation4], %s359
          %s361 = sand.u32 %s35, 1
          %s362 = smul.addr %s361, 4
          %s363 = scalar_lea.vmem [#allocation3], %s362
          %s365 = ssub.s32 64, 64
          %366 = vsyncadd %s360, %s365
          %s367 = smul.addr %s25, 64
          %s368 = scalar_lea.hbm %s0, %s367
          %s370 = sshll.u32 %s363, 4
          %s371 = int_to_ptr.vmem [resolvable:$true] %s370
          %373 = dma.hbm_to_vmem [thread:$0]  %s368, 64, %s371, %s360
        $region52: #{tpu_custom_call.1} parent=47 // pred_fallthru
          _
      $region48: #{tpu_custom_call.1} parent=5 // pred_fallthru
        _
      %p374 = scmp.le.s32.totalorder 1, %s25
      %p375 = scmp.lt.s32.totalorder %s25, 3
      %p376 = pnand %p374, %p375
      %p377 = pneg %p376
      // Predicated region
      $region53: #{tpu_custom_call.1} parent=5 // pred_check
        _
      $region54: #{tpu_custom_call.1} parent=5 // pred_check_branch
        %379 = sbr.rel (%p376) target = $region56
      $region55: #{tpu_custom_call.1} parent=5 // pred_region
        %s380 = ssub.s32 %s25, 1
        %s381 = sand.u32 %s38, 1
        %s382 = scalar_lea.sflag [#allocation4], %s381
        %s383 = sand.u32 %s38, 1
        %s384 = smul.addr %s383, 4
        %s385 = scalar_lea.vmem [#allocation3], %s384
        // Predicated region
        $region57: #{tpu_custom_call.1} parent=55 // pred_check
          %p386 = pneg %p51
        $region58: #{tpu_custom_call.1} parent=55 // pred_check_branch
          %388 = sbr.rel (%p386) target = $region60
        $region59: #{tpu_custom_call.1} parent=55 // pred_region
          %389 = dma.done %s382, 64
        $region60: #{tpu_custom_call.1} parent=55 // pred_fallthru
          _
        // Predicated region
        $region61: #{tpu_custom_call.1} parent=55 // pred_check
          %p390 = pneg %p72
        $region62: #{tpu_custom_call.1} parent=55 // pred_check_branch
          %392 = sbr.rel (%p390) target = $region64
        $region63: #{tpu_custom_call.1} parent=55 // pred_region
          %393 = dma.done [#allocation7], 64
        $region64: #{tpu_custom_call.1} parent=55 // pred_fallthru
          _
        // Predicated region
        $region65: #{tpu_custom_call.1} parent=55 // pred_check
          %p394 = pneg %p93
        $region66: #{tpu_custom_call.1} parent=55 // pred_check_branch
          %396 = sbr.rel (%p394) target = $region68
        $region67: #{tpu_custom_call.1} parent=55 // pred_region
          %397 = dma.done [#allocation7], 128
        $region68: #{tpu_custom_call.1} parent=55 // pred_fallthru
          _
        // Predicated region
        $region69: #{tpu_custom_call.1} parent=55 // pred_check
          %p398 = pneg %p114
        $region70: #{tpu_custom_call.1} parent=55 // pred_check_branch
          %400 = sbr.rel (%p398) target = $region72
        $region71: #{tpu_custom_call.1} parent=55 // pred_region
          %401 = dma.done [#allocation10], 128
        $region72: #{tpu_custom_call.1} parent=55 // pred_fallthru
          _
        // Predicated region
        $region73: #{tpu_custom_call.1} parent=55 // pred_check
          %p402 = pneg %p135
        $region74: #{tpu_custom_call.1} parent=55 // pred_check_branch
          %404 = sbr.rel (%p402) target = $region76
        $region75: #{tpu_custom_call.1} parent=55 // pred_region
          %405 = dma.done [#allocation10], 256
        $region76: #{tpu_custom_call.1} parent=55 // pred_fallthru
          _
        // Predicated region
        $region77: #{tpu_custom_call.1} parent=55 // pred_check
          %p406 = pneg %p156
        $region78: #{tpu_custom_call.1} parent=55 // pred_check_branch
          %408 = sbr.rel (%p406) target = $region80
        $region79: #{tpu_custom_call.1} parent=55 // pred_region
          %409 = dma.done [#allocation13], 16
        $region80: #{tpu_custom_call.1} parent=55 // pred_fallthru
          _
        // Predicated region
        $region81: #{tpu_custom_call.1} parent=55 // pred_check
          %p410 = pneg %p177
        $region82: #{tpu_custom_call.1} parent=55 // pred_check_branch
          %412 = sbr.rel (%p410) target = $region84
        $region83: #{tpu_custom_call.1} parent=55 // pred_region
          %413 = dma.done [#allocation13], 256
        $region84: #{tpu_custom_call.1} parent=55 // pred_fallthru
          _
        // Predicated region
        $region85: #{tpu_custom_call.1} parent=55 // pred_check
          %p414 = pneg %p198
        $region86: #{tpu_custom_call.1} parent=55 // pred_check_branch
          %416 = sbr.rel (%p414) target = $region88
        $region87: #{tpu_custom_call.1} parent=55 // pred_region
          %417 = dma.done [#allocation16], 16
        $region88: #{tpu_custom_call.1} parent=55 // pred_fallthru
          _
        // Predicated region
        $region89: #{tpu_custom_call.1} parent=55 // pred_check
          %p418 = pneg %p219
        $region90: #{tpu_custom_call.1} parent=55 // pred_check_branch
          %420 = sbr.rel (%p418) target = $region92
        $region91: #{tpu_custom_call.1} parent=55 // pred_region
          %421 = dma.done [#allocation16], 128
        $region92: #{tpu_custom_call.1} parent=55 // pred_fallthru
          _
        %s422 = sand.u32 %s38, 1
        %s423 = scalar_lea.sflag [#allocation4], %s422
        %s424 = sand.u32 %s38, 1
        %s425 = smul.addr %s424, 4
        %s426 = scalar_lea.vmem [#allocation3], %s425
        %p427 = pneg %p51
        %p428 = pneg %p48
        %p429 = pneg %p72
        %p430 = pneg %p69
        %p431 = pneg %p93
        %p432 = pneg %p90
        %p433 = pneg %p114
        %p434 = pneg %p111
        %p435 = pneg %p135
        %p436 = pneg %p132
        %p437 = pneg %p156
        %p438 = pneg %p153
        %p439 = pneg %p177
        %p440 = pneg %p174
        %p441 = pneg %p198
        %p442 = pneg %p195
        %p443 = pneg %p219
        %p444 = pneg %p216
        %p445 = pneg %p245
        %p446 = pneg %p242
        %s447 = sand.u32 %s232, 1
        %s448 = scalar_lea.sflag [#allocation5], %s447
        %s449 = sand.u32 %s232, 1
        %s450 = smul.addr %s449, 8
        %s451 = scalar_lea.vmem [#allocation18], %s450
        %v453 = vld [vmem:[%s385] sm:$0xf]
        %v455 = vunpack.c.l.b16 %v453
        %v456 = vpack.c.b16 %v455, %v455
        %v458 = vshrl.u32 %v456, 16
        %v460 = vrot.slane %v458, 7
        %v461 = vshll.u32 %v456, 16
        %v463 = vor.u32 %v460, %v461
        %vm465 = vcmask 1040384
        %vm466 = vsmask.f32 256
        %vm467 = vmand %vm465, %vm466
        %v468 = vsel %vm467, 0, %v463
        %v469 = vlaneseq
        %v470 = vand.u32 %v469, 127
        %vm471 = vcmp.lt.s32.totalorder %v470, 16
        %vm472 = vmpackc.low %vm471, %vm471
        %v473 = vsel %vm472, %v468, %v453
        %v474 = vld [vmem:[#allocation11] sm:$0xf]
        %v475 = vld [vmem:[#allocation11 + $0x4] sm:$0xf]
        %v476 = vld [vmem:[#allocation11 + $0x8] sm:$0xf]
        %v477 = vld [vmem:[#allocation11 + $0xc] sm:$0xf]
        %v478 = vld [vmem:[#allocation12] sm:$0x1]
        %v480 = vlaneseq
        %v481 = vshrl.u32 %v480, 7
        %v482 = vsub.s32 0, %v481
        %v483 = vrot.slane %v478, %v482
        %v489 = vunpack.c.l.b16 %v474
        %v490 = vunpack.c.l.b16 %v475
        %v491 = vunpack.c.l.b16 %v476
        %v492 = vunpack.c.l.b16 %v477
        %v493 = vpack.c.b16 %v490, %v489
        %v494 = vpack.c.b16 %v492, %v491
        %vm497 = vcmask 261120
        %v499 = vsel %vm497, %v473, 0
        %501 = vmatprep.subr.bf16.mxu0 0
        %502 = vmatpush1.bf16.msra.mxu0 %v493
        %503 = vmatprep.subr.bf16.mxu0 0
        %504 = vmatpush1.bf16.msra.mxu0 %v494
        %505 = vmatprep.subr.bf16.mxu0 0
        %506 = vmatpush1.bf16.msra.mxu0 0
        %507 = vmatprep.subr.bf16.mxu0 0
        %508 = vmatpush1.bf16.msra.mxu0 0
        %509 = vmatprep.subr.bf16.mxu0 0
        %510 = vmatpush1.bf16.msra.mxu0 0
        %511 = vmatprep.subr.bf16.mxu0 0
        %512 = vmatpush1.bf16.msra.mxu0 0
        %513 = vmatprep.subr.bf16.mxu0 0
        %514 = vmatpush1.bf16.msra.mxu0 0
        %515 = vmatprep.subr.bf16.mxu0 0
        %516 = vmatpush1.bf16.msra.mxu0 0
        %517 = vmatprep.subr.bf16.mxu0 0
        %518 = vmatpush1.bf16.msra.mxu0 0
        %519 = vmatprep.subr.bf16.mxu0 0
        %520 = vmatpush1.bf16.msra.mxu0 0
        %521 = vmatprep.subr.bf16.mxu0 0
        %522 = vmatpush1.bf16.msra.mxu0 0
        %523 = vmatprep.subr.bf16.mxu0 0
        %524 = vmatpush1.bf16.msra.mxu0 0
        %525 = vmatprep.subr.bf16.mxu0 0
        %526 = vmatpush1.bf16.msra.mxu0 0
        %527 = vmatprep.subr.bf16.mxu0 0
        %528 = vmatpush1.bf16.msra.mxu0 0
        %529 = vmatprep.subr.bf16.mxu0 0
        %530 = vmatpush1.bf16.msra.mxu0 0
        %531 = vmatprep.subr.bf16.mxu0 0
        %532 = vmatpush1.bf16.msra.mxu0 0
        %533 = vmatprep.mubr.bf16.mxu0 0
        %534 = vmatmul.mubr.bf16.gmra.mrb[0].mxu0 %v499
        %v535 = vpop.f32.mrb[0].mxu0
        %v536 = vadd.f32 %v483, %v535
        %v537 = vpop.f32.mrb[0].mxu0
        %v538 = vpop.f32.mrb[0].mxu0
        %v539 = vpop.f32.mrb[0].mxu0
        %540 = vdwg.mxu0
        %v541 = vmax.f32 %v536, -60.0
        %v542 = vmin.f32 %v541, 30.0
        %v543 = vmul.f32 %v542, 1.442695
        %v544 = vpow.pop %v543
        %v546 = vrot.slane %v544, 7
        %vm548 = vcmask 1040384
        %v549 = vsel %vm548, 0.0, %v546
        %v550 = vadd.f32 %v544, %v549
        %v552 = vrot.slane %v550, 6
        %vm554 = vcmask 1041408
        %v555 = vsel %vm554, 0.0, %v552
        %v556 = vadd.f32 %v550, %v555
        %v558 = vrot.slane %v556, 4
        %vm560 = vcmask 1043456
        %v561 = vsel %vm560, 0.0, %v558
        %v562 = vadd.f32 %v556, %v561
        %564 = vrot.lane.b32.xlu0 %v536, 96
        %v565 = vpop.permute.xlu0 %564
        %v567 = vmul.f32 %v544, %v565
        %v568 = vld [vmem:[#allocation6] sm:$0xf]
        %v569 = vld [vmem:[#allocation8] sm:$0xff]
        %v570 = vld [vmem:[#allocation9] sm:$0xff]
        %v571 = vlaneseq
        %v572 = vshrl.u32 %v571, 7
        %v573 = vand.u32 %v572, 1
        %vm574 = vcmp.ne.s32.totalorder %v573, 0
        %v575 = vand.u32 %v572, 2
        %vm576 = vcmp.ne.s32.totalorder %v575, 0
        %v577 = vand.u32 %v572, 4
        %vm578 = vcmp.ne.s32.totalorder %v577, 0
        %v579 = vlaneseq
        %v580 = vshrl.u32 %v579, 7
        %v581 = vsub.s32 0, %v580
        %v582 = vrot.slane %v568, %v581
        %584 = vrot.lane.b32.xlu0 %v582, 1
        %v585 = vpop.permute.xlu0 %584
        %vm587 = vcmask 7168
        %v588 = vsel %vm587, 0.0, %v585
        %v589 = vsel %vm574, 1, 0
        %vm590 = vcmp.eq.s32.totalorder %v589, 1
        %v591 = vsel %vm590, %v588, %v582
        %593 = vrot.lane.b32.xlu0 %v591, 2
        %v594 = vpop.permute.xlu0 %593
        %vm596 = vcmask 15360
        %v597 = vsel %vm596, 0.0, %v594
        %v598 = vsel %vm576, 1, 0
        %vm599 = vcmp.eq.s32.totalorder %v598, 1
        %v600 = vsel %vm599, %v597, %v591
        %602 = vrot.lane.b32.xlu0 %v600, 4
        %v603 = vpop.permute.xlu0 %602
        %vm605 = vcmask 31744
        %v606 = vsel %vm605, 0.0, %v603
        %v607 = vsel %vm578, 1, 0
        %vm608 = vcmp.eq.s32.totalorder %v607, 1
        %v609 = vsel %vm608, %v606, %v600
        %611 = vset.pattern.permute.xlu0 0
        %612 = vperm.xlu0 %611, %v569
        %v613 = vpop.permute.xlu0 %612
        %v615 = vmul.f32 %v567, %v613
        %617 = vrot.lane.b32.xlu0 %v609, 120
        %v618 = vpop.permute.xlu0 %617
        %vm619 = vcmask 64512
        %v620 = vsel %vm619, %v618, 0
        %622 = vmatprep.subr.mxu0 0.0
        %623 = vmatpush1.msra.mxu0 %v615
        %624 = vmatprep.subr.mxu0 0.0
        %625 = vmatpush1.msra.mxu0 0.0
        %626 = vmatprep.subr.mxu0 0.0
        %627 = vmatpush1.msra.mxu0 0.0
        %628 = vmatprep.subr.mxu0 0.0
        %629 = vmatpush1.msra.mxu0 0.0
        %630 = vmatprep.subr.mxu0 0.0
        %631 = vmatpush1.msra.mxu0 0.0
        %632 = vmatprep.subr.mxu0 0.0
        %633 = vmatpush1.msra.mxu0 0.0
        %634 = vmatprep.subr.mxu0 0.0
        %635 = vmatpush1.msra.mxu0 0.0
        %636 = vmatprep.subr.mxu0 0.0
        %637 = vmatpush1.msra.mxu0 0.0
        %638 = vmatprep.subr.mxu0 0.0
        %639 = vmatpush1.msra.mxu0 0.0
        %640 = vmatprep.subr.mxu0 0.0
        %641 = vmatpush1.msra.mxu0 0.0
        %642 = vmatprep.subr.mxu0 0.0
        %643 = vmatpush1.msra.mxu0 0.0
        %644 = vmatprep.subr.mxu0 0.0
        %645 = vmatpush1.msra.mxu0 0.0
        %646 = vmatprep.subr.mxu0 0.0
        %647 = vmatpush1.msra.mxu0 0.0
        %648 = vmatprep.subr.mxu0 0.0
        %649 = vmatpush1.msra.mxu0 0.0
        %650 = vmatprep.subr.mxu0 0.0
        %651 = vmatpush1.msra.mxu0 0.0
        %652 = vmatprep.subr.mxu0 0.0
        %653 = vmatpush1.msra.mxu0 0.0
        %654 = vmatprep.subr.mxu0 0.0
        %655 = vmatpush1.msra.mxu0 0.0
        %656 = vmatprep.subr.mxu0 0.0
        %657 = vmatpush1.msra.mxu0 0.0
        %658 = vmatprep.subr.mxu0 0.0
        %659 = vmatpush1.msra.mxu0 0.0
        %660 = vmatprep.subr.mxu0 0.0
        %661 = vmatpush1.msra.mxu0 0.0
        %662 = vmatprep.subr.mxu0 0.0
        %663 = vmatpush1.msra.mxu0 0.0
        %664 = vmatprep.subr.mxu0 0.0
        %665 = vmatpush1.msra.mxu0 0.0
        %666 = vmatprep.subr.mxu0 0.0
        %667 = vmatpush1.msra.mxu0 0.0
        %668 = vmatprep.subr.mxu0 0.0
        %669 = vmatpush1.msra.mxu0 0.0
        %670 = vmatprep.subr.mxu0 0.0
        %671 = vmatpush1.msra.mxu0 0.0
        %672 = vmatprep.subr.mxu0 0.0
        %673 = vmatpush1.msra.mxu0 0.0
        %674 = vmatprep.subr.mxu0 0.0
        %675 = vmatpush1.msra.mxu0 0.0
        %676 = vmatprep.subr.mxu0 0.0
        %677 = vmatpush1.msra.mxu0 0.0
        %678 = vmatprep.subr.mxu0 0.0
        %679 = vmatpush1.msra.mxu0 0.0
        %680 = vmatprep.subr.mxu0 0.0
        %681 = vmatpush1.msra.mxu0 0.0
        %682 = vmatprep.subr.mxu0 0.0
        %683 = vmatpush1.msra.mxu0 0.0
        %684 = vmatprep.subr.mxu0 0.0
        %685 = vmatpush1.msra.mxu0 0.0
        %686 = vmatprep.mubr.f32.mxu0 0.0
        %687 = vmatmul.mubr.f32.gmra.mrb[0].mxu0 %v620
        %v688 = vpop.f32.mrb[0].mxu0
        %v689 = vadd.f32 0.0, %v688
        %v690 = vpop.f32.mrb[0].mxu0
        %691 = vdwg.mxu0
        %693 = vset.pattern.permute.xlu0 0
        %694 = vperm.xlu0 %693, %v570
        %v695 = vpop.permute.xlu0 %694
        %v697 = vmul.f32 %v689, %v695
        %698 = vst.msk [vmem:[#allocation2] sm:$0xff] %vm619, %v697
        %v699 = vlaneseq
        %v700 = vshrl.u32 %v699, 7
        %v701 = vsub.s32 1, %v700
        %v702 = vrot.slane %v568, %v701
        %704 = vrot.lane.b32.xlu0 %v702, 1
        %v705 = vpop.permute.xlu0 %704
        %v707 = vsel %vm587, 0.0, %v705
        %v708 = vsel %vm590, %v707, %v702
        %710 = vrot.lane.b32.xlu0 %v708, 2
        %v711 = vpop.permute.xlu0 %710
        %v713 = vsel %vm596, 0.0, %v711
        %v714 = vsel %vm599, %v713, %v708
        %716 = vrot.lane.b32.xlu0 %v714, 4
        %v717 = vpop.permute.xlu0 %716
        %v719 = vsel %vm605, 0.0, %v717
        %v720 = vsel %vm608, %v719, %v714
        %721 = vset.pattern.permute.xlu0 1
        %722 = vperm.xlu0 %721, %v569
        %v723 = vpop.permute.xlu0 %722
        %v725 = vmul.f32 %v567, %v723
        %727 = vrot.lane.b32.xlu0 %v720, 120
        %v728 = vpop.permute.xlu0 %727
        %730 = vrot.lane.b32.xlu0 %v725, 120
        %v731 = vpop.permute.xlu0 %730
        %v733 = vsel %vm619, %v728, 0
        %735 = vmatprep.subr.mxu0 0.0
        %736 = vmatpush1.msra.mxu0 %v731
        %737 = vmatprep.subr.mxu0 0.0
        %738 = vmatpush1.msra.mxu0 0.0
        %739 = vmatprep.subr.mxu0 0.0
        %740 = vmatpush1.msra.mxu0 0.0
        %741 = vmatprep.subr.mxu0 0.0
        %742 = vmatpush1.msra.mxu0 0.0
        %743 = vmatprep.subr.mxu0 0.0
        %744 = vmatpush1.msra.mxu0 0.0
        %745 = vmatprep.subr.mxu0 0.0
        %746 = vmatpush1.msra.mxu0 0.0
        %747 = vmatprep.subr.mxu0 0.0
        %748 = vmatpush1.msra.mxu0 0.0
        %749 = vmatprep.subr.mxu0 0.0
        %750 = vmatpush1.msra.mxu0 0.0
        %751 = vmatprep.subr.mxu0 0.0
        %752 = vmatpush1.msra.mxu0 0.0
        %753 = vmatprep.subr.mxu0 0.0
        %754 = vmatpush1.msra.mxu0 0.0
        %755 = vmatprep.subr.mxu0 0.0
        %756 = vmatpush1.msra.mxu0 0.0
        %757 = vmatprep.subr.mxu0 0.0
        %758 = vmatpush1.msra.mxu0 0.0
        %759 = vmatprep.subr.mxu0 0.0
        %760 = vmatpush1.msra.mxu0 0.0
        %761 = vmatprep.subr.mxu0 0.0
        %762 = vmatpush1.msra.mxu0 0.0
        %763 = vmatprep.subr.mxu0 0.0
        %764 = vmatpush1.msra.mxu0 0.0
        %765 = vmatprep.subr.mxu0 0.0
        %766 = vmatpush1.msra.mxu0 0.0
        %767 = vmatprep.subr.mxu0 0.0
        %768 = vmatpush1.msra.mxu0 0.0
        %769 = vmatprep.subr.mxu0 0.0
        %770 = vmatpush1.msra.mxu0 0.0
        %771 = vmatprep.subr.mxu0 0.0
        %772 = vmatpush1.msra.mxu0 0.0
        %773 = vmatprep.subr.mxu0 0.0
        %774 = vmatpush1.msra.mxu0 0.0
        %775 = vmatprep.subr.mxu0 0.0
        %776 = vmatpush1.msra.mxu0 0.0
        %777 = vmatprep.subr.mxu0 0.0
        %778 = vmatpush1.msra.mxu0 0.0
        %779 = vmatprep.subr.mxu0 0.0
        %780 = vmatpush1.msra.mxu0 0.0
        %781 = vmatprep.subr.mxu0 0.0
        %782 = vmatpush1.msra.mxu0 0.0
        %783 = vmatprep.subr.mxu0 0.0
        %784 = vmatpush1.msra.mxu0 0.0
        %785 = vmatprep.subr.mxu0 0.0
        %786 = vmatpush1.msra.mxu0 0.0
        %787 = vmatprep.subr.mxu0 0.0
        %788 = vmatpush1.msra.mxu0 0.0
        %789 = vmatprep.subr.mxu0 0.0
        %790 = vmatpush1.msra.mxu0 0.0
        %791 = vmatprep.subr.mxu0 0.0
        %792 = vmatpush1.msra.mxu0 0.0
        %793 = vmatprep.subr.mxu0 0.0
        %794 = vmatpush1.msra.mxu0 0.0
        %795 = vmatprep.subr.mxu0 0.0
        %796 = vmatpush1.msra.mxu0 0.0
        %797 = vmatprep.subr.mxu0 0.0
        %798 = vmatpush1.msra.mxu0 0.0
        %799 = vmatprep.mubr.f32.mxu0 0.0
        %800 = vmatmul.mubr.f32.gmra.mrb[0].mxu0 %v733
        %v801 = vpop.f32.mrb[0].mxu0
        %v802 = vadd.f32 0.0, %v801
        %v803 = vpop.f32.mrb[0].mxu0
        %804 = vdwg.mxu0
        %805 = vset.pattern.permute.xlu0 1
        %806 = vperm.xlu0 %805, %v570
        %v807 = vpop.permute.xlu0 %806
        %v809 = vmul.f32 %v802, %v807
        %811 = vrot.lane.b32.xlu0 %v809, 8
        %v812 = vpop.permute.xlu0 %811
        %vm814 = vcmask 130112
        %815 = vst.msk [vmem:[#allocation2] sm:$0xff] %vm814, %v812
        %v816 = vlaneseq
        %v817 = vshrl.u32 %v816, 7
        %v818 = vsub.s32 2, %v817
        %v819 = vrot.slane %v568, %v818
        %821 = vrot.lane.b32.xlu0 %v819, 1
        %v822 = vpop.permute.xlu0 %821
        %v824 = vsel %vm587, 0.0, %v822
        %v825 = vsel %vm590, %v824, %v819
        %827 = vrot.lane.b32.xlu0 %v825, 2
        %v828 = vpop.permute.xlu0 %827
        %v830 = vsel %vm596, 0.0, %v828
        %v831 = vsel %vm599, %v830, %v825
        %833 = vrot.lane.b32.xlu0 %v831, 4
        %v834 = vpop.permute.xlu0 %833
        %v836 = vsel %vm605, 0.0, %v834
        %v837 = vsel %vm608, %v836, %v831
        %838 = vset.pattern.permute.xlu0 2
        %839 = vperm.xlu0 %838, %v569
        %v840 = vpop.permute.xlu0 %839
        %v842 = vmul.f32 %v567, %v840
        %844 = vrot.lane.b32.xlu0 %v837, 120
        %v845 = vpop.permute.xlu0 %844
        %847 = vrot.lane.b32.xlu0 %v842, 112
        %v848 = vpop.permute.xlu0 %847
        %v850 = vsel %vm619, %v845, 0
        %852 = vmatprep.subr.mxu0 0.0
        %853 = vmatpush1.msra.mxu0 %v848
        %854 = vmatprep.subr.mxu0 0.0
        %855 = vmatpush1.msra.mxu0 0.0
        %856 = vmatprep.subr.mxu0 0.0
        %857 = vmatpush1.msra.mxu0 0.0
        %858 = vmatprep.subr.mxu0 0.0
        %859 = vmatpush1.msra.mxu0 0.0
        %860 = vmatprep.subr.mxu0 0.0
        %861 = vmatpush1.msra.mxu0 0.0
        %862 = vmatprep.subr.mxu0 0.0
        %863 = vmatpush1.msra.mxu0 0.0
        %864 = vmatprep.subr.mxu0 0.0
        %865 = vmatpush1.msra.mxu0 0.0
        %866 = vmatprep.subr.mxu0 0.0
        %867 = vmatpush1.msra.mxu0 0.0
        %868 = vmatprep.subr.mxu0 0.0
        %869 = vmatpush1.msra.mxu0 0.0
        %870 = vmatprep.subr.mxu0 0.0
        %871 = vmatpush1.msra.mxu0 0.0
        %872 = vmatprep.subr.mxu0 0.0
        %873 = vmatpush1.msra.mxu0 0.0
        %874 = vmatprep.subr.mxu0 0.0
        %875 = vmatpush1.msra.mxu0 0.0
        %876 = vmatprep.subr.mxu0 0.0
        %877 = vmatpush1.msra.mxu0 0.0
        %878 = vmatprep.subr.mxu0 0.0
        %879 = vmatpush1.msra.mxu0 0.0
        %880 = vmatprep.subr.mxu0 0.0
        %881 = vmatpush1.msra.mxu0 0.0
        %882 = vmatprep.subr.mxu0 0.0
        %883 = vmatpush1.msra.mxu0 0.0
        %884 = vmatprep.subr.mxu0 0.0
        %885 = vmatpush1.msra.mxu0 0.0
        %886 = vmatprep.subr.mxu0 0.0
        %887 = vmatpush1.msra.mxu0 0.0
        %888 = vmatprep.subr.mxu0 0.0
        %889 = vmatpush1.msra.mxu0 0.0
        %890 = vmatprep.subr.mxu0 0.0
        %891 = vmatpush1.msra.mxu0 0.0
        %892 = vmatprep.subr.mxu0 0.0
        %893 = vmatpush1.msra.mxu0 0.0
        %894 = vmatprep.subr.mxu0 0.0
        %895 = vmatpush1.msra.mxu0 0.0
        %896 = vmatprep.subr.mxu0 0.0
        %897 = vmatpush1.msra.mxu0 0.0
        %898 = vmatprep.subr.mxu0 0.0
        %899 = vmatpush1.msra.mxu0 0.0
        %900 = vmatprep.subr.mxu0 0.0
        %901 = vmatpush1.msra.mxu0 0.0
        %902 = vmatprep.subr.mxu0 0.0
        %903 = vmatpush1.msra.mxu0 0.0
        %904 = vmatprep.subr.mxu0 0.0
        %905 = vmatpush1.msra.mxu0 0.0
        %906 = vmatprep.subr.mxu0 0.0
        %907 = vmatpush1.msra.mxu0 0.0
        %908 = vmatprep.subr.mxu0 0.0
        %909 = vmatpush1.msra.mxu0 0.0
        %910 = vmatprep.subr.mxu0 0.0
        %911 = vmatpush1.msra.mxu0 0.0
        %912 = vmatprep.subr.mxu0 0.0
        %913 = vmatpush1.msra.mxu0 0.0
        %914 = vmatprep.subr.mxu0 0.0
        %915 = vmatpush1.msra.mxu0 0.0
        %916 = vmatprep.mubr.f32.mxu0 0.0
        %917 = vmatmul.mubr.f32.gmra.mrb[0].mxu0 %v850
        %v918 = vpop.f32.mrb[0].mxu0
        %v919 = vadd.f32 0.0, %v918
        %v920 = vpop.f32.mrb[0].mxu0
        %921 = vdwg.mxu0
        %922 = vset.pattern.permute.xlu0 2
        %923 = vperm.xlu0 %922, %v570
        %v924 = vpop.permute.xlu0 %923
        %v926 = vmul.f32 %v919, %v924
        %928 = vrot.lane.b32.xlu0 %v926, 16
        %v929 = vpop.permute.xlu0 %928
        %vm931 = vcmask 195712
        %932 = vst.msk [vmem:[#allocation2] sm:$0xff] %vm931, %v929
        %v933 = vlaneseq
        %v934 = vshrl.u32 %v933, 7
        %v935 = vsub.s32 3, %v934
        %v936 = vrot.slane %v568, %v935
        %938 = vrot.lane.b32.xlu0 %v936, 1
        %v939 = vpop.permute.xlu0 %938
        %v941 = vsel %vm587, 0.0, %v939
        %v942 = vsel %vm590, %v941, %v936
        %944 = vrot.lane.b32.xlu0 %v942, 2
        %v945 = vpop.permute.xlu0 %944
        %v947 = vsel %vm596, 0.0, %v945
        %v948 = vsel %vm599, %v947, %v942
        %950 = vrot.lane.b32.xlu0 %v948, 4
        %v951 = vpop.permute.xlu0 %950
        %v953 = vsel %vm605, 0.0, %v951
        %v954 = vsel %vm608, %v953, %v948
        %955 = vset.pattern.permute.xlu0 3
        %956 = vperm.xlu0 %955, %v569
        %v957 = vpop.permute.xlu0 %956
        %v959 = vmul.f32 %v567, %v957
        %961 = vrot.lane.b32.xlu0 %v954, 120
        %v962 = vpop.permute.xlu0 %961
        %964 = vrot.lane.b32.xlu0 %v959, 104
        %v965 = vpop.permute.xlu0 %964
        %v967 = vsel %vm619, %v962, 0
        %969 = vmatprep.subr.mxu0 0.0
        %970 = vmatpush1.msra.mxu0 %v965
        %971 = vmatprep.subr.mxu0 0.0
        %972 = vmatpush1.msra.mxu0 0.0
        %973 = vmatprep.subr.mxu0 0.0
        %974 = vmatpush1.msra.mxu0 0.0
        %975 = vmatprep.subr.mxu0 0.0
        %976 = vmatpush1.msra.mxu0 0.0
        %977 = vmatprep.subr.mxu0 0.0
        %978 = vmatpush1.msra.mxu0 0.0
        %979 = vmatprep.subr.mxu0 0.0
        %980 = vmatpush1.msra.mxu0 0.0
        %981 = vmatprep.subr.mxu0 0.0
        %982 = vmatpush1.msra.mxu0 0.0
        %983 = vmatprep.subr.mxu0 0.0
        %984 = vmatpush1.msra.mxu0 0.0
        %985 = vmatprep.subr.mxu0 0.0
        %986 = vmatpush1.msra.mxu0 0.0
        %987 = vmatprep.subr.mxu0 0.0
        %988 = vmatpush1.msra.mxu0 0.0
        %989 = vmatprep.subr.mxu0 0.0
        %990 = vmatpush1.msra.mxu0 0.0
        %991 = vmatprep.subr.mxu0 0.0
        %992 = vmatpush1.msra.mxu0 0.0
        %993 = vmatprep.subr.mxu0 0.0
        %994 = vmatpush1.msra.mxu0 0.0
        %995 = vmatprep.subr.mxu0 0.0
        %996 = vmatpush1.msra.mxu0 0.0
        %997 = vmatprep.subr.mxu0 0.0
        %998 = vmatpush1.msra.mxu0 0.0
        %999 = vmatprep.subr.mxu0 0.0
        %1000 = vmatpush1.msra.mxu0 0.0
        %1001 = vmatprep.subr.mxu0 0.0
        %1002 = vmatpush1.msra.mxu0 0.0
        %1003 = vmatprep.subr.mxu0 0.0
        %1004 = vmatpush1.msra.mxu0 0.0
        %1005 = vmatprep.subr.mxu0 0.0
        %1006 = vmatpush1.msra.mxu0 0.0
        %1007 = vmatprep.subr.mxu0 0.0
        %1008 = vmatpush1.msra.mxu0 0.0
        %1009 = vmatprep.subr.mxu0 0.0
        %1010 = vmatpush1.msra.mxu0 0.0
        %1011 = vmatprep.subr.mxu0 0.0
        %1012 = vmatpush1.msra.mxu0 0.0
        %1013 = vmatprep.subr.mxu0 0.0
        %1014 = vmatpush1.msra.mxu0 0.0
        %1015 = vmatprep.subr.mxu0 0.0
        %1016 = vmatpush1.msra.mxu0 0.0
        %1017 = vmatprep.subr.mxu0 0.0
        %1018 = vmatpush1.msra.mxu0 0.0
        %1019 = vmatprep.subr.mxu0 0.0
        %1020 = vmatpush1.msra.mxu0 0.0
        %1021 = vmatprep.subr.mxu0 0.0
        %1022 = vmatpush1.msra.mxu0 0.0
        %1023 = vmatprep.subr.mxu0 0.0
        %1024 = vmatpush1.msra.mxu0 0.0
        %1025 = vmatprep.subr.mxu0 0.0
        %1026 = vmatpush1.msra.mxu0 0.0
        %1027 = vmatprep.subr.mxu0 0.0
        %1028 = vmatpush1.msra.mxu0 0.0
        %1029 = vmatprep.subr.mxu0 0.0
        %1030 = vmatpush1.msra.mxu0 0.0
        %1031 = vmatprep.subr.mxu0 0.0
        %1032 = vmatpush1.msra.mxu0 0.0
        %1033 = vmatprep.mubr.f32.mxu0 0.0
        %1034 = vmatmul.mubr.f32.gmra.mrb[0].mxu0 %v967
        %v1035 = vpop.f32.mrb[0].mxu0
        %v1036 = vadd.f32 0.0, %v1035
        %v1037 = vpop.f32.mrb[0].mxu0
        %1038 = vdwg.mxu0
        %1039 = vset.pattern.permute.xlu0 3
        %1040 = vperm.xlu0 %1039, %v570
        %v1041 = vpop.permute.xlu0 %1040
        %v1043 = vmul.f32 %v1036, %v1041
        %1045 = vrot.lane.b32.xlu0 %v1043, 24
        %v1046 = vpop.permute.xlu0 %1045
        %vm1048 = vcmask 261312
        %1049 = vst.msk [vmem:[#allocation2] sm:$0xff] %vm1048, %v1046
        %v1050 = vrcp.pop %v562
        %v1051 = vmul.f32 %v562, %v1050
        %v1052 = vsub.f32 2.0, %v1051
        %v1053 = vmul.f32 %v1050, %v1052
        %v1054 = vxor.u32 %v536, 2147483648
        %v1055 = vmul.f32 %v1054, 1.442695
        %v1056 = vpow.pop %v1055
        %v1057 = vadd.f32 %v1056, 1.0
        %v1058 = vrcp.pop %v1057
        %v1059 = vmul.f32 1.0, %v1058
        %v1060 = vld [vmem:[#allocation2] sm:$0xff]
        %1062 = vrot.lane.b32.xlu0 %v1060, 64
        %v1063 = vpop.permute.xlu0 %1062
        %v1065 = vmul.f32 %v1059, %v1063
        %1067 = vrot.lane.b32.xlu0 %v1053, 64
        %v1068 = vpop.permute.xlu0 %1067
        %v1070 = vmul.f32 %v1065, %v1068
        %v1071 = vpack.c.bf16 %v1070, %v1070
        %v1072 = vld [vmem:[#allocation14] sm:$0xf]
        %v1073 = vld [vmem:[#allocation14 + $0x4] sm:$0xf]
        %v1074 = vld [vmem:[#allocation14 + $0x8] sm:$0xf]
        %v1075 = vld [vmem:[#allocation14 + $0xc] sm:$0xf]
        %v1076 = vld [vmem:[#allocation15] sm:$0x1]
        %v1078 = vlaneseq
        %v1079 = vshrl.u32 %v1078, 7
        %v1080 = vsub.s32 0, %v1079
        %v1081 = vrot.slane %v1076, %v1080
        %1084 = vrot.lane.b32.xlu0 %v1071, 64
        %v1085 = vpop.permute.xlu0 %1084
        %v1090 = vunpack.c.l.b16 %v1072
        %v1091 = vunpack.c.l.b16 %v1073
        %v1092 = vunpack.c.l.b16 %v1074
        %v1093 = vunpack.c.l.b16 %v1075
        %v1094 = vpack.c.b16 %v1091, %v1090
        %v1095 = vpack.c.b16 %v1093, %v1092
        %v1099 = vsel %vm497, %v1085, 0
        %1101 = vmatprep.subr.bf16.mxu0 0
        %1102 = vmatpush1.bf16.msra.mxu0 %v1094
        %1103 = vmatprep.subr.bf16.mxu0 0
        %1104 = vmatpush1.bf16.msra.mxu0 %v1095
        %1105 = vmatprep.subr.bf16.mxu0 0
        %1106 = vmatpush1.bf16.msra.mxu0 0
        %1107 = vmatprep.subr.bf16.mxu0 0
        %1108 = vmatpush1.bf16.msra.mxu0 0
        %1109 = vmatprep.subr.bf16.mxu0 0
        %1110 = vmatpush1.bf16.msra.mxu0 0
        %1111 = vmatprep.subr.bf16.mxu0 0
        %1112 = vmatpush1.bf16.msra.mxu0 0
        %1113 = vmatprep.subr.bf16.mxu0 0
        %1114 = vmatpush1.bf16.msra.mxu0 0
        %1115 = vmatprep.subr.bf16.mxu0 0
        %1116 = vmatpush1.bf16.msra.mxu0 0
        %1117 = vmatprep.subr.bf16.mxu0 0
        %1118 = vmatpush1.bf16.msra.mxu0 0
        %1119 = vmatprep.subr.bf16.mxu0 0
        %1120 = vmatpush1.bf16.msra.mxu0 0
        %1121 = vmatprep.subr.bf16.mxu0 0
        %1122 = vmatpush1.bf16.msra.mxu0 0
        %1123 = vmatprep.subr.bf16.mxu0 0
        %1124 = vmatpush1.bf16.msra.mxu0 0
        %1125 = vmatprep.subr.bf16.mxu0 0
        %1126 = vmatpush1.bf16.msra.mxu0 0
        %1127 = vmatprep.subr.bf16.mxu0 0
        %1128 = vmatpush1.bf16.msra.mxu0 0
        %1129 = vmatprep.subr.bf16.mxu0 0
        %1130 = vmatpush1.bf16.msra.mxu0 0
        %1131 = vmatprep.subr.bf16.mxu0 0
        %1132 = vmatpush1.bf16.msra.mxu0 0
        %1133 = vmatprep.mubr.bf16.mxu0 0
        %1134 = vmatmul.mubr.bf16.gmra.mrb[0].mxu0 %v1099
        %v1135 = vpop.f32.mrb[0].mxu0
        %v1136 = vadd.f32 %v1081, %v1135
        %v1137 = vpop.f32.mrb[0].mxu0
        %v1138 = vpop.f32.mrb[0].mxu0
        %v1139 = vpop.f32.mrb[0].mxu0
        %1140 = vdwg.mxu0
        %v1141 = vld [vmem:[#allocation17] sm:$0xff]
        %1143 = vset.pattern.permute.xlu0 0
        %1144 = vperm.xlu0 %1143, %v1141
        %v1145 = vpop.permute.xlu0 %1144
        %v1147 = vmul.f32 %v1136, %v1145
        %1148 = vst.msk [vmem:[%s451] sm:$0xff] %vm497, %v1147
        %s1149 = sand.u32 %s232, 1
        %s1150 = scalar_lea.sflag [#allocation5], %s1149
        %s1151 = sand.u32 %s232, 1
        %s1152 = smul.addr %s1151, 8
        %s1153 = scalar_lea.vmem [#allocation18], %s1152
        // Predicated region
        $region93: #{tpu_custom_call.1} parent=55 // pred_check
          %p1154 = pneg %p242
        $region94: #{tpu_custom_call.1} parent=55 // pred_check_branch
          %1156 = sbr.rel (%p1154) target = $region96
        $region95: #{tpu_custom_call.1} parent=55 // pred_region
          %s1158 = ssub.s32 128, 128
          %1159 = vsyncadd %s1150, %s1158
          %s1160 = smul.addr %s30, 128
          %s1161 = scalar_lea.hbm %s9, %s1160
          %s1163 = sshll.u32 %s1153, 4
          %s1164 = int_to_ptr.vmem [resolvable:$true] %s1163
          %1166 = dma.vmem_to_hbm [thread:$0]  %s1164, 128, %s1161, %s1150
        $region96: #{tpu_custom_call.1} parent=55 // pred_fallthru
          _
      $region56: #{tpu_custom_call.1} parent=5 // pred_fallthru
        _
      %p1167 = scmp.le.s32.totalorder 2, %s25
      // Predicated region
      $region97: #{tpu_custom_call.1} parent=5 // pred_check
        %p1168 = pneg %p1167
      $region98: #{tpu_custom_call.1} parent=5 // pred_check_branch
        %1170 = sbr.rel (%p1168) target = $region100
      $region99: #{tpu_custom_call.1} parent=5 // pred_region
        %s1171 = ssub.s32 %s25, 2
        // Predicated region
        $region101: #{tpu_custom_call.1} parent=99 // pred_check
          %p1172 = pneg %p248
        $region102: #{tpu_custom_call.1} parent=99 // pred_check_branch
          %1174 = sbr.rel (%p1172) target = $region104
        $region103: #{tpu_custom_call.1} parent=99 // pred_region
          %s1175 = sand.u32 %s233, 1
          %s1176 = scalar_lea.sflag [#allocation5], %s1175
          %s1177 = sand.u32 %s233, 1
          %s1178 = smul.addr %s1177, 8
          %s1179 = scalar_lea.vmem [#allocation18], %s1178
          %1180 = dma.done %s1176, 128
        $region104: #{tpu_custom_call.1} parent=99 // pred_fallthru
          _
      $region100: #{tpu_custom_call.1} parent=5 // pred_fallthru
        _
    $region6: #{tpu_custom_call.1} parent=1 // loop_footer
      %s29 = sadd.s32 1, %s25
    $region7: #{tpu_custom_call.1} parent=1 // loop_footer_branch
      %24 = sbr.rel target = $region3
    $region8: #{tpu_custom_call.1} parent=1 // loop_exit
      _
    %1181 = vsyncpa [#allocation4], 1
    %s1182 = scalar_lea.sflag [#allocation4], 1
    %1183 = vsyncpa %s1182, 1
    %1184 = vsyncpa [#allocation7], 1
    %1185 = vsyncpa [#allocation10], 1
    %1186 = vsyncpa [#allocation13], 1
    %1187 = vsyncpa [#allocation16], 1
    %1188 = vsyncpa [#allocation5], 1
    %s1189 = scalar_lea.sflag [#allocation5], 1
    %1190 = vsyncpa %s1189, 1

</llo_original>
